<compile_context>
chip_gen: v7x
topology: tpu7x:2x2x1
jax: 0.10.0
libtpu: 0.0.40
codegen_flags: <defaults>
</compile_context>

<pallas_src>
import functools

import jax
import jax.numpy as jnp
from jax import lax
from jax.experimental import pallas as pl
from jax.experimental.pallas import tpu as pltpu


# ----------------------------- Pallas kernels ------------------------------

def _conv_relu_pool_kernel(x_ref, te_ref, to_ref, b_ref, she_ref, sho_ref,
                           o_ref, *, K, H):
    """Fused 5x5 SAME conv + bias + ReLU + 2x2/stride-2 max-pool (one image).

    x_ref:   (1, H+4, Cin*Wp)     bf16  zero-padded rows, lane index = c*Wp+wp
    te_ref:  (K, Cin*Wp, O*W/2)   bf16  Toeplitz weights, even output columns
    to_ref:  (K, Cin*Wp, O*W/2)   bf16  Toeplitz weights, odd  output columns
    b_ref:   (1, O*W/2)           f32   bias repeated over the w positions
    she_ref: (H/2, H)             f32   0/1 even-row selector (h pooling)
    sho_ref: (H/2, H)             f32   0/1 odd-row  selector (h pooling)
    o_ref:   (1, H/2, O*W/2)      f32   pooled output, lane index = o*(W/2)+j
    """
    Lh = o_ref.shape[2]
    acc_e = jnp.zeros((H, Lh), jnp.float32)
    acc_o = jnp.zeros((H, Lh), jnp.float32)
    # Conv as K row-shifted GEMMs; even/odd w columns accumulated separately
    # so the w-direction pool below is a plain elementwise max.
    for dh in range(K):
        rows = x_ref[0, dh:dh + H, :]                          # (H, Cin*Wp)
        acc_e += jnp.dot(rows, te_ref[dh],
                         preferred_element_type=jnp.float32)
        acc_o += jnp.dot(rows, to_ref[dh],
                         preferred_element_type=jnp.float32)
    b = b_ref[...]
    ce = jnp.maximum(acc_e + b, 0.0)                           # bias + ReLU
    co = jnp.maximum(acc_o + b, 0.0)
    c = jnp.maximum(ce, co)                                    # pool over w
    pooled = jnp.maximum(                                      # pool over h
        jnp.dot(she_ref[...], c, preferred_element_type=jnp.float32),
        jnp.dot(sho_ref[...], c, preferred_element_type=jnp.float32))
    o_ref[0] = pooled.astype(o_ref.dtype)


def conv_relu_pool(x_rows, te, to, bias_half, she, sho):
    """(B, H+4, Cin*Wp) bf16 rows -> (B, H/2, O*W/2) f32 pooled activations."""
    B, Hp, Lin = x_rows.shape
    K, _, Lh = te.shape
    H = Hp - (K - 1)
    Hout = H // 2
    kernel = functools.partial(_conv_relu_pool_kernel, K=K, H=H)
    flops = 2 * B * (K * H * Lin * 2 * Lh + 2 * Hout * H * Lh)
    bytes_accessed = (x_rows.size * x_rows.dtype.itemsize
                      + 2 * te.size * te.dtype.itemsize
                      + B * Hout * Lh * 4)
    return pl.pallas_call(
        kernel,
        out_shape=jax.ShapeDtypeStruct((B, Hout, Lh), jnp.float32),
        grid=(B,),
        in_specs=[
            pl.BlockSpec((1, Hp, Lin), lambda b: (b, 0, 0)),   # per-image rows
            pl.BlockSpec((K, Lin, Lh), lambda b: (0, 0, 0)),   # weights resident
            pl.BlockSpec((K, Lin, Lh), lambda b: (0, 0, 0)),
            pl.BlockSpec((1, Lh), lambda b: (0, 0)),
            pl.BlockSpec((Hout, H), lambda b: (0, 0)),
            pl.BlockSpec((Hout, H), lambda b: (0, 0)),
        ],
        out_specs=pl.BlockSpec((1, Hout, Lh), lambda b: (b, 0, 0)),
        compiler_params=pltpu.CompilerParams(
            dimension_semantics=("parallel",)),
        cost_estimate=pl.CostEstimate(flops=flops, transcendentals=0,
                                      bytes_accessed=bytes_accessed),
    )(x_rows, te, to, bias_half, she, sho)


def _fc_kernel(x_ref, w_ref, b_ref, o_ref):
    o_ref[...] = (jnp.dot(x_ref[...], w_ref[...],
                          preferred_element_type=jnp.float32)
                  + b_ref[...]).astype(o_ref.dtype)


def fc(x, w, b):
    """Tiny dense head: whole operands fit VMEM -> single-block MXU GEMM."""
    M, K = x.shape
    _, N = w.shape
    vmem = pl.BlockSpec(memory_space=pltpu.MemorySpace.VMEM)
    return pl.pallas_call(
        _fc_kernel,
        out_shape=jax.ShapeDtypeStruct((M, N), jnp.float32),
        in_specs=[vmem, vmem, vmem],
        out_specs=vmem,
    )(x, w, b.reshape(1, N))


# ------------------------------ Glue (XLA) ----------------------------------

def _toeplitz_weights(w_oihw, W, Wp, dtype):
    """Expand (O, Cin, K, K) conv weights into per-dh Toeplitz GEMM matrices.

    T[dh, c*Wp + wp, o*(W//2) + j] = w[o, c, dh, wp - w] for w = 2j (even) /
    2j+1 (odd), zero where wp - w is outside [0, K).  Multiplying the padded
    input rows by these matrices computes the SAME conv for every output
    column at once (a few x redundant MACs, zero layout shuffles in-kernel).
    """
    O, Cin, K, _ = w_oihw.shape
    wp = jnp.arange(Wp)[:, None]
    w = jnp.arange(W)[None, :]
    dw = wp - w                                              # (Wp, W)
    valid = ((dw >= 0) & (dw < K)).astype(w_oihw.dtype)
    dw_c = jnp.clip(dw, 0, K - 1)
    wt = jnp.transpose(w_oihw, (2, 1, 0, 3))                 # (dh, c, o, dw)
    t = wt[:, :, :, dw_c] * valid[None, None, None]          # (dh, c, o, Wp, W)
    t = jnp.transpose(t, (0, 1, 3, 2, 4))                    # (dh, c, wp, o, w)
    t = t.reshape(K, Cin * Wp, O * W)
    return t[:, :, 0::2].astype(dtype), t[:, :, 1::2].astype(dtype)


def _pool_row_selectors(H):
    i = jnp.arange(H // 2)[:, None]
    h = jnp.arange(H)[None, :]
    she = (h == 2 * i).astype(jnp.float32)
    sho = (h == 2 * i + 1).astype(jnp.float32)
    return she, sho


def conv_block(x_bhcw, w_oihw, b, *, compute_dtype=jnp.bfloat16):
    """x_bhcw: (B, H, Cin, W) activations -> pooled (B, H//2, O, W//2) f32."""
    B, H, Cin, W = x_bhcw.shape
    O, Cin2, K, _ = w_oihw.shape
    assert Cin == Cin2
    pad = (K - 1) // 2
    Wp = W + 2 * pad
    xp = jnp.pad(x_bhcw, ((0, 0), (pad, pad), (0, 0), (pad, pad)))
    x_rows = xp.reshape(B, H + 2 * pad, Cin * Wp).astype(compute_dtype)
    te, to = _toeplitz_weights(w_oihw, W, Wp, compute_dtype)
    bias_half = jnp.repeat(b.astype(jnp.float32), W // 2).reshape(1, O * (W // 2))
    she, sho = _pool_row_selectors(H)
    y = conv_relu_pool(x_rows, te, to, bias_half, she, sho)   # (B, H/2, O*W/2)
    return y.reshape(B, H // 2, O, W // 2)


def cnn_forward(x_nchw, params):
    B = x_nchw.shape[0]
    x = jnp.transpose(x_nchw, (0, 2, 1, 3))            # (B, H, Cin=1, W), free-ish
    x = conv_block(x, params["w1"], params["b1"])      # (B, 14, 16, 14)
    x = conv_block(x, params["w2"], params["b2"])      # (B, 7, 32, 7)
    # flatten exactly like torch's x.view(B, -1) on NCHW: order (C, H, W)
    feat = jnp.transpose(x, (0, 2, 1, 3)).reshape(B, -1)   # (B, 1568)
    logits = fc(feat, params["w_out"].T, params["b_out"])
    return logits, feat


# ----------------------------- Params / reference ---------------------------

def init_params(key):
    ks = jax.random.split(key, 6)
    return {
        "w1": jax.random.normal(ks[0], (16, 1, 5, 5), jnp.float32) * 0.1,
        "b1": jax.random.normal(ks[1], (16,), jnp.float32) * 0.1,
        "w2": jax.random.normal(ks[2], (32, 16, 5, 5), jnp.float32) * 0.05,
        "b2": jax.random.normal(ks[3], (32,), jnp.float32) * 0.1,
        "w_out": jax.random.normal(ks[4], (10, 32 * 7 * 7), jnp.float32) * 0.02,
        "b_out": jax.random.normal(ks[5], (10,), jnp.float32) * 0.1,
    }


def cnn_forward_ref(x_nchw, params):
    """Pure-JAX reference (XLA conv / reduce_window) for correctness check."""
    def block(x, w, b):
        y = lax.conv_general_dilated(x, w, (1, 1), ((2, 2), (2, 2)),
                                     dimension_numbers=("NCHW", "OIHW", "NCHW"))
        y = jnp.maximum(y + b.reshape(1, -1, 1, 1), 0.0)
        return lax.reduce_window(y, -jnp.inf, lax.max,
                                 (1, 1, 2, 2), (1, 1, 2, 2), "VALID")

    x = block(x_nchw, params["w1"], params["b1"])
    x = block(x, params["w2"], params["b2"])
    feat = x.reshape(x.shape[0], -1)
    logits = feat @ params["w_out"].T + params["b_out"]
    return logits, feat


# ---------------------------------- main ------------------------------------

if __name__ == "__main__":
    key = jax.random.PRNGKey(0)
    kx, kp = jax.random.split(key)
    # Shapes dictated by the module: 28x28 grayscale, Linear expects 32*7*7.
    x = jax.random.normal(kx, (2, 1, 28, 28), jnp.float32)
    params = init_params(kp)

    logits, feat = jax.jit(cnn_forward)(x, params)
    jax.block_until_ready((logits, feat))

    assert logits.shape == (2, 10) and feat.shape == (2, 32 * 7 * 7)
    logits_ref, feat_ref = cnn_forward_ref(x, params)
    # bf16 MXU operands (f32 accumulation) -> compare at slightly relaxed tol.
    assert jnp.allclose(feat, feat_ref, rtol=2e-2, atol=2e-2)
    assert jnp.allclose(logits, logits_ref, rtol=2e-2, atol=2e-2)

    print("KERNEL_OK")
</pallas_src>

<mosaic_0001>
module attributes {stable_mosaic.version = 11 : i64} {
  func.func @_conv_relu_pool_kernel(%arg0: i32, %arg1: memref<1x32x32xbf16, #tpu.memory_space<vmem>>, %arg2: memref<5x32x224xbf16, #tpu.memory_space<vmem>>, %arg3: memref<5x32x224xbf16, #tpu.memory_space<vmem>>, %arg4: memref<1x224xf32, #tpu.memory_space<vmem>>, %arg5: memref<14x28xf32, #tpu.memory_space<vmem>>, %arg6: memref<14x28xf32, #tpu.memory_space<vmem>>, %arg7: memref<1x14x224xf32, #tpu.memory_space<vmem>>) attributes {dimension_semantics = [#tpu.dimension_semantics<parallel>], iteration_bounds = array<i64: 2>, scalar_prefetch = 0 : i64, scratch_operands = 0 : i64, tpu.core_type = #tpu.core_type<tc>, window_params = [{transform_indices = @transform_0, window_bounds = array<i64: 1, 32, 32>}, {pipeline_mode = #tpu.pipeline_mode<synchronous>, transform_indices = @transform_1, window_bounds = array<i64: 5, 32, 224>}, {pipeline_mode = #tpu.pipeline_mode<synchronous>, transform_indices = @transform_2, window_bounds = array<i64: 5, 32, 224>}, {pipeline_mode = #tpu.pipeline_mode<synchronous>, transform_indices = @transform_3, window_bounds = array<i64: 1, 224>}, {pipeline_mode = #tpu.pipeline_mode<synchronous>, transform_indices = @transform_4, window_bounds = array<i64: 14, 28>}, {pipeline_mode = #tpu.pipeline_mode<synchronous>, transform_indices = @transform_5, window_bounds = array<i64: 14, 28>}, {transform_indices = @transform_6, window_bounds = array<i64: 1, 14, 224>}]} {
    %cst = arith.constant 0.000000e+00 : f32
    %0 = vector.broadcast %cst : f32 to vector<28x224xf32>
    %cst_0 = arith.constant 0.000000e+00 : f32
    %1 = vector.broadcast %cst_0 : f32 to vector<28x224xf32>
    %c0 = arith.constant 0 : index
    %c0_1 = arith.constant 0 : index
    %c0_2 = arith.constant 0 : index
    %2 = vector.load %arg1[%c0, %c0_1, %c0_2] : memref<1x32x32xbf16, #tpu.memory_space<vmem>>, vector<1x28x32xbf16>
    %3 = vector.shape_cast %2 : vector<1x28x32xbf16> to vector<28x32xbf16>
    %c0_3 = arith.constant 0 : index
    %c0_4 = arith.constant 0 : index
    %c0_5 = arith.constant 0 : index
    %4 = vector.load %arg2[%c0_3, %c0_4, %c0_5] : memref<5x32x224xbf16, #tpu.memory_space<vmem>>, vector<1x32x224xbf16>
    %5 = vector.shape_cast %4 : vector<1x32x224xbf16> to vector<32x224xbf16>
    %cst_6 = arith.constant dense<0.000000e+00> : vector<28x224xf32>
    %6 = tpu.matmul %3, %5, %cst_6 {dimension_numbers = #tpu.dot_dimension_numbers<[1], [0], [0], [1], [0, 0, 1, 1], [], []>} : vector<28x32xbf16>, vector<32x224xbf16>, vector<28x224xf32> -> vector<28x224xf32>
    %7 = arith.addf %0, %6 : vector<28x224xf32>
    %c0_7 = arith.constant 0 : index
    %c0_8 = arith.constant 0 : index
    %c0_9 = arith.constant 0 : index
    %8 = vector.load %arg3[%c0_7, %c0_8, %c0_9] : memref<5x32x224xbf16, #tpu.memory_space<vmem>>, vector<1x32x224xbf16>
    %9 = vector.shape_cast %8 : vector<1x32x224xbf16> to vector<32x224xbf16>
    %cst_10 = arith.constant dense<0.000000e+00> : vector<28x224xf32>
    %10 = tpu.matmul %3, %9, %cst_10 {dimension_numbers = #tpu.dot_dimension_numbers<[1], [0], [0], [1], [0, 0, 1, 1], [], []>} : vector<28x32xbf16>, vector<32x224xbf16>, vector<28x224xf32> -> vector<28x224xf32>
    %11 = arith.addf %1, %10 : vector<28x224xf32>
    %c0_11 = arith.constant 0 : index
    %c1 = arith.constant 1 : index
    %c0_12 = arith.constant 0 : index
    %12 = vector.load %arg1[%c0_11, %c1, %c0_12] : memref<1x32x32xbf16, #tpu.memory_space<vmem>>, vector<1x28x32xbf16>
    %13 = vector.shape_cast %12 : vector<1x28x32xbf16> to vector<28x32xbf16>
    %c1_13 = arith.constant 1 : index
    %c0_14 = arith.constant 0 : index
    %c0_15 = arith.constant 0 : index
    %14 = vector.load %arg2[%c1_13, %c0_14, %c0_15] : memref<5x32x224xbf16, #tpu.memory_space<vmem>>, vector<1x32x224xbf16>
    %15 = vector.shape_cast %14 : vector<1x32x224xbf16> to vector<32x224xbf16>
    %cst_16 = arith.constant dense<0.000000e+00> : vector<28x224xf32>
    %16 = tpu.matmul %13, %15, %cst_16 {dimension_numbers = #tpu.dot_dimension_numbers<[1], [0], [0], [1], [0, 0, 1, 1], [], []>} : vector<28x32xbf16>, vector<32x224xbf16>, vector<28x224xf32> -> vector<28x224xf32>
    %17 = arith.addf %7, %16 : vector<28x224xf32>
    %c1_17 = arith.constant 1 : index
    %c0_18 = arith.constant 0 : index
    %c0_19 = arith.constant 0 : index
    %18 = vector.load %arg3[%c1_17, %c0_18, %c0_19] : memref<5x32x224xbf16, #tpu.memory_space<vmem>>, vector<1x32x224xbf16>
    %19 = vector.shape_cast %18 : vector<1x32x224xbf16> to vector<32x224xbf16>
    %cst_20 = arith.constant dense<0.000000e+00> : vector<28x224xf32>
    %20 = tpu.matmul %13, %19, %cst_20 {dimension_numbers = #tpu.dot_dimension_numbers<[1], [0], [0], [1], [0, 0, 1, 1], [], []>} : vector<28x32xbf16>, vector<32x224xbf16>, vector<28x224xf32> -> vector<28x224xf32>
    %21 = arith.addf %11, %20 : vector<28x224xf32>
    %c0_21 = arith.constant 0 : index
    %c2 = arith.constant 2 : index
    %c0_22 = arith.constant 0 : index
    %22 = vector.load %arg1[%c0_21, %c2, %c0_22] : memref<1x32x32xbf16, #tpu.memory_space<vmem>>, vector<1x28x32xbf16>
    %23 = vector.shape_cast %22 : vector<1x28x32xbf16> to vector<28x32xbf16>
    %c2_23 = arith.constant 2 : index
    %c0_24 = arith.constant 0 : index
    %c0_25 = arith.constant 0 : index
    %24 = vector.load %arg2[%c2_23, %c0_24, %c0_25] : memref<5x32x224xbf16, #tpu.memory_space<vmem>>, vector<1x32x224xbf16>
    %25 = vector.shape_cast %24 : vector<1x32x224xbf16> to vector<32x224xbf16>
    %cst_26 = arith.constant dense<0.000000e+00> : vector<28x224xf32>
    %26 = tpu.matmul %23, %25, %cst_26 {dimension_numbers = #tpu.dot_dimension_numbers<[1], [0], [0], [1], [0, 0, 1, 1], [], []>} : vector<28x32xbf16>, vector<32x224xbf16>, vector<28x224xf32> -> vector<28x224xf32>
    %27 = arith.addf %17, %26 : vector<28x224xf32>
    %c2_27 = arith.constant 2 : index
    %c0_28 = arith.constant 0 : index
    %c0_29 = arith.constant 0 : index
    %28 = vector.load %arg3[%c2_27, %c0_28, %c0_29] : memref<5x32x224xbf16, #tpu.memory_space<vmem>>, vector<1x32x224xbf16>
    %29 = vector.shape_cast %28 : vector<1x32x224xbf16> to vector<32x224xbf16>
    %cst_30 = arith.constant dense<0.000000e+00> : vector<28x224xf32>
    %30 = tpu.matmul %23, %29, %cst_30 {dimension_numbers = #tpu.dot_dimension_numbers<[1], [0], [0], [1], [0, 0, 1, 1], [], []>} : vector<28x32xbf16>, vector<32x224xbf16>, vector<28x224xf32> -> vector<28x224xf32>
    %31 = arith.addf %21, %30 : vector<28x224xf32>
    %c0_31 = arith.constant 0 : index
    %c3 = arith.constant 3 : index
    %c0_32 = arith.constant 0 : index
    %32 = vector.load %arg1[%c0_31, %c3, %c0_32] : memref<1x32x32xbf16, #tpu.memory_space<vmem>>, vector<1x28x32xbf16>
    %33 = vector.shape_cast %32 : vector<1x28x32xbf16> to vector<28x32xbf16>
    %c3_33 = arith.constant 3 : index
    %c0_34 = arith.constant 0 : index
    %c0_35 = arith.constant 0 : index
    %34 = vector.load %arg2[%c3_33, %c0_34, %c0_35] : memref<5x32x224xbf16, #tpu.memory_space<vmem>>, vector<1x32x224xbf16>
    %35 = vector.shape_cast %34 : vector<1x32x224xbf16> to vector<32x224xbf16>
    %cst_36 = arith.constant dense<0.000000e+00> : vector<28x224xf32>
    %36 = tpu.matmul %33, %35, %cst_36 {dimension_numbers = #tpu.dot_dimension_numbers<[1], [0], [0], [1], [0, 0, 1, 1], [], []>} : vector<28x32xbf16>, vector<32x224xbf16>, vector<28x224xf32> -> vector<28x224xf32>
    %37 = arith.addf %27, %36 : vector<28x224xf32>
    %c3_37 = arith.constant 3 : index
    %c0_38 = arith.constant 0 : index
    %c0_39 = arith.constant 0 : index
    %38 = vector.load %arg3[%c3_37, %c0_38, %c0_39] : memref<5x32x224xbf16, #tpu.memory_space<vmem>>, vector<1x32x224xbf16>
    %39 = vector.shape_cast %38 : vector<1x32x224xbf16> to vector<32x224xbf16>
    %cst_40 = arith.constant dense<0.000000e+00> : vector<28x224xf32>
    %40 = tpu.matmul %33, %39, %cst_40 {dimension_numbers = #tpu.dot_dimension_numbers<[1], [0], [0], [1], [0, 0, 1, 1], [], []>} : vector<28x32xbf16>, vector<32x224xbf16>, vector<28x224xf32> -> vector<28x224xf32>
    %41 = arith.addf %31, %40 : vector<28x224xf32>
    %c0_41 = arith.constant 0 : index
    %c4 = arith.constant 4 : index
    %c0_42 = arith.constant 0 : index
    %42 = vector.load %arg1[%c0_41, %c4, %c0_42] : memref<1x32x32xbf16, #tpu.memory_space<vmem>>, vector<1x28x32xbf16>
    %43 = vector.shape_cast %42 : vector<1x28x32xbf16> to vector<28x32xbf16>
    %c4_43 = arith.constant 4 : index
    %c0_44 = arith.constant 0 : index
    %c0_45 = arith.constant 0 : index
    %44 = vector.load %arg2[%c4_43, %c0_44, %c0_45] : memref<5x32x224xbf16, #tpu.memory_space<vmem>>, vector<1x32x224xbf16>
    %45 = vector.shape_cast %44 : vector<1x32x224xbf16> to vector<32x224xbf16>
    %cst_46 = arith.constant dense<0.000000e+00> : vector<28x224xf32>
    %46 = tpu.matmul %43, %45, %cst_46 {dimension_numbers = #tpu.dot_dimension_numbers<[1], [0], [0], [1], [0, 0, 1, 1], [], []>} : vector<28x32xbf16>, vector<32x224xbf16>, vector<28x224xf32> -> vector<28x224xf32>
    %47 = arith.addf %37, %46 : vector<28x224xf32>
    %c4_47 = arith.constant 4 : index
    %c0_48 = arith.constant 0 : index
    %c0_49 = arith.constant 0 : index
    %48 = vector.load %arg3[%c4_47, %c0_48, %c0_49] : memref<5x32x224xbf16, #tpu.memory_space<vmem>>, vector<1x32x224xbf16>
    %49 = vector.shape_cast %48 : vector<1x32x224xbf16> to vector<32x224xbf16>
    %cst_50 = arith.constant dense<0.000000e+00> : vector<28x224xf32>
    %50 = tpu.matmul %43, %49, %cst_50 {dimension_numbers = #tpu.dot_dimension_numbers<[1], [0], [0], [1], [0, 0, 1, 1], [], []>} : vector<28x32xbf16>, vector<32x224xbf16>, vector<28x224xf32> -> vector<28x224xf32>
    %51 = arith.addf %41, %50 : vector<28x224xf32>
    %c0_51 = arith.constant 0 : index
    %c0_52 = arith.constant 0 : index
    %52 = vector.load %arg4[%c0_51, %c0_52] : memref<1x224xf32, #tpu.memory_space<vmem>>, vector<1x224xf32>
    %53 = vector.broadcast %52 : vector<1x224xf32> to vector<28x224xf32>
    %54 = arith.addf %47, %53 : vector<28x224xf32>
    %cst_53 = arith.constant 0.000000e+00 : f32
    %55 = vector.broadcast %cst_53 : f32 to vector<28x224xf32>
    %56 = arith.maximumf %54, %55 : vector<28x224xf32>
    %57 = vector.broadcast %52 : vector<1x224xf32> to vector<28x224xf32>
    %58 = arith.addf %51, %57 : vector<28x224xf32>
    %cst_54 = arith.constant 0.000000e+00 : f32
    %59 = vector.broadcast %cst_54 : f32 to vector<28x224xf32>
    %60 = arith.maximumf %58, %59 : vector<28x224xf32>
    %61 = arith.maximumf %56, %60 : vector<28x224xf32>
    %c0_55 = arith.constant 0 : index
    %c0_56 = arith.constant 0 : index
    %62 = vector.load %arg5[%c0_55, %c0_56] : memref<14x28xf32, #tpu.memory_space<vmem>>, vector<14x28xf32>
    %cst_57 = arith.constant dense<0.000000e+00> : vector<14x224xf32>
    %63 = tpu.matmul %62, %61, %cst_57 {dimension_numbers = #tpu.dot_dimension_numbers<[1], [0], [0], [1], [0, 0, 1, 1], [], []>} : vector<14x28xf32>, vector<28x224xf32>, vector<14x224xf32> -> vector<14x224xf32>
    %c0_58 = arith.constant 0 : index
    %c0_59 = arith.constant 0 : index
    %64 = vector.load %arg6[%c0_58, %c0_59] : memref<14x28xf32, #tpu.memory_space<vmem>>, vector<14x28xf32>
    %cst_60 = arith.constant dense<0.000000e+00> : vector<14x224xf32>
    %65 = tpu.matmul %64, %61, %cst_60 {dimension_numbers = #tpu.dot_dimension_numbers<[1], [0], [0], [1], [0, 0, 1, 1], [], []>} : vector<14x28xf32>, vector<28x224xf32>, vector<14x224xf32> -> vector<14x224xf32>
    %66 = arith.maximumf %63, %65 : vector<14x224xf32>
    %c0_61 = arith.constant 0 : index
    %c0_62 = arith.constant 0 : index
    %c0_63 = arith.constant 0 : index
    %67 = vector.load %arg7[%c0_61, %c0_62, %c0_63] : memref<1x14x224xf32, #tpu.memory_space<vmem>>, vector<1x14x224xf32>
    %68 = vector.shape_cast %67 : vector<1x14x224xf32> to vector<14x224xf32>
    %69 = vector.shape_cast %66 : vector<14x224xf32> to vector<1x14x224xf32>
    tpu.vector_store %arg7[%c0_61, %c0_62, %c0_63], %69 {strides = array<i32>} : memref<1x14x224xf32, #tpu.memory_space<vmem>>, vector<1x14x224xf32>,
    return
  }
  func.func @transform_0(%arg0: i32) -> (i32, i32, i32) {
    %c0_i32 = arith.constant 0 : i32
    %c0_i32_0 = arith.constant 0 : i32
    %c0_i32_1 = arith.constant 0 : i32
    return %arg0, %c0_i32, %c0_i32_0 : i32, i32, i32
  }
  func.func @transform_1(%arg0: i32) -> (i32, i32, i32) {
    %c0_i32 = arith.constant 0 : i32
    %c0_i32_0 = arith.constant 0 : i32
    %c0_i32_1 = arith.constant 0 : i32
    %c0_i32_2 = arith.constant 0 : i32
    return %c0_i32, %c0_i32_0, %c0_i32_1 : i32, i32, i32
  }
  func.func @transform_2(%arg0: i32) -> (i32, i32, i32) {
    %c0_i32 = arith.constant 0 : i32
    %c0_i32_0 = arith.constant 0 : i32
    %c0_i32_1 = arith.constant 0 : i32
    %c0_i32_2 = arith.constant 0 : i32
    return %c0_i32, %c0_i32_0, %c0_i32_1 : i32, i32, i32
  }
  func.func @transform_3(%arg0: i32) -> (i32, i32) {
    %c0_i32 = arith.constant 0 : i32
    %c0_i32_0 = arith.constant 0 : i32
    %c0_i32_1 = arith.constant 0 : i32
    return %c0_i32, %c0_i32_0 : i32, i32
  }
  func.func @transform_4(%arg0: i32) -> (i32, i32) {
    %c0_i32 = arith.constant 0 : i32
    %c0_i32_0 = arith.constant 0 : i32
    %c0_i32_1 = arith.constant 0 : i32
    return %c0_i32, %c0_i32_0 : i32, i32
  }
  func.func @transform_5(%arg0: i32) -> (i32, i32) {
    %c0_i32 = arith.constant 0 : i32
    %c0_i32_0 = arith.constant 0 : i32
    %c0_i32_1 = arith.constant 0 : i32
    return %c0_i32, %c0_i32_0 : i32, i32
  }
  func.func @transform_6(%arg0: i32) -> (i32, i32, i32) {
    %c0_i32 = arith.constant 0 : i32
    %c0_i32_0 = arith.constant 0 : i32
    %c0_i32_1 = arith.constant 0 : i32
    return %arg0, %c0_i32, %c0_i32_0 : i32, i32, i32
  }
}

module attributes {stable_mosaic.version = 11 : i64} {
  func.func @_conv_relu_pool_kernel(%arg0: i32, %arg1: memref<1x18x288xbf16, #tpu.memory_space<vmem>>, %arg2: memref<5x288x224xbf16, #tpu.memory_space<vmem>>, %arg3: memref<5x288x224xbf16, #tpu.memory_space<vmem>>, %arg4: memref<1x224xf32, #tpu.memory_space<vmem>>, %arg5: memref<7x14xf32, #tpu.memory_space<vmem>>, %arg6: memref<7x14xf32, #tpu.memory_space<vmem>>, %arg7: memref<1x7x224xf32, #tpu.memory_space<vmem>>) attributes {dimension_semantics = [#tpu.dimension_semantics<parallel>], iteration_bounds = array<i64: 2>, scalar_prefetch = 0 : i64, scratch_operands = 0 : i64, tpu.core_type = #tpu.core_type<tc>, window_params = [{transform_indices = @transform_0, window_bounds = array<i64: 1, 18, 288>}, {pipeline_mode = #tpu.pipeline_mode<synchronous>, transform_indices = @transform_1, window_bounds = array<i64: 5, 288, 224>}, {pipeline_mode = #tpu.pipeline_mode<synchronous>, transform_indices = @transform_2, window_bounds = array<i64: 5, 288, 224>}, {pipeline_mode = #tpu.pipeline_mode<synchronous>, transform_indices = @transform_3, window_bounds = array<i64: 1, 224>}, {pipeline_mode = #tpu.pipeline_mode<synchronous>, transform_indices = @transform_4, window_bounds = array<i64: 7, 14>}, {pipeline_mode = #tpu.pipeline_mode<synchronous>, transform_indices = @transform_5, window_bounds = array<i64: 7, 14>}, {transform_indices = @transform_6, window_bounds = array<i64: 1, 7, 224>}]} {
    %cst = arith.constant 0.000000e+00 : f32
    %0 = vector.broadcast %cst : f32 to vector<14x224xf32>
    %cst_0 = arith.constant 0.000000e+00 : f32
    %1 = vector.broadcast %cst_0 : f32 to vector<14x224xf32>
    %c0 = arith.constant 0 : index
    %c0_1 = arith.constant 0 : index
    %c0_2 = arith.constant 0 : index
    %2 = vector.load %arg1[%c0, %c0_1, %c0_2] : memref<1x18x288xbf16, #tpu.memory_space<vmem>>, vector<1x14x288xbf16>
    %3 = vector.shape_cast %2 : vector<1x14x288xbf16> to vector<14x288xbf16>
    %c0_3 = arith.constant 0 : index
    %c0_4 = arith.constant 0 : index
    %c0_5 = arith.constant 0 : index
    %4 = vector.load %arg2[%c0_3, %c0_4, %c0_5] : memref<5x288x224xbf16, #tpu.memory_space<vmem>>, vector<1x288x224xbf16>
    %5 = vector.shape_cast %4 : vector<1x288x224xbf16> to vector<288x224xbf16>
    %cst_6 = arith.constant dense<0.000000e+00> : vector<14x224xf32>
    %6 = tpu.matmul %3, %5, %cst_6 {dimension_numbers = #tpu.dot_dimension_numbers<[1], [0], [0], [1], [0, 0, 1, 1], [], []>} : vector<14x288xbf16>, vector<288x224xbf16>, vector<14x224xf32> -> vector<14x224xf32>
    %7 = arith.addf %0, %6 : vector<14x224xf32>
    %c0_7 = arith.constant 0 : index
    %c0_8 = arith.constant 0 : index
    %c0_9 = arith.constant 0 : index
    %8 = vector.load %arg3[%c0_7, %c0_8, %c0_9] : memref<5x288x224xbf16, #tpu.memory_space<vmem>>, vector<1x288x224xbf16>
    %9 = vector.shape_cast %8 : vector<1x288x224xbf16> to vector<288x224xbf16>
    %cst_10 = arith.constant dense<0.000000e+00> : vector<14x224xf32>
    %10 = tpu.matmul %3, %9, %cst_10 {dimension_numbers = #tpu.dot_dimension_numbers<[1], [0], [0], [1], [0, 0, 1, 1], [], []>} : vector<14x288xbf16>, vector<288x224xbf16>, vector<14x224xf32> -> vector<14x224xf32>
    %11 = arith.addf %1, %10 : vector<14x224xf32>
    %c0_11 = arith.constant 0 : index
    %c1 = arith.constant 1 : index
    %c0_12 = arith.constant 0 : index
    %12 = vector.load %arg1[%c0_11, %c1, %c0_12] : memref<1x18x288xbf16, #tpu.memory_space<vmem>>, vector<1x14x288xbf16>
    %13 = vector.shape_cast %12 : vector<1x14x288xbf16> to vector<14x288xbf16>
    %c1_13 = arith.constant 1 : index
    %c0_14 = arith.constant 0 : index
    %c0_15 = arith.constant 0 : index
    %14 = vector.load %arg2[%c1_13, %c0_14, %c0_15] : memref<5x288x224xbf16, #tpu.memory_space<vmem>>, vector<1x288x224xbf16>
    %15 = vector.shape_cast %14 : vector<1x288x224xbf16> to vector<288x224xbf16>
    %cst_16 = arith.constant dense<0.000000e+00> : vector<14x224xf32>
    %16 = tpu.matmul %13, %15, %cst_16 {dimension_numbers = #tpu.dot_dimension_numbers<[1], [0], [0], [1], [0, 0, 1, 1], [], []>} : vector<14x288xbf16>, vector<288x224xbf16>, vector<14x224xf32> -> vector<14x224xf32>
    %17 = arith.addf %7, %16 : vector<14x224xf32>
    %c1_17 = arith.constant 1 : index
    %c0_18 = arith.constant 0 : index
    %c0_19 = arith.constant 0 : index
    %18 = vector.load %arg3[%c1_17, %c0_18, %c0_19] : memref<5x288x224xbf16, #tpu.memory_space<vmem>>, vector<1x288x224xbf16>
    %19 = vector.shape_cast %18 : vector<1x288x224xbf16> to vector<288x224xbf16>
    %cst_20 = arith.constant dense<0.000000e+00> : vector<14x224xf32>
    %20 = tpu.matmul %13, %19, %cst_20 {dimension_numbers = #tpu.dot_dimension_numbers<[1], [0], [0], [1], [0, 0, 1, 1], [], []>} : vector<14x288xbf16>, vector<288x224xbf16>, vector<14x224xf32> -> vector<14x224xf32>
    %21 = arith.addf %11, %20 : vector<14x224xf32>
    %c0_21 = arith.constant 0 : index
    %c2 = arith.constant 2 : index
    %c0_22 = arith.constant 0 : index
    %22 = vector.load %arg1[%c0_21, %c2, %c0_22] : memref<1x18x288xbf16, #tpu.memory_space<vmem>>, vector<1x14x288xbf16>
    %23 = vector.shape_cast %22 : vector<1x14x288xbf16> to vector<14x288xbf16>
    %c2_23 = arith.constant 2 : index
    %c0_24 = arith.constant 0 : index
    %c0_25 = arith.constant 0 : index
    %24 = vector.load %arg2[%c2_23, %c0_24, %c0_25] : memref<5x288x224xbf16, #tpu.memory_space<vmem>>, vector<1x288x224xbf16>
    %25 = vector.shape_cast %24 : vector<1x288x224xbf16> to vector<288x224xbf16>
    %cst_26 = arith.constant dense<0.000000e+00> : vector<14x224xf32>
    %26 = tpu.matmul %23, %25, %cst_26 {dimension_numbers = #tpu.dot_dimension_numbers<[1], [0], [0], [1], [0, 0, 1, 1], [], []>} : vector<14x288xbf16>, vector<288x224xbf16>, vector<14x224xf32> -> vector<14x224xf32>
    %27 = arith.addf %17, %26 : vector<14x224xf32>
    %c2_27 = arith.constant 2 : index
    %c0_28 = arith.constant 0 : index
    %c0_29 = arith.constant 0 : index
    %28 = vector.load %arg3[%c2_27, %c0_28, %c0_29] : memref<5x288x224xbf16, #tpu.memory_space<vmem>>, vector<1x288x224xbf16>
    %29 = vector.shape_cast %28 : vector<1x288x224xbf16> to vector<288x224xbf16>
    %cst_30 = arith.constant dense<0.000000e+00> : vector<14x224xf32>
    %30 = tpu.matmul %23, %29, %cst_30 {dimension_numbers = #tpu.dot_dimension_numbers<[1], [0], [0], [1], [0, 0, 1, 1], [], []>} : vector<14x288xbf16>, vector<288x224xbf16>, vector<14x224xf32> -> vector<14x224xf32>
    %31 = arith.addf %21, %30 : vector<14x224xf32>
    %c0_31 = arith.constant 0 : index
    %c3 = arith.constant 3 : index
    %c0_32 = arith.constant 0 : index
    %32 = vector.load %arg1[%c0_31, %c3, %c0_32] : memref<1x18x288xbf16, #tpu.memory_space<vmem>>, vector<1x14x288xbf16>
    %33 = vector.shape_cast %32 : vector<1x14x288xbf16> to vector<14x288xbf16>
    %c3_33 = arith.constant 3 : index
    %c0_34 = arith.constant 0 : index
    %c0_35 = arith.constant 0 : index
    %34 = vector.load %arg2[%c3_33, %c0_34, %c0_35] : memref<5x288x224xbf16, #tpu.memory_space<vmem>>, vector<1x288x224xbf16>
    %35 = vector.shape_cast %34 : vector<1x288x224xbf16> to vector<288x224xbf16>
    %cst_36 = arith.constant dense<0.000000e+00> : vector<14x224xf32>
    %36 = tpu.matmul %33, %35, %cst_36 {dimension_numbers = #tpu.dot_dimension_numbers<[1], [0], [0], [1], [0, 0, 1, 1], [], []>} : vector<14x288xbf16>, vector<288x224xbf16>, vector<14x224xf32> -> vector<14x224xf32>
    %37 = arith.addf %27, %36 : vector<14x224xf32>
    %c3_37 = arith.constant 3 : index
    %c0_38 = arith.constant 0 : index
    %c0_39 = arith.constant 0 : index
    %38 = vector.load %arg3[%c3_37, %c0_38, %c0_39] : memref<5x288x224xbf16, #tpu.memory_space<vmem>>, vector<1x288x224xbf16>
    %39 = vector.shape_cast %38 : vector<1x288x224xbf16> to vector<288x224xbf16>
    %cst_40 = arith.constant dense<0.000000e+00> : vector<14x224xf32>
    %40 = tpu.matmul %33, %39, %cst_40 {dimension_numbers = #tpu.dot_dimension_numbers<[1], [0], [0], [1], [0, 0, 1, 1], [], []>} : vector<14x288xbf16>, vector<288x224xbf16>, vector<14x224xf32> -> vector<14x224xf32>
    %41 = arith.addf %31, %40 : vector<14x224xf32>
    %c0_41 = arith.constant 0 : index
    %c4 = arith.constant 4 : index
    %c0_42 = arith.constant 0 : index
    %42 = vector.load %arg1[%c0_41, %c4, %c0_42] : memref<1x18x288xbf16, #tpu.memory_space<vmem>>, vector<1x14x288xbf16>
    %43 = vector.shape_cast %42 : vector<1x14x288xbf16> to vector<14x288xbf16>
    %c4_43 = arith.constant 4 : index
    %c0_44 = arith.constant 0 : index
    %c0_45 = arith.constant 0 : index
    %44 = vector.load %arg2[%c4_43, %c0_44, %c0_45] : memref<5x288x224xbf16, #tpu.memory_space<vmem>>, vector<1x288x224xbf16>
    %45 = vector.shape_cast %44 : vector<1x288x224xbf16> to vector<288x224xbf16>
    %cst_46 = arith.constant dense<0.000000e+00> : vector<14x224xf32>
    %46 = tpu.matmul %43, %45, %cst_46 {dimension_numbers = #tpu.dot_dimension_numbers<[1], [0], [0], [1], [0, 0, 1, 1], [], []>} : vector<14x288xbf16>, vector<288x224xbf16>, vector<14x224xf32> -> vector<14x224xf32>
    %47 = arith.addf %37, %46 : vector<14x224xf32>
    %c4_47 = arith.constant 4 : index
    %c0_48 = arith.constant 0 : index
    %c0_49 = arith.constant 0 : index
    %48 = vector.load %arg3[%c4_47, %c0_48, %c0_49] : memref<5x288x224xbf16, #tpu.memory_space<vmem>>, vector<1x288x224xbf16>
    %49 = vector.shape_cast %48 : vector<1x288x224xbf16> to vector<288x224xbf16>
    %cst_50 = arith.constant dense<0.000000e+00> : vector<14x224xf32>
    %50 = tpu.matmul %43, %49, %cst_50 {dimension_numbers = #tpu.dot_dimension_numbers<[1], [0], [0], [1], [0, 0, 1, 1], [], []>} : vector<14x288xbf16>, vector<288x224xbf16>, vector<14x224xf32> -> vector<14x224xf32>
    %51 = arith.addf %41, %50 : vector<14x224xf32>
    %c0_51 = arith.constant 0 : index
    %c0_52 = arith.constant 0 : index
    %52 = vector.load %arg4[%c0_51, %c0_52] : memref<1x224xf32, #tpu.memory_space<vmem>>, vector<1x224xf32>
    %53 = vector.broadcast %52 : vector<1x224xf32> to vector<14x224xf32>
    %54 = arith.addf %47, %53 : vector<14x224xf32>
    %cst_53 = arith.constant 0.000000e+00 : f32
    %55 = vector.broadcast %cst_53 : f32 to vector<14x224xf32>
    %56 = arith.maximumf %54, %55 : vector<14x224xf32>
    %57 = vector.broadcast %52 : vector<1x224xf32> to vector<14x224xf32>
    %58 = arith.addf %51, %57 : vector<14x224xf32>
    %cst_54 = arith.constant 0.000000e+00 : f32
    %59 = vector.broadcast %cst_54 : f32 to vector<14x224xf32>
    %60 = arith.maximumf %58, %59 : vector<14x224xf32>
    %61 = arith.maximumf %56, %60 : vector<14x224xf32>
    %c0_55 = arith.constant 0 : index
    %c0_56 = arith.constant 0 : index
    %62 = vector.load %arg5[%c0_55, %c0_56] : memref<7x14xf32, #tpu.memory_space<vmem>>, vector<7x14xf32>
    %cst_57 = arith.constant dense<0.000000e+00> : vector<7x224xf32>
    %63 = tpu.matmul %62, %61, %cst_57 {dimension_numbers = #tpu.dot_dimension_numbers<[1], [0], [0], [1], [0, 0, 1, 1], [], []>} : vector<7x14xf32>, vector<14x224xf32>, vector<7x224xf32> -> vector<7x224xf32>
    %c0_58 = arith.constant 0 : index
    %c0_59 = arith.constant 0 : index
    %64 = vector.load %arg6[%c0_58, %c0_59] : memref<7x14xf32, #tpu.memory_space<vmem>>, vector<7x14xf32>
    %cst_60 = arith.constant dense<0.000000e+00> : vector<7x224xf32>
    %65 = tpu.matmul %64, %61, %cst_60 {dimension_numbers = #tpu.dot_dimension_numbers<[1], [0], [0], [1], [0, 0, 1, 1], [], []>} : vector<7x14xf32>, vector<14x224xf32>, vector<7x224xf32> -> vector<7x224xf32>
    %66 = arith.maximumf %63, %65 : vector<7x224xf32>
    %c0_61 = arith.constant 0 : index
    %c0_62 = arith.constant 0 : index
    %c0_63 = arith.constant 0 : index
    %67 = vector.load %arg7[%c0_61, %c0_62, %c0_63] : memref<1x7x224xf32, #tpu.memory_space<vmem>>, vector<1x7x224xf32>
    %68 = vector.shape_cast %67 : vector<1x7x224xf32> to vector<7x224xf32>
    %69 = vector.shape_cast %66 : vector<7x224xf32> to vector<1x7x224xf32>
    tpu.vector_store %arg7[%c0_61, %c0_62, %c0_63], %69 {strides = array<i32>} : memref<1x7x224xf32, #tpu.memory_space<vmem>>, vector<1x7x224xf32>,
    return
  }
  func.func @transform_0(%arg0: i32) -> (i32, i32, i32) {
    %c0_i32 = arith.constant 0 : i32
    %c0_i32_0 = arith.constant 0 : i32
    %c0_i32_1 = arith.constant 0 : i32
    return %arg0, %c0_i32, %c0_i32_0 : i32, i32, i32
  }
  func.func @transform_1(%arg0: i32) -> (i32, i32, i32) {
    %c0_i32 = arith.constant 0 : i32
    %c0_i32_0 = arith.constant 0 : i32
    %c0_i32_1 = arith.constant 0 : i32
    %c0_i32_2 = arith.constant 0 : i32
    return %c0_i32, %c0_i32_0, %c0_i32_1 : i32, i32, i32
  }
  func.func @transform_2(%arg0: i32) -> (i32, i32, i32) {
    %c0_i32 = arith.constant 0 : i32
    %c0_i32_0 = arith.constant 0 : i32
    %c0_i32_1 = arith.constant 0 : i32
    %c0_i32_2 = arith.constant 0 : i32
    return %c0_i32, %c0_i32_0, %c0_i32_1 : i32, i32, i32
  }
  func.func @transform_3(%arg0: i32) -> (i32, i32) {
    %c0_i32 = arith.constant 0 : i32
    %c0_i32_0 = arith.constant 0 : i32
    %c0_i32_1 = arith.constant 0 : i32
    return %c0_i32, %c0_i32_0 : i32, i32
  }
  func.func @transform_4(%arg0: i32) -> (i32, i32) {
    %c0_i32 = arith.constant 0 : i32
    %c0_i32_0 = arith.constant 0 : i32
    %c0_i32_1 = arith.constant 0 : i32
    return %c0_i32, %c0_i32_0 : i32, i32
  }
  func.func @transform_5(%arg0: i32) -> (i32, i32) {
    %c0_i32 = arith.constant 0 : i32
    %c0_i32_0 = arith.constant 0 : i32
    %c0_i32_1 = arith.constant 0 : i32
    return %c0_i32, %c0_i32_0 : i32, i32
  }
  func.func @transform_6(%arg0: i32) -> (i32, i32, i32) {
    %c0_i32 = arith.constant 0 : i32
    %c0_i32_0 = arith.constant 0 : i32
    %c0_i32_1 = arith.constant 0 : i32
    return %arg0, %c0_i32, %c0_i32_0 : i32, i32, i32
  }
}

module attributes {stable_mosaic.version = 11 : i64} {
  func.func @_fc_kernel(%arg0: memref<2x1568xf32, #tpu.memory_space<vmem>>, %arg1: memref<1568x10xf32, #tpu.memory_space<vmem>>, %arg2: memref<1x10xf32, #tpu.memory_space<vmem>>, %arg3: memref<2x10xf32, #tpu.memory_space<vmem>>) attributes {dimension_semantics = [], scalar_prefetch = 0 : i64, scratch_operands = 0 : i64, tpu.core_type = #tpu.core_type<tc>} {
    %c0 = arith.constant 0 : index
    %c0_0 = arith.constant 0 : index
    %0 = vector.load %arg0[%c0, %c0_0] : memref<2x1568xf32, #tpu.memory_space<vmem>>, vector<2x1568xf32>
    %c0_1 = arith.constant 0 : index
    %c0_2 = arith.constant 0 : index
    %1 = vector.load %arg1[%c0_1, %c0_2] : memref<1568x10xf32, #tpu.memory_space<vmem>>, vector<1568x10xf32>
    %cst = arith.constant dense<0.000000e+00> : vector<2x10xf32>
    %2 = tpu.matmul %0, %1, %cst {dimension_numbers = #tpu.dot_dimension_numbers<[1], [0], [0], [1], [0, 0, 1, 1], [], []>} : vector<2x1568xf32>, vector<1568x10xf32>, vector<2x10xf32> -> vector<2x10xf32>
    %c0_3 = arith.constant 0 : index
    %c0_4 = arith.constant 0 : index
    %3 = vector.load %arg2[%c0_3, %c0_4] : memref<1x10xf32, #tpu.memory_space<vmem>>, vector<1x10xf32>
    %4 = vector.broadcast %3 : vector<1x10xf32> to vector<2x10xf32>
    %5 = arith.addf %2, %4 : vector<2x10xf32>
    %c0_5 = arith.constant 0 : index
    %c0_6 = arith.constant 0 : index
    %6 = vector.load %arg3[%c0_5, %c0_6] : memref<2x10xf32, #tpu.memory_space<vmem>>, vector<2x10xf32>
    tpu.vector_store %arg3[%c0_5, %c0_6], %5 {strides = array<i32>} : memref<2x10xf32, #tpu.memory_space<vmem>>, vector<2x10xf32>,
    return
  }
}

</mosaic_0001>

<llo_original>
// kernel: cnn_forward.3
$region0: #{cnn_forward.3}
  #allocation0 [shape = 'u32[]', space=smem, size = 0x4, offset = 0x4, fixed_abs, tag = 'smem constant byte address 0x4 - core index']
  #allocation1 [shape = 'u32[144,128]{1,0:T(1,128)}', space=vmem, size = 0x12000, scoped, tag = 'internal scratch']
  %s0 = inlined_call_operand.vmem [shape: bf16[2,32,32], index: 0, kind: input, shape index: {}]
  %s1 = inlined_call_operand.vmem [shape: bf16[5,32,224], index: 1, kind: input, shape index: {}]
  %s2 = inlined_call_operand.vmem [shape: bf16[5,32,224], index: 2, kind: input, shape index: {}]
  %s3 = inlined_call_operand.vmem [shape: f32[1,224], index: 3, kind: input, shape index: {}]
  %s4 = inlined_call_operand.vmem [shape: f32[14,28], index: 4, kind: input, shape index: {}]
  %s5 = inlined_call_operand.vmem [shape: f32[14,28], index: 5, kind: input, shape index: {}]
  %s6 = inlined_call_operand.vmem [shape: f32[2,14,224], index: 6, kind: output, shape index: {}]
  %s7 = sld [smem:[#allocation0]]
  $region57: #{cnn_forward.3} parent=0
    _
  %s9 = ssub.s32 1, %s7
  %s10 = scalar_select 0, %s9, %s7
  loop: start=0, step=1, limit=4
  $region2: #{cnn_forward.3} parent=0 // loop_pre_header
    _
  $region3: #{cnn_forward.3} parent=0 // loop_header
    %s12 = sphi 0, %s16
    %p13 = scmp.ge.s32.totalorder %s12, 4
    %s22 = sphi 0, %s24
    %s25 = sphi 0, %s22
    %s26 = sphi 0, %s25
    %s42 = sphi 0, %s26
    %s46 = sphi 0, %s46
    %s48 = sphi 0, %s46
    %s49 = sphi 0, %s48
    %s63 = sphi 0, %s49
    %s67 = sphi 0, %s67
    %s69 = sphi 0, %s67
    %s70 = sphi 0, %s69
    %s84 = sphi 0, %s70
    %s88 = sphi 0, %s88
    %s90 = sphi 0, %s88
    %s91 = sphi 0, %s90
    %s105 = sphi 0, %s91
    %s109 = sphi 0, %s109
    %s111 = sphi 0, %s109
    %s112 = sphi 0, %s111
    %s126 = sphi 0, %s112
    %s130 = sphi 0, %s130
    %s132 = sphi 0, %s130
    %s133 = sphi 0, %s132
    %s147 = sphi 0, %s133
    %s153 = sphi 0, %s155
    %s156 = sphi 0, %s153
    %s157 = sphi 0, %s156
    %s173 = sphi 0, %s157
  $region4: #{cnn_forward.3} parent=0 // loop_header_branch
    %15 = sbr.rel (%p13) target = $region8
  $region5: #{cnn_forward.3} parent=0 // loop_body
    %s17 = ssub.s32 %s12, 1
    %s18 = ssub.s32 %s12, 2
    %s19 = sadd.s32 %s12, 1
    %s20 = ssub.s32 %s12, %s19
    %p21 = scmp.eq.s32.totalorder %s20, 0
    %s23 = sadd.s32 %s22, 1
    %s24 = scalar_select %p21, %s22, %s23
    %p27 = pneg %p21
    %p28 = scmp.eq.s32.totalorder %s12, 1
    %p29 = por %p27, %p28
    %p30 = scmp.ne.s32.totalorder %s22, %s25
    %p31 = scmp.eq.s32.totalorder %s12, 0
    %p32 = por %p30, %p31
    %p33 = scmp.ne.s32.totalorder %s22, %s25
    %p34 = scmp.eq.s32.totalorder %s17, 1
    %p35 = por %p33, %p34
    %p36 = scmp.ne.s32.totalorder %s25, %s26
    %p37 = scmp.eq.s32.totalorder %s17, 0
    %p38 = por %p36, %p37
    %p39 = scmp.ne.s32.totalorder %s25, %s26
    %p40 = scmp.eq.s32.totalorder %s18, 1
    %p41 = por %p39, %p40
    %p43 = scmp.ne.s32.totalorder %s26, %s42
    %p44 = scmp.eq.s32.totalorder %s18, 0
    %p45 = por %p43, %p44
    %s47 = sadd.s32 %s46, 1
    %p50 = scmp.eq.s32.totalorder %s12, 1
    %p51 = scmp.ne.s32.totalorder %s46, %s48
    %p52 = scmp.eq.s32.totalorder %s12, 0
    %p53 = por %p51, %p52
    %p54 = scmp.ne.s32.totalorder %s46, %s48
    %p55 = scmp.eq.s32.totalorder %s17, 1
    %p56 = por %p54, %p55
    %p57 = scmp.ne.s32.totalorder %s48, %s49
    %p58 = scmp.eq.s32.totalorder %s17, 0
    %p59 = por %p57, %p58
    %p60 = scmp.ne.s32.totalorder %s48, %s49
    %p61 = scmp.eq.s32.totalorder %s18, 1
    %p62 = por %p60, %p61
    %p64 = scmp.ne.s32.totalorder %s49, %s63
    %p65 = scmp.eq.s32.totalorder %s18, 0
    %p66 = por %p64, %p65
    %s68 = sadd.s32 %s67, 1
    %p71 = scmp.eq.s32.totalorder %s12, 1
    %p72 = scmp.ne.s32.totalorder %s67, %s69
    %p73 = scmp.eq.s32.totalorder %s12, 0
    %p74 = por %p72, %p73
    %p75 = scmp.ne.s32.totalorder %s67, %s69
    %p76 = scmp.eq.s32.totalorder %s17, 1
    %p77 = por %p75, %p76
    %p78 = scmp.ne.s32.totalorder %s69, %s70
    %p79 = scmp.eq.s32.totalorder %s17, 0
    %p80 = por %p78, %p79
    %p81 = scmp.ne.s32.totalorder %s69, %s70
    %p82 = scmp.eq.s32.totalorder %s18, 1
    %p83 = por %p81, %p82
    %p85 = scmp.ne.s32.totalorder %s70, %s84
    %p86 = scmp.eq.s32.totalorder %s18, 0
    %p87 = por %p85, %p86
    %s89 = sadd.s32 %s88, 1
    %p92 = scmp.eq.s32.totalorder %s12, 1
    %p93 = scmp.ne.s32.totalorder %s88, %s90
    %p94 = scmp.eq.s32.totalorder %s12, 0
    %p95 = por %p93, %p94
    %p96 = scmp.ne.s32.totalorder %s88, %s90
    %p97 = scmp.eq.s32.totalorder %s17, 1
    %p98 = por %p96, %p97
    %p99 = scmp.ne.s32.totalorder %s90, %s91
    %p100 = scmp.eq.s32.totalorder %s17, 0
    %p101 = por %p99, %p100
    %p102 = scmp.ne.s32.totalorder %s90, %s91
    %p103 = scmp.eq.s32.totalorder %s18, 1
    %p104 = por %p102, %p103
    %p106 = scmp.ne.s32.totalorder %s91, %s105
    %p107 = scmp.eq.s32.totalorder %s18, 0
    %p108 = por %p106, %p107
    %s110 = sadd.s32 %s109, 1
    %p113 = scmp.eq.s32.totalorder %s12, 1
    %p114 = scmp.ne.s32.totalorder %s109, %s111
    %p115 = scmp.eq.s32.totalorder %s12, 0
    %p116 = por %p114, %p115
    %p117 = scmp.ne.s32.totalorder %s109, %s111
    %p118 = scmp.eq.s32.totalorder %s17, 1
    %p119 = por %p117, %p118
    %p120 = scmp.ne.s32.totalorder %s111, %s112
    %p121 = scmp.eq.s32.totalorder %s17, 0
    %p122 = por %p120, %p121
    %p123 = scmp.ne.s32.totalorder %s111, %s112
    %p124 = scmp.eq.s32.totalorder %s18, 1
    %p125 = por %p123, %p124
    %p127 = scmp.ne.s32.totalorder %s112, %s126
    %p128 = scmp.eq.s32.totalorder %s18, 0
    %p129 = por %p127, %p128
    %s131 = sadd.s32 %s130, 1
    %p134 = scmp.eq.s32.totalorder %s12, 1
    %p135 = scmp.ne.s32.totalorder %s130, %s132
    %p136 = scmp.eq.s32.totalorder %s12, 0
    %p137 = por %p135, %p136
    %p138 = scmp.ne.s32.totalorder %s130, %s132
    %p139 = scmp.eq.s32.totalorder %s17, 1
    %p140 = por %p138, %p139
    %p141 = scmp.ne.s32.totalorder %s132, %s133
    %p142 = scmp.eq.s32.totalorder %s17, 0
    %p143 = por %p141, %p142
    %p144 = scmp.ne.s32.totalorder %s132, %s133
    %p145 = scmp.eq.s32.totalorder %s18, 1
    %p146 = por %p144, %p145
    %p148 = scmp.ne.s32.totalorder %s133, %s147
    %p149 = scmp.eq.s32.totalorder %s18, 0
    %p150 = por %p148, %p149
    %s151 = ssub.s32 %s12, %s19
    %p152 = scmp.eq.s32.totalorder %s151, 0
    %s154 = sadd.s32 %s153, 1
    %s155 = scalar_select %p152, %s153, %s154
    %p158 = pneg %p152
    %p159 = scmp.eq.s32.totalorder %s12, 1
    %p160 = por %p158, %p159
    %p161 = scmp.ne.s32.totalorder %s153, %s156
    %p162 = scmp.eq.s32.totalorder %s12, 0
    %p163 = por %p161, %p162
    %p164 = scmp.ne.s32.totalorder %s153, %s156
    %p165 = scmp.eq.s32.totalorder %s17, 1
    %p166 = por %p164, %p165
    %p167 = scmp.ne.s32.totalorder %s156, %s157
    %p168 = scmp.eq.s32.totalorder %s17, 0
    %p169 = por %p167, %p168
    %p170 = scmp.ne.s32.totalorder %s156, %s157
    %p171 = scmp.eq.s32.totalorder %s18, 1
    %p172 = por %p170, %p171
    %p174 = scmp.ne.s32.totalorder %s157, %s173
    %p175 = scmp.eq.s32.totalorder %s18, 0
    %p176 = por %p174, %p175
    %p177 = scmp.le.s32.totalorder 1, %s12
    %p178 = scmp.lt.s32.totalorder %s12, 3
    %p179 = pnand %p177, %p178
    %p180 = pneg %p179
    // Predicated region
    $region9: #{cnn_forward.3} parent=5 // pred_check
      _
    $region10: #{cnn_forward.3} parent=5 // pred_check_branch
      %182 = sbr.rel (%p179) target = $region12
    $region11: #{cnn_forward.3} parent=5 // pred_region
      %s183 = ssub.s32 %s12, 1
      // Predicated region
      $region13: #{cnn_forward.3} parent=11 // pred_check
        %p184 = pneg %p59
      $region14: #{cnn_forward.3} parent=11 // pred_check_branch
        %186 = sbr.rel (%p184) target = $region16
      $region15: #{cnn_forward.3} parent=11 // pred_region
        _
      $region16: #{cnn_forward.3} parent=11 // pred_fallthru
        _
      // Predicated region
      $region17: #{cnn_forward.3} parent=11 // pred_check
        %p187 = pneg %p80
      $region18: #{cnn_forward.3} parent=11 // pred_check_branch
        %189 = sbr.rel (%p187) target = $region20
      $region19: #{cnn_forward.3} parent=11 // pred_region
        _
      $region20: #{cnn_forward.3} parent=11 // pred_fallthru
        _
      // Predicated region
      $region21: #{cnn_forward.3} parent=11 // pred_check
        %p190 = pneg %p101
      $region22: #{cnn_forward.3} parent=11 // pred_check_branch
        %192 = sbr.rel (%p190) target = $region24
      $region23: #{cnn_forward.3} parent=11 // pred_region
        _
      $region24: #{cnn_forward.3} parent=11 // pred_fallthru
        _
      // Predicated region
      $region25: #{cnn_forward.3} parent=11 // pred_check
        %p193 = pneg %p122
      $region26: #{cnn_forward.3} parent=11 // pred_check_branch
        %195 = sbr.rel (%p193) target = $region28
      $region27: #{cnn_forward.3} parent=11 // pred_region
        _
      $region28: #{cnn_forward.3} parent=11 // pred_fallthru
        _
      // Predicated region
      $region29: #{cnn_forward.3} parent=11 // pred_check
        %p196 = pneg %p143
      $region30: #{cnn_forward.3} parent=11 // pred_check_branch
        %198 = sbr.rel (%p196) target = $region32
      $region31: #{cnn_forward.3} parent=11 // pred_region
        _
      $region32: #{cnn_forward.3} parent=11 // pred_fallthru
        _
    $region12: #{cnn_forward.3} parent=5 // pred_fallthru
      _
    %p199 = scmp.lt.s32.totalorder %s12, 2
    // Predicated region
    $region33: #{cnn_forward.3} parent=5 // pred_check
      %p200 = pneg %p199
    $region34: #{cnn_forward.3} parent=5 // pred_check_branch
      %202 = sbr.rel (%p200) target = $region36
    $region35: #{cnn_forward.3} parent=5 // pred_region
      // Predicated region
      $region37: #{cnn_forward.3} parent=35 // pred_check
        %p203 = pneg %p32
      $region38: #{cnn_forward.3} parent=35 // pred_check_branch
        %205 = sbr.rel (%p203) target = $region40
      $region39: #{cnn_forward.3} parent=35 // pred_region
        %p206 = scmp.lt.s32.totalorder %s12, 1
        %s207 = scalar_select %p206, %s12, 1
        %s208 = smul.addr %s207, 4
        %s209 = smul.addr %s208, 4
        %s210 = scalar_lea.vmem %s0, %s209
      $region40: #{cnn_forward.3} parent=35 // pred_fallthru
        _
    $region36: #{cnn_forward.3} parent=5 // pred_fallthru
      _
    %p211 = scmp.le.s32.totalorder 1, %s12
    %p212 = scmp.lt.s32.totalorder %s12, 3
    %p213 = pnand %p211, %p212
    %p214 = pneg %p213
    // Predicated region
    $region41: #{cnn_forward.3} parent=5 // pred_check
      _
    $region42: #{cnn_forward.3} parent=5 // pred_check_branch
      %216 = sbr.rel (%p213) target = $region44
    $region43: #{cnn_forward.3} parent=5 // pred_region
      %s217 = ssub.s32 %s12, 1
      %p218 = scmp.lt.s32.totalorder %s17, 1
      %s219 = scalar_select %p218, %s17, 1
      %s220 = smul.addr %s219, 4
      %s221 = smul.addr %s220, 4
      %s222 = scalar_lea.vmem %s0, %s221
      %p223 = pneg %p38
      %p224 = pneg %p35
      %p225 = pneg %p59
      %p226 = pneg %p56
      %p227 = pneg %p80
      %p228 = pneg %p77
      %p229 = pneg %p101
      %p230 = pneg %p98
      %p231 = pneg %p122
      %p232 = pneg %p119
      %p233 = pneg %p143
      %p234 = pneg %p140
      %p235 = pneg %p169
      %p236 = pneg %p166
      %p237 = scmp.lt.s32.totalorder %s17, 1
      %s238 = scalar_select %p237, %s17, 1
      %s239 = smul.addr %s238, 4
      %s240 = smul.addr %s239, 8
      %s241 = scalar_lea.vmem %s6, %s240
      %p242 = scmp.lt.s32.totalorder %s17, 1
      %s243 = scalar_select %p242, %s17, 1
      %s244 = smul.addr %s243, 4
      %s245 = smul.addr %s244, 4
      %s246 = scalar_lea.vmem %s0, %s245
      %p247 = scmp.lt.s32.totalorder %s17, 1
      %s248 = scalar_select %p247, %s17, 1
      %s249 = smul.addr %s248, 4
      %s250 = smul.addr %s249, 8
      %s251 = scalar_lea.vmem %s6, %s250
      %v253 = vld [vmem:[%s246] sm:$0xf]
      %v254 = vld [vmem:[%s246 + $0x4] sm:$0xf]
      %v255 = vld [vmem:[%s246 + $0x8] sm:$0xf]
      %v256 = vld [vmem:[%s246 + $0xc] sm:$0x3]
      %v257 = vld [vmem:[%s1] sm:$0xff]
      %v258 = vld [vmem:[%s1 + $0x8] sm:$0xff]
      %v259 = vld [vmem:[%s1 + $0x10] sm:$0xff]
      %v260 = vld [vmem:[%s1 + $0x18] sm:$0xff]
      %v261 = vld [vmem:[%s2] sm:$0xff]
      %v262 = vld [vmem:[%s2 + $0x8] sm:$0xff]
      %v263 = vld [vmem:[%s2 + $0x10] sm:$0xff]
      %v264 = vld [vmem:[%s2 + $0x18] sm:$0xff]
      %v265 = vld [vmem:[%s246 + $0xc] sm:$0x7]
      %s266 = scalar_lea.vmem %s1, 32
      %v267 = vld [vmem:[%s266] sm:$0xff]
      %v268 = vld [vmem:[%s266 + $0x8] sm:$0xff]
      %v269 = vld [vmem:[%s266 + $0x10] sm:$0xff]
      %v270 = vld [vmem:[%s266 + $0x18] sm:$0xff]
      %v275 = vunpack.c.l.b16 %v253
      %v276 = vunpack.c.l.b16 %v254
      %v277 = vunpack.c.l.b16 %v255
      %v278 = vunpack.c.l.b16 %v265
      %v279 = vpack.c.b16 %v276, %v275
      %v280 = vpack.c.b16 %v278, %v277
      %vm281 = vsmask.f32 7424
      %v283 = vshrl.u32 %v279, 16
      %v285 = vshll.u32 %v279, 16
      %v287 = vrot.slane %v285, 1
      %v288 = vor.u32 %v283, %v287
      %v290 = vshll.u32 %v280, 16
      %v292 = vrot.slane %v290, 1
      %v293 = vsel %vm281, %v288, %v292
      %v294 = vshrl.u32 %v280, 16
      %v296 = vor.u32 %v294, %v292
      %v301 = vunpack.c.l.b16 %v267
      %v302 = vunpack.c.h.b16 %v267
      %v303 = vunpack.c.l.b16 %v268
      %v304 = vunpack.c.h.b16 %v268
      %v305 = vunpack.c.l.b16 %v269
      %v306 = vunpack.c.h.b16 %v269
      %v307 = vunpack.c.l.b16 %v270
      %v308 = vunpack.c.h.b16 %v270
      %v309 = vpack.c.b16 %v303, %v301
      %v310 = vpack.c.b16 %v304, %v302
      %v311 = vpack.c.b16 %v307, %v305
      %v312 = vpack.c.b16 %v308, %v306
      %vm317 = vcmask 261120
      %v319 = vsel %vm317, %v293, 0
      %v322 = vsel %vm317, %v296, 0
      %324 = vmatprep.subr.bf16.mxu0 %v310
      %325 = vmatpush1.bf16.msra.mxu0 %v309
      %326 = vmatprep.subr.bf16.mxu0 %v312
      %327 = vmatpush1.bf16.msra.mxu0 %v311
      %328 = vmatprep.subr.bf16.mxu0 0
      %329 = vmatpush1.bf16.msra.mxu0 0
      %330 = vmatprep.subr.bf16.mxu0 0
      %331 = vmatpush1.bf16.msra.mxu0 0
      %332 = vmatprep.subr.bf16.mxu0 0
      %333 = vmatpush1.bf16.msra.mxu0 0
      %334 = vmatprep.subr.bf16.mxu0 0
      %335 = vmatpush1.bf16.msra.mxu0 0
      %336 = vmatprep.subr.bf16.mxu0 0
      %337 = vmatpush1.bf16.msra.mxu0 0
      %338 = vmatprep.subr.bf16.mxu0 0
      %339 = vmatpush1.bf16.msra.mxu0 0
      %340 = vmatprep.subr.bf16.mxu0 0
      %341 = vmatpush1.bf16.msra.mxu0 0
      %342 = vmatprep.subr.bf16.mxu0 0
      %343 = vmatpush1.bf16.msra.mxu0 0
      %344 = vmatprep.subr.bf16.mxu0 0
      %345 = vmatpush1.bf16.msra.mxu0 0
      %346 = vmatprep.subr.bf16.mxu0 0
      %347 = vmatpush1.bf16.msra.mxu0 0
      %348 = vmatprep.subr.bf16.mxu0 0
      %349 = vmatpush1.bf16.msra.mxu0 0
      %350 = vmatprep.subr.bf16.mxu0 0
      %351 = vmatpush1.bf16.msra.mxu0 0
      %352 = vmatprep.subr.bf16.mxu0 0
      %353 = vmatpush1.bf16.msra.mxu0 0
      %354 = vmatprep.subr.bf16.mxu0 0
      %355 = vmatpush1.bf16.msra.mxu0 0
      %356 = vmatprep.mubr.bf16.mxu0 0
      %357 = vmatmul.mubr.bf16.gmra.mrb[0].mxu0 %v319
      %v358 = vpop.f32.mrb[0].mxu0
      %v359 = vadd.f32 0.0, %v358
      %v360 = vpop.f32.mrb[0].mxu0
      %v361 = vadd.f32 0.0, %v360
      %v362 = vpop.f32.mrb[0].mxu0
      %v363 = vadd.f32 0.0, %v362
      %v364 = vpop.f32.mrb[0].mxu0
      %v365 = vadd.f32 0.0, %v364
      %366 = vmatprep.mubr.bf16.mxu0 0
      %367 = vmatmul.mubr.bf16.gmra.mrb[0].mxu0 %v322
      %v368 = vpop.f32.mrb[0].mxu0
      %v369 = vadd.f32 0.0, %v368
      %v370 = vpop.f32.mrb[0].mxu0
      %v371 = vadd.f32 0.0, %v370
      %v372 = vpop.f32.mrb[0].mxu0
      %v373 = vadd.f32 0.0, %v372
      %v374 = vpop.f32.mrb[0].mxu0
      %v375 = vadd.f32 0.0, %v374
      %376 = vdwg.mxu0
      %v378 = vunpack.c.l.b16 %v256
      %v379 = vpack.c.b16 %v378, %v277
      %v384 = vunpack.c.l.b16 %v257
      %v385 = vunpack.c.h.b16 %v257
      %v386 = vunpack.c.l.b16 %v258
      %v387 = vunpack.c.h.b16 %v258
      %v388 = vunpack.c.l.b16 %v259
      %v389 = vunpack.c.h.b16 %v259
      %v390 = vunpack.c.l.b16 %v260
      %v391 = vunpack.c.h.b16 %v260
      %v392 = vpack.c.b16 %v386, %v384
      %v393 = vpack.c.b16 %v387, %v385
      %v394 = vpack.c.b16 %v390, %v388
      %v395 = vpack.c.b16 %v391, %v389
      %v400 = vsel %vm317, %v279, 0
      %v403 = vsel %vm317, %v379, 0
      %405 = vmatprep.subr.bf16.mxu0 %v393
      %406 = vmatpush1.bf16.msra.mxu0 %v392
      %407 = vmatprep.subr.bf16.mxu0 %v395
      %408 = vmatpush1.bf16.msra.mxu0 %v394
      %409 = vmatprep.subr.bf16.mxu0 0
      %410 = vmatpush1.bf16.msra.mxu0 0
      %411 = vmatprep.subr.bf16.mxu0 0
      %412 = vmatpush1.bf16.msra.mxu0 0
      %413 = vmatprep.subr.bf16.mxu0 0
      %414 = vmatpush1.bf16.msra.mxu0 0
      %415 = vmatprep.subr.bf16.mxu0 0
      %416 = vmatpush1.bf16.msra.mxu0 0
      %417 = vmatprep.subr.bf16.mxu0 0
      %418 = vmatpush1.bf16.msra.mxu0 0
      %419 = vmatprep.subr.bf16.mxu0 0
      %420 = vmatpush1.bf16.msra.mxu0 0
      %421 = vmatprep.subr.bf16.mxu0 0
      %422 = vmatpush1.bf16.msra.mxu0 0
      %423 = vmatprep.subr.bf16.mxu0 0
      %424 = vmatpush1.bf16.msra.mxu0 0
      %425 = vmatprep.subr.bf16.mxu0 0
      %426 = vmatpush1.bf16.msra.mxu0 0
      %427 = vmatprep.subr.bf16.mxu0 0
      %428 = vmatpush1.bf16.msra.mxu0 0
      %429 = vmatprep.subr.bf16.mxu0 0
      %430 = vmatpush1.bf16.msra.mxu0 0
      %431 = vmatprep.subr.bf16.mxu0 0
      %432 = vmatpush1.bf16.msra.mxu0 0
      %433 = vmatprep.subr.bf16.mxu0 0
      %434 = vmatpush1.bf16.msra.mxu0 0
      %435 = vmatprep.subr.bf16.mxu0 0
      %436 = vmatpush1.bf16.msra.mxu0 0
      %437 = vmatprep.mubr.bf16.mxu0 0
      %438 = vmatmul.mubr.bf16.gmra.mrb[0].mxu0 %v400
      %v439 = vpop.f32.mrb[0].mxu0
      %v440 = vadd.f32 %v359, %v439
      %v441 = vpop.f32.mrb[0].mxu0
      %v442 = vadd.f32 %v361, %v441
      %v443 = vpop.f32.mrb[0].mxu0
      %v444 = vadd.f32 %v363, %v443
      %v445 = vpop.f32.mrb[0].mxu0
      %v446 = vadd.f32 %v365, %v445
      %447 = vmatprep.mubr.bf16.mxu0 0
      %448 = vmatmul.mubr.bf16.gmra.mrb[0].mxu0 %v403
      %v449 = vpop.f32.mrb[0].mxu0
      %v450 = vadd.f32 %v369, %v449
      %v451 = vpop.f32.mrb[0].mxu0
      %v452 = vadd.f32 %v371, %v451
      %v453 = vpop.f32.mrb[0].mxu0
      %v454 = vadd.f32 %v373, %v453
      %v455 = vpop.f32.mrb[0].mxu0
      %v456 = vadd.f32 %v375, %v455
      %457 = vdwg.mxu0
      %s458 = scalar_lea.vmem %s2, 32
      %v459 = vld [vmem:[%s458] sm:$0xff]
      %v460 = vld [vmem:[%s458 + $0x8] sm:$0xff]
      %v461 = vld [vmem:[%s458 + $0x10] sm:$0xff]
      %v462 = vld [vmem:[%s458 + $0x18] sm:$0xff]
      %v467 = vunpack.c.l.b16 %v459
      %v468 = vunpack.c.h.b16 %v459
      %v469 = vunpack.c.l.b16 %v460
      %v470 = vunpack.c.h.b16 %v460
      %v471 = vunpack.c.l.b16 %v461
      %v472 = vunpack.c.h.b16 %v461
      %v473 = vunpack.c.l.b16 %v462
      %v474 = vunpack.c.h.b16 %v462
      %v475 = vpack.c.b16 %v469, %v467
      %v476 = vpack.c.b16 %v470, %v468
      %v477 = vpack.c.b16 %v473, %v471
      %v478 = vpack.c.b16 %v474, %v472
      %483 = vmatprep.subr.bf16.mxu0 %v476
      %484 = vmatpush1.bf16.msra.mxu0 %v475
      %485 = vmatprep.subr.bf16.mxu0 %v478
      %486 = vmatpush1.bf16.msra.mxu0 %v477
      %487 = vmatprep.subr.bf16.mxu0 0
      %488 = vmatpush1.bf16.msra.mxu0 0
      %489 = vmatprep.subr.bf16.mxu0 0
      %490 = vmatpush1.bf16.msra.mxu0 0
      %491 = vmatprep.subr.bf16.mxu0 0
      %492 = vmatpush1.bf16.msra.mxu0 0
      %493 = vmatprep.subr.bf16.mxu0 0
      %494 = vmatpush1.bf16.msra.mxu0 0
      %495 = vmatprep.subr.bf16.mxu0 0
      %496 = vmatpush1.bf16.msra.mxu0 0
      %497 = vmatprep.subr.bf16.mxu0 0
      %498 = vmatpush1.bf16.msra.mxu0 0
      %499 = vmatprep.subr.bf16.mxu0 0
      %500 = vmatpush1.bf16.msra.mxu0 0
      %501 = vmatprep.subr.bf16.mxu0 0
      %502 = vmatpush1.bf16.msra.mxu0 0
      %503 = vmatprep.subr.bf16.mxu0 0
      %504 = vmatpush1.bf16.msra.mxu0 0
      %505 = vmatprep.subr.bf16.mxu0 0
      %506 = vmatpush1.bf16.msra.mxu0 0
      %507 = vmatprep.subr.bf16.mxu0 0
      %508 = vmatpush1.bf16.msra.mxu0 0
      %509 = vmatprep.subr.bf16.mxu0 0
      %510 = vmatpush1.bf16.msra.mxu0 0
      %511 = vmatprep.subr.bf16.mxu0 0
      %512 = vmatpush1.bf16.msra.mxu0 0
      %513 = vmatprep.subr.bf16.mxu0 0
      %514 = vmatpush1.bf16.msra.mxu0 0
      %515 = vmatprep.mubr.bf16.mxu0 0
      %516 = vmatmul.mubr.bf16.gmra.mrb[0].mxu0 %v319
      %v517 = vpop.f32.mrb[0].mxu0
      %v518 = vadd.f32 0.0, %v517
      %v519 = vpop.f32.mrb[0].mxu0
      %v520 = vadd.f32 0.0, %v519
      %v521 = vpop.f32.mrb[0].mxu0
      %v522 = vadd.f32 0.0, %v521
      %v523 = vpop.f32.mrb[0].mxu0
      %v524 = vadd.f32 0.0, %v523
      %525 = vmatprep.mubr.bf16.mxu0 0
      %526 = vmatmul.mubr.bf16.gmra.mrb[0].mxu0 %v322
      %v527 = vpop.f32.mrb[0].mxu0
      %v528 = vadd.f32 0.0, %v527
      %v529 = vpop.f32.mrb[0].mxu0
      %v530 = vadd.f32 0.0, %v529
      %v531 = vpop.f32.mrb[0].mxu0
      %v532 = vadd.f32 0.0, %v531
      %v533 = vpop.f32.mrb[0].mxu0
      %v534 = vadd.f32 0.0, %v533
      %535 = vdwg.mxu0
      %v540 = vunpack.c.l.b16 %v261
      %v541 = vunpack.c.h.b16 %v261
      %v542 = vunpack.c.l.b16 %v262
      %v543 = vunpack.c.h.b16 %v262
      %v544 = vunpack.c.l.b16 %v263
      %v545 = vunpack.c.h.b16 %v263
      %v546 = vunpack.c.l.b16 %v264
      %v547 = vunpack.c.h.b16 %v264
      %v548 = vpack.c.b16 %v542, %v540
      %v549 = vpack.c.b16 %v543, %v541
      %v550 = vpack.c.b16 %v546, %v544
      %v551 = vpack.c.b16 %v547, %v545
      %556 = vmatprep.subr.bf16.mxu0 %v549
      %557 = vmatpush1.bf16.msra.mxu0 %v548
      %558 = vmatprep.subr.bf16.mxu0 %v551
      %559 = vmatpush1.bf16.msra.mxu0 %v550
      %560 = vmatprep.subr.bf16.mxu0 0
      %561 = vmatpush1.bf16.msra.mxu0 0
      %562 = vmatprep.subr.bf16.mxu0 0
      %563 = vmatpush1.bf16.msra.mxu0 0
      %564 = vmatprep.subr.bf16.mxu0 0
      %565 = vmatpush1.bf16.msra.mxu0 0
      %566 = vmatprep.subr.bf16.mxu0 0
      %567 = vmatpush1.bf16.msra.mxu0 0
      %568 = vmatprep.subr.bf16.mxu0 0
      %569 = vmatpush1.bf16.msra.mxu0 0
      %570 = vmatprep.subr.bf16.mxu0 0
      %571 = vmatpush1.bf16.msra.mxu0 0
      %572 = vmatprep.subr.bf16.mxu0 0
      %573 = vmatpush1.bf16.msra.mxu0 0
      %574 = vmatprep.subr.bf16.mxu0 0
      %575 = vmatpush1.bf16.msra.mxu0 0
      %576 = vmatprep.subr.bf16.mxu0 0
      %577 = vmatpush1.bf16.msra.mxu0 0
      %578 = vmatprep.subr.bf16.mxu0 0
      %579 = vmatpush1.bf16.msra.mxu0 0
      %580 = vmatprep.subr.bf16.mxu0 0
      %581 = vmatpush1.bf16.msra.mxu0 0
      %582 = vmatprep.subr.bf16.mxu0 0
      %583 = vmatpush1.bf16.msra.mxu0 0
      %584 = vmatprep.subr.bf16.mxu0 0
      %585 = vmatpush1.bf16.msra.mxu0 0
      %586 = vmatprep.subr.bf16.mxu0 0
      %587 = vmatpush1.bf16.msra.mxu0 0
      %588 = vmatprep.mubr.bf16.mxu0 0
      %589 = vmatmul.mubr.bf16.gmra.mrb[0].mxu0 %v400
      %v590 = vpop.f32.mrb[0].mxu0
      %v591 = vadd.f32 %v518, %v590
      %v592 = vpop.f32.mrb[0].mxu0
      %v593 = vadd.f32 %v520, %v592
      %v594 = vpop.f32.mrb[0].mxu0
      %v595 = vadd.f32 %v522, %v594
      %v596 = vpop.f32.mrb[0].mxu0
      %v597 = vadd.f32 %v524, %v596
      %598 = vmatprep.mubr.bf16.mxu0 0
      %599 = vmatmul.mubr.bf16.gmra.mrb[0].mxu0 %v403
      %v600 = vpop.f32.mrb[0].mxu0
      %v601 = vadd.f32 %v528, %v600
      %v602 = vpop.f32.mrb[0].mxu0
      %v603 = vadd.f32 %v530, %v602
      %v604 = vpop.f32.mrb[0].mxu0
      %v605 = vadd.f32 %v532, %v604
      %v606 = vpop.f32.mrb[0].mxu0
      %v607 = vadd.f32 %v534, %v606
      %608 = vdwg.mxu0
      %v609 = vld [vmem:[%s246] sm:$0xe]
      %s610 = scalar_lea.vmem %s1, 64
      %v611 = vld [vmem:[%s610] sm:$0xff]
      %v612 = vld [vmem:[%s610 + $0x8] sm:$0xff]
      %v613 = vld [vmem:[%s610 + $0x10] sm:$0xff]
      %v614 = vld [vmem:[%s610 + $0x18] sm:$0xff]
      %v616 = vunpack.c.l.b16 %v609
      %v617 = vpack.c.b16 %v276, %v616
      %vm618 = vcmask 1046528
      %v619 = vrot.slane %v617, 1
      %v620 = vrot.slane %v280, 1
      %v621 = vsel %vm618, %v619, %v620
      %v626 = vunpack.c.l.b16 %v611
      %v627 = vunpack.c.h.b16 %v611
      %v628 = vunpack.c.l.b16 %v612
      %v629 = vunpack.c.h.b16 %v612
      %v630 = vunpack.c.l.b16 %v613
      %v631 = vunpack.c.h.b16 %v613
      %v632 = vunpack.c.l.b16 %v614
      %v633 = vunpack.c.h.b16 %v614
      %v634 = vpack.c.b16 %v628, %v626
      %v635 = vpack.c.b16 %v629, %v627
      %v636 = vpack.c.b16 %v632, %v630
      %v637 = vpack.c.b16 %v633, %v631
      %v643 = vsel %vm317, %v621, 0
      %v646 = vsel %vm317, %v620, 0
      %648 = vmatprep.subr.bf16.mxu0 %v635
      %649 = vmatpush1.bf16.msra.mxu0 %v634
      %650 = vmatprep.subr.bf16.mxu0 %v637
      %651 = vmatpush1.bf16.msra.mxu0 %v636
      %652 = vmatprep.subr.bf16.mxu0 0
      %653 = vmatpush1.bf16.msra.mxu0 0
      %654 = vmatprep.subr.bf16.mxu0 0
      %655 = vmatpush1.bf16.msra.mxu0 0
      %656 = vmatprep.subr.bf16.mxu0 0
      %657 = vmatpush1.bf16.msra.mxu0 0
      %658 = vmatprep.subr.bf16.mxu0 0
      %659 = vmatpush1.bf16.msra.mxu0 0
      %660 = vmatprep.subr.bf16.mxu0 0
      %661 = vmatpush1.bf16.msra.mxu0 0
      %662 = vmatprep.subr.bf16.mxu0 0
      %663 = vmatpush1.bf16.msra.mxu0 0
      %664 = vmatprep.subr.bf16.mxu0 0
      %665 = vmatpush1.bf16.msra.mxu0 0
      %666 = vmatprep.subr.bf16.mxu0 0
      %667 = vmatpush1.bf16.msra.mxu0 0
      %668 = vmatprep.subr.bf16.mxu0 0
      %669 = vmatpush1.bf16.msra.mxu0 0
      %670 = vmatprep.subr.bf16.mxu0 0
      %671 = vmatpush1.bf16.msra.mxu0 0
      %672 = vmatprep.subr.bf16.mxu0 0
      %673 = vmatpush1.bf16.msra.mxu0 0
      %674 = vmatprep.subr.bf16.mxu0 0
      %675 = vmatpush1.bf16.msra.mxu0 0
      %676 = vmatprep.subr.bf16.mxu0 0
      %677 = vmatpush1.bf16.msra.mxu0 0
      %678 = vmatprep.subr.bf16.mxu0 0
      %679 = vmatpush1.bf16.msra.mxu0 0
      %680 = vmatprep.mubr.bf16.mxu0 0
      %681 = vmatmul.mubr.bf16.gmra.mrb[0].mxu0 %v643
      %v682 = vpop.f32.mrb[0].mxu0
      %v683 = vadd.f32 0.0, %v682
      %v684 = vpop.f32.mrb[0].mxu0
      %v685 = vadd.f32 0.0, %v684
      %v686 = vpop.f32.mrb[0].mxu0
      %v687 = vadd.f32 0.0, %v686
      %v688 = vpop.f32.mrb[0].mxu0
      %v689 = vadd.f32 0.0, %v688
      %690 = vmatprep.mubr.bf16.mxu0 0
      %691 = vmatmul.mubr.bf16.gmra.mrb[0].mxu0 %v646
      %v692 = vpop.f32.mrb[0].mxu0
      %v693 = vadd.f32 0.0, %v692
      %v694 = vpop.f32.mrb[0].mxu0
      %v695 = vadd.f32 0.0, %v694
      %v696 = vpop.f32.mrb[0].mxu0
      %v697 = vadd.f32 0.0, %v696
      %v698 = vpop.f32.mrb[0].mxu0
      %v699 = vadd.f32 0.0, %v698
      %700 = vdwg.mxu0
      %v701 = vadd.f32 %v440, %v683
      %v702 = vadd.f32 %v442, %v685
      %v703 = vadd.f32 %v444, %v687
      %v704 = vadd.f32 %v446, %v689
      %v705 = vadd.f32 %v450, %v693
      %v706 = vadd.f32 %v452, %v695
      %v707 = vadd.f32 %v454, %v697
      %v708 = vadd.f32 %v456, %v699
      %s709 = scalar_lea.vmem %s2, 64
      %v710 = vld [vmem:[%s709] sm:$0xff]
      %v711 = vld [vmem:[%s709 + $0x8] sm:$0xff]
      %v712 = vld [vmem:[%s709 + $0x10] sm:$0xff]
      %v713 = vld [vmem:[%s709 + $0x18] sm:$0xff]
      %v718 = vunpack.c.l.b16 %v710
      %v719 = vunpack.c.h.b16 %v710
      %v720 = vunpack.c.l.b16 %v711
      %v721 = vunpack.c.h.b16 %v711
      %v722 = vunpack.c.l.b16 %v712
      %v723 = vunpack.c.h.b16 %v712
      %v724 = vunpack.c.l.b16 %v713
      %v725 = vunpack.c.h.b16 %v713
      %v726 = vpack.c.b16 %v720, %v718
      %v727 = vpack.c.b16 %v721, %v719
      %v728 = vpack.c.b16 %v724, %v722
      %v729 = vpack.c.b16 %v725, %v723
      %734 = vmatprep.subr.bf16.mxu0 %v727
      %735 = vmatpush1.bf16.msra.mxu0 %v726
      %736 = vmatprep.subr.bf16.mxu0 %v729
      %737 = vmatpush1.bf16.msra.mxu0 %v728
      %738 = vmatprep.subr.bf16.mxu0 0
      %739 = vmatpush1.bf16.msra.mxu0 0
      %740 = vmatprep.subr.bf16.mxu0 0
      %741 = vmatpush1.bf16.msra.mxu0 0
      %742 = vmatprep.subr.bf16.mxu0 0
      %743 = vmatpush1.bf16.msra.mxu0 0
      %744 = vmatprep.subr.bf16.mxu0 0
      %745 = vmatpush1.bf16.msra.mxu0 0
      %746 = vmatprep.subr.bf16.mxu0 0
      %747 = vmatpush1.bf16.msra.mxu0 0
      %748 = vmatprep.subr.bf16.mxu0 0
      %749 = vmatpush1.bf16.msra.mxu0 0
      %750 = vmatprep.subr.bf16.mxu0 0
      %751 = vmatpush1.bf16.msra.mxu0 0
      %752 = vmatprep.subr.bf16.mxu0 0
      %753 = vmatpush1.bf16.msra.mxu0 0
      %754 = vmatprep.subr.bf16.mxu0 0
      %755 = vmatpush1.bf16.msra.mxu0 0
      %756 = vmatprep.subr.bf16.mxu0 0
      %757 = vmatpush1.bf16.msra.mxu0 0
      %758 = vmatprep.subr.bf16.mxu0 0
      %759 = vmatpush1.bf16.msra.mxu0 0
      %760 = vmatprep.subr.bf16.mxu0 0
      %761 = vmatpush1.bf16.msra.mxu0 0
      %762 = vmatprep.subr.bf16.mxu0 0
      %763 = vmatpush1.bf16.msra.mxu0 0
      %764 = vmatprep.subr.bf16.mxu0 0
      %765 = vmatpush1.bf16.msra.mxu0 0
      %766 = vmatprep.mubr.bf16.mxu0 0
      %767 = vmatmul.mubr.bf16.gmra.mrb[0].mxu0 %v643
      %v768 = vpop.f32.mrb[0].mxu0
      %v769 = vadd.f32 0.0, %v768
      %v770 = vpop.f32.mrb[0].mxu0
      %v771 = vadd.f32 0.0, %v770
      %v772 = vpop.f32.mrb[0].mxu0
      %v773 = vadd.f32 0.0, %v772
      %v774 = vpop.f32.mrb[0].mxu0
      %v775 = vadd.f32 0.0, %v774
      %776 = vmatprep.mubr.bf16.mxu0 0
      %777 = vmatmul.mubr.bf16.gmra.mrb[0].mxu0 %v646
      %v778 = vpop.f32.mrb[0].mxu0
      %v779 = vadd.f32 0.0, %v778
      %v780 = vpop.f32.mrb[0].mxu0
      %v781 = vadd.f32 0.0, %v780
      %v782 = vpop.f32.mrb[0].mxu0
      %v783 = vadd.f32 0.0, %v782
      %v784 = vpop.f32.mrb[0].mxu0
      %v785 = vadd.f32 0.0, %v784
      %786 = vdwg.mxu0
      %v787 = vadd.f32 %v591, %v769
      %v788 = vadd.f32 %v593, %v771
      %v789 = vadd.f32 %v595, %v773
      %v790 = vadd.f32 %v597, %v775
      %v791 = vadd.f32 %v601, %v779
      %v792 = vadd.f32 %v603, %v781
      %v793 = vadd.f32 %v605, %v783
      %v794 = vadd.f32 %v607, %v785
      %v795 = vld [vmem:[%s246 + $0xc] sm:$0xf]
      %s796 = scalar_lea.vmem %s1, 96
      %v797 = vld [vmem:[%s796] sm:$0xff]
      %v798 = vld [vmem:[%s796 + $0x8] sm:$0xff]
      %v799 = vld [vmem:[%s796 + $0x10] sm:$0xff]
      %v800 = vld [vmem:[%s796 + $0x18] sm:$0xff]
      %v802 = vunpack.c.l.b16 %v795
      %v803 = vpack.c.b16 %v802, %v277
      %vm804 = vsmask.f32 6400
      %v806 = vshrl.u32 %v617, 16
      %v808 = vrot.slane %v806, 1
      %v809 = vshll.u32 %v617, 16
      %v811 = vrot.slane %v809, 2
      %v812 = vor.u32 %v808, %v811
      %v814 = vshrl.u32 %v803, 16
      %v816 = vrot.slane %v814, 1
      %v817 = vshll.u32 %v803, 16
      %v819 = vrot.slane %v817, 2
      %v820 = vor.u32 %v816, %v819
      %v821 = vsel %vm804, %v812, %v820
      %v826 = vunpack.c.l.b16 %v797
      %v827 = vunpack.c.h.b16 %v797
      %v828 = vunpack.c.l.b16 %v798
      %v829 = vunpack.c.h.b16 %v798
      %v830 = vunpack.c.l.b16 %v799
      %v831 = vunpack.c.h.b16 %v799
      %v832 = vunpack.c.l.b16 %v800
      %v833 = vunpack.c.h.b16 %v800
      %v834 = vpack.c.b16 %v828, %v826
      %v835 = vpack.c.b16 %v829, %v827
      %v836 = vpack.c.b16 %v832, %v830
      %v837 = vpack.c.b16 %v833, %v831
      %v843 = vsel %vm317, %v821, 0
      %v846 = vsel %vm317, %v820, 0
      %848 = vmatprep.subr.bf16.mxu0 %v835
      %849 = vmatpush1.bf16.msra.mxu0 %v834
      %850 = vmatprep.subr.bf16.mxu0 %v837
      %851 = vmatpush1.bf16.msra.mxu0 %v836
      %852 = vmatprep.subr.bf16.mxu0 0
      %853 = vmatpush1.bf16.msra.mxu0 0
      %854 = vmatprep.subr.bf16.mxu0 0
      %855 = vmatpush1.bf16.msra.mxu0 0
      %856 = vmatprep.subr.bf16.mxu0 0
      %857 = vmatpush1.bf16.msra.mxu0 0
      %858 = vmatprep.subr.bf16.mxu0 0
      %859 = vmatpush1.bf16.msra.mxu0 0
      %860 = vmatprep.subr.bf16.mxu0 0
      %861 = vmatpush1.bf16.msra.mxu0 0
      %862 = vmatprep.subr.bf16.mxu0 0
      %863 = vmatpush1.bf16.msra.mxu0 0
      %864 = vmatprep.subr.bf16.mxu0 0
      %865 = vmatpush1.bf16.msra.mxu0 0
      %866 = vmatprep.subr.bf16.mxu0 0
      %867 = vmatpush1.bf16.msra.mxu0 0
      %868 = vmatprep.subr.bf16.mxu0 0
      %869 = vmatpush1.bf16.msra.mxu0 0
      %870 = vmatprep.subr.bf16.mxu0 0
      %871 = vmatpush1.bf16.msra.mxu0 0
      %872 = vmatprep.subr.bf16.mxu0 0
      %873 = vmatpush1.bf16.msra.mxu0 0
      %874 = vmatprep.subr.bf16.mxu0 0
      %875 = vmatpush1.bf16.msra.mxu0 0
      %876 = vmatprep.subr.bf16.mxu0 0
      %877 = vmatpush1.bf16.msra.mxu0 0
      %878 = vmatprep.subr.bf16.mxu0 0
      %879 = vmatpush1.bf16.msra.mxu0 0
      %880 = vmatprep.mubr.bf16.mxu0 0
      %881 = vmatmul.mubr.bf16.gmra.mrb[0].mxu0 %v843
      %v882 = vpop.f32.mrb[0].mxu0
      %v883 = vadd.f32 0.0, %v882
      %v884 = vpop.f32.mrb[0].mxu0
      %v885 = vadd.f32 0.0, %v884
      %v886 = vpop.f32.mrb[0].mxu0
      %v887 = vadd.f32 0.0, %v886
      %v888 = vpop.f32.mrb[0].mxu0
      %v889 = vadd.f32 0.0, %v888
      %890 = vmatprep.mubr.bf16.mxu0 0
      %891 = vmatmul.mubr.bf16.gmra.mrb[0].mxu0 %v846
      %v892 = vpop.f32.mrb[0].mxu0
      %v893 = vadd.f32 0.0, %v892
      %v894 = vpop.f32.mrb[0].mxu0
      %v895 = vadd.f32 0.0, %v894
      %v896 = vpop.f32.mrb[0].mxu0
      %v897 = vadd.f32 0.0, %v896
      %v898 = vpop.f32.mrb[0].mxu0
      %v899 = vadd.f32 0.0, %v898
      %900 = vdwg.mxu0
      %v901 = vadd.f32 %v701, %v883
      %v902 = vadd.f32 %v702, %v885
      %v903 = vadd.f32 %v703, %v887
      %v904 = vadd.f32 %v704, %v889
      %v905 = vadd.f32 %v705, %v893
      %v906 = vadd.f32 %v706, %v895
      %v907 = vadd.f32 %v707, %v897
      %v908 = vadd.f32 %v708, %v899
      %s909 = scalar_lea.vmem %s2, 96
      %v910 = vld [vmem:[%s909] sm:$0xff]
      %v911 = vld [vmem:[%s909 + $0x8] sm:$0xff]
      %v912 = vld [vmem:[%s909 + $0x10] sm:$0xff]
      %v913 = vld [vmem:[%s909 + $0x18] sm:$0xff]
      %v918 = vunpack.c.l.b16 %v910
      %v919 = vunpack.c.h.b16 %v910
      %v920 = vunpack.c.l.b16 %v911
      %v921 = vunpack.c.h.b16 %v911
      %v922 = vunpack.c.l.b16 %v912
      %v923 = vunpack.c.h.b16 %v912
      %v924 = vunpack.c.l.b16 %v913
      %v925 = vunpack.c.h.b16 %v913
      %v926 = vpack.c.b16 %v920, %v918
      %v927 = vpack.c.b16 %v921, %v919
      %v928 = vpack.c.b16 %v924, %v922
      %v929 = vpack.c.b16 %v925, %v923
      %934 = vmatprep.subr.bf16.mxu0 %v927
      %935 = vmatpush1.bf16.msra.mxu0 %v926
      %936 = vmatprep.subr.bf16.mxu0 %v929
      %937 = vmatpush1.bf16.msra.mxu0 %v928
      %938 = vmatprep.subr.bf16.mxu0 0
      %939 = vmatpush1.bf16.msra.mxu0 0
      %940 = vmatprep.subr.bf16.mxu0 0
      %941 = vmatpush1.bf16.msra.mxu0 0
      %942 = vmatprep.subr.bf16.mxu0 0
      %943 = vmatpush1.bf16.msra.mxu0 0
      %944 = vmatprep.subr.bf16.mxu0 0
      %945 = vmatpush1.bf16.msra.mxu0 0
      %946 = vmatprep.subr.bf16.mxu0 0
      %947 = vmatpush1.bf16.msra.mxu0 0
      %948 = vmatprep.subr.bf16.mxu0 0
      %949 = vmatpush1.bf16.msra.mxu0 0
      %950 = vmatprep.subr.bf16.mxu0 0
      %951 = vmatpush1.bf16.msra.mxu0 0
      %952 = vmatprep.subr.bf16.mxu0 0
      %953 = vmatpush1.bf16.msra.mxu0 0
      %954 = vmatprep.subr.bf16.mxu0 0
      %955 = vmatpush1.bf16.msra.mxu0 0
      %956 = vmatprep.subr.bf16.mxu0 0
      %957 = vmatpush1.bf16.msra.mxu0 0
      %958 = vmatprep.subr.bf16.mxu0 0
      %959 = vmatpush1.bf16.msra.mxu0 0
      %960 = vmatprep.subr.bf16.mxu0 0
      %961 = vmatpush1.bf16.msra.mxu0 0
      %962 = vmatprep.subr.bf16.mxu0 0
      %963 = vmatpush1.bf16.msra.mxu0 0
      %964 = vmatprep.subr.bf16.mxu0 0
      %965 = vmatpush1.bf16.msra.mxu0 0
      %966 = vmatprep.mubr.bf16.mxu0 0
      %967 = vmatmul.mubr.bf16.gmra.mrb[0].mxu0 %v843
      %v968 = vpop.f32.mrb[0].mxu0
      %v969 = vadd.f32 0.0, %v968
      %v970 = vpop.f32.mrb[0].mxu0
      %v971 = vadd.f32 0.0, %v970
      %v972 = vpop.f32.mrb[0].mxu0
      %v973 = vadd.f32 0.0, %v972
      %v974 = vpop.f32.mrb[0].mxu0
      %v975 = vadd.f32 0.0, %v974
      %976 = vmatprep.mubr.bf16.mxu0 0
      %977 = vmatmul.mubr.bf16.gmra.mrb[0].mxu0 %v846
      %v978 = vpop.f32.mrb[0].mxu0
      %v979 = vadd.f32 0.0, %v978
      %v980 = vpop.f32.mrb[0].mxu0
      %v981 = vadd.f32 0.0, %v980
      %v982 = vpop.f32.mrb[0].mxu0
      %v983 = vadd.f32 0.0, %v982
      %v984 = vpop.f32.mrb[0].mxu0
      %v985 = vadd.f32 0.0, %v984
      %986 = vdwg.mxu0
      %v987 = vadd.f32 %v787, %v969
      %v988 = vadd.f32 %v788, %v971
      %v989 = vadd.f32 %v789, %v973
      %v990 = vadd.f32 %v790, %v975
      %v991 = vadd.f32 %v791, %v979
      %v992 = vadd.f32 %v792, %v981
      %v993 = vadd.f32 %v793, %v983
      %v994 = vadd.f32 %v794, %v985
      %v995 = vld [vmem:[%s246] sm:$0xc]
      %s996 = scalar_lea.vmem %s1, 128
      %v997 = vld [vmem:[%s996] sm:$0xff]
      %v998 = vld [vmem:[%s996 + $0x8] sm:$0xff]
      %v999 = vld [vmem:[%s996 + $0x10] sm:$0xff]
      %v1000 = vld [vmem:[%s996 + $0x18] sm:$0xff]
      %v1002 = vunpack.c.l.b16 %v995
      %v1003 = vpack.c.b16 %v276, %v1002
      %vm1004 = vcmask 1045504
      %v1005 = vrot.slane %v1003, 2
      %v1006 = vrot.slane %v803, 2
      %v1007 = vsel %vm1004, %v1005, %v1006
      %v1012 = vunpack.c.l.b16 %v997
      %v1013 = vunpack.c.h.b16 %v997
      %v1014 = vunpack.c.l.b16 %v998
      %v1015 = vunpack.c.h.b16 %v998
      %v1016 = vunpack.c.l.b16 %v999
      %v1017 = vunpack.c.h.b16 %v999
      %v1018 = vunpack.c.l.b16 %v1000
      %v1019 = vunpack.c.h.b16 %v1000
      %v1020 = vpack.c.b16 %v1014, %v1012
      %v1021 = vpack.c.b16 %v1015, %v1013
      %v1022 = vpack.c.b16 %v1018, %v1016
      %v1023 = vpack.c.b16 %v1019, %v1017
      %v1029 = vsel %vm317, %v1007, 0
      %v1032 = vsel %vm317, %v1006, 0
      %1034 = vmatprep.subr.bf16.mxu0 %v1021
      %1035 = vmatpush1.bf16.msra.mxu0 %v1020
      %1036 = vmatprep.subr.bf16.mxu0 %v1023
      %1037 = vmatpush1.bf16.msra.mxu0 %v1022
      %1038 = vmatprep.subr.bf16.mxu0 0
      %1039 = vmatpush1.bf16.msra.mxu0 0
      %1040 = vmatprep.subr.bf16.mxu0 0
      %1041 = vmatpush1.bf16.msra.mxu0 0
      %1042 = vmatprep.subr.bf16.mxu0 0
      %1043 = vmatpush1.bf16.msra.mxu0 0
      %1044 = vmatprep.subr.bf16.mxu0 0
      %1045 = vmatpush1.bf16.msra.mxu0 0
      %1046 = vmatprep.subr.bf16.mxu0 0
      %1047 = vmatpush1.bf16.msra.mxu0 0
      %1048 = vmatprep.subr.bf16.mxu0 0
      %1049 = vmatpush1.bf16.msra.mxu0 0
      %1050 = vmatprep.subr.bf16.mxu0 0
      %1051 = vmatpush1.bf16.msra.mxu0 0
      %1052 = vmatprep.subr.bf16.mxu0 0
      %1053 = vmatpush1.bf16.msra.mxu0 0
      %1054 = vmatprep.subr.bf16.mxu0 0
      %1055 = vmatpush1.bf16.msra.mxu0 0
      %1056 = vmatprep.subr.bf16.mxu0 0
      %1057 = vmatpush1.bf16.msra.mxu0 0
      %1058 = vmatprep.subr.bf16.mxu0 0
      %1059 = vmatpush1.bf16.msra.mxu0 0
      %1060 = vmatprep.subr.bf16.mxu0 0
      %1061 = vmatpush1.bf16.msra.mxu0 0
      %1062 = vmatprep.subr.bf16.mxu0 0
      %1063 = vmatpush1.bf16.msra.mxu0 0
      %1064 = vmatprep.subr.bf16.mxu0 0
      %1065 = vmatpush1.bf16.msra.mxu0 0
      %1066 = vmatprep.mubr.bf16.mxu0 0
      %1067 = vmatmul.mubr.bf16.gmra.mrb[0].mxu0 %v1029
      %v1068 = vpop.f32.mrb[0].mxu0
      %v1069 = vadd.f32 0.0, %v1068
      %v1070 = vpop.f32.mrb[0].mxu0
      %v1071 = vadd.f32 0.0, %v1070
      %v1072 = vpop.f32.mrb[0].mxu0
      %v1073 = vadd.f32 0.0, %v1072
      %v1074 = vpop.f32.mrb[0].mxu0
      %v1075 = vadd.f32 0.0, %v1074
      %1076 = vmatprep.mubr.bf16.mxu0 0
      %1077 = vmatmul.mubr.bf16.gmra.mrb[0].mxu0 %v1032
      %v1078 = vpop.f32.mrb[0].mxu0
      %v1079 = vadd.f32 0.0, %v1078
      %v1080 = vpop.f32.mrb[0].mxu0
      %v1081 = vadd.f32 0.0, %v1080
      %v1082 = vpop.f32.mrb[0].mxu0
      %v1083 = vadd.f32 0.0, %v1082
      %v1084 = vpop.f32.mrb[0].mxu0
      %v1085 = vadd.f32 0.0, %v1084
      %1086 = vdwg.mxu0
      %v1087 = vadd.f32 %v901, %v1069
      %v1088 = vadd.f32 %v902, %v1071
      %v1089 = vadd.f32 %v903, %v1073
      %v1090 = vadd.f32 %v904, %v1075
      %v1091 = vadd.f32 %v905, %v1079
      %v1092 = vadd.f32 %v906, %v1081
      %v1093 = vadd.f32 %v907, %v1083
      %v1094 = vadd.f32 %v908, %v1085
      %s1095 = scalar_lea.vmem %s2, 128
      %v1096 = vld [vmem:[%s1095] sm:$0xff]
      %v1097 = vld [vmem:[%s1095 + $0x8] sm:$0xff]
      %v1098 = vld [vmem:[%s1095 + $0x10] sm:$0xff]
      %v1099 = vld [vmem:[%s1095 + $0x18] sm:$0xff]
      %v1104 = vunpack.c.l.b16 %v1096
      %v1105 = vunpack.c.h.b16 %v1096
      %v1106 = vunpack.c.l.b16 %v1097
      %v1107 = vunpack.c.h.b16 %v1097
      %v1108 = vunpack.c.l.b16 %v1098
      %v1109 = vunpack.c.h.b16 %v1098
      %v1110 = vunpack.c.l.b16 %v1099
      %v1111 = vunpack.c.h.b16 %v1099
      %v1112 = vpack.c.b16 %v1106, %v1104
      %v1113 = vpack.c.b16 %v1107, %v1105
      %v1114 = vpack.c.b16 %v1110, %v1108
      %v1115 = vpack.c.b16 %v1111, %v1109
      %1120 = vmatprep.subr.bf16.mxu0 %v1113
      %1121 = vmatpush1.bf16.msra.mxu0 %v1112
      %1122 = vmatprep.subr.bf16.mxu0 %v1115
      %1123 = vmatpush1.bf16.msra.mxu0 %v1114
      %1124 = vmatprep.subr.bf16.mxu0 0
      %1125 = vmatpush1.bf16.msra.mxu0 0
      %1126 = vmatprep.subr.bf16.mxu0 0
      %1127 = vmatpush1.bf16.msra.mxu0 0
      %1128 = vmatprep.subr.bf16.mxu0 0
      %1129 = vmatpush1.bf16.msra.mxu0 0
      %1130 = vmatprep.subr.bf16.mxu0 0
      %1131 = vmatpush1.bf16.msra.mxu0 0
      %1132 = vmatprep.subr.bf16.mxu0 0
      %1133 = vmatpush1.bf16.msra.mxu0 0
      %1134 = vmatprep.subr.bf16.mxu0 0
      %1135 = vmatpush1.bf16.msra.mxu0 0
      %1136 = vmatprep.subr.bf16.mxu0 0
      %1137 = vmatpush1.bf16.msra.mxu0 0
      %1138 = vmatprep.subr.bf16.mxu0 0
      %1139 = vmatpush1.bf16.msra.mxu0 0
      %1140 = vmatprep.subr.bf16.mxu0 0
      %1141 = vmatpush1.bf16.msra.mxu0 0
      %1142 = vmatprep.subr.bf16.mxu0 0
      %1143 = vmatpush1.bf16.msra.mxu0 0
      %1144 = vmatprep.subr.bf16.mxu0 0
      %1145 = vmatpush1.bf16.msra.mxu0 0
      %1146 = vmatprep.subr.bf16.mxu0 0
      %1147 = vmatpush1.bf16.msra.mxu0 0
      %1148 = vmatprep.subr.bf16.mxu0 0
      %1149 = vmatpush1.bf16.msra.mxu0 0
      %1150 = vmatprep.subr.bf16.mxu0 0
      %1151 = vmatpush1.bf16.msra.mxu0 0
      %1152 = vmatprep.mubr.bf16.mxu0 0
      %1153 = vmatmul.mubr.bf16.gmra.mrb[0].mxu0 %v1029
      %v1154 = vpop.f32.mrb[0].mxu0
      %v1155 = vadd.f32 0.0, %v1154
      %v1156 = vpop.f32.mrb[0].mxu0
      %v1157 = vadd.f32 0.0, %v1156
      %v1158 = vpop.f32.mrb[0].mxu0
      %v1159 = vadd.f32 0.0, %v1158
      %v1160 = vpop.f32.mrb[0].mxu0
      %v1161 = vadd.f32 0.0, %v1160
      %1162 = vmatprep.mubr.bf16.mxu0 0
      %1163 = vmatmul.mubr.bf16.gmra.mrb[0].mxu0 %v1032
      %v1164 = vpop.f32.mrb[0].mxu0
      %v1165 = vadd.f32 0.0, %v1164
      %v1166 = vpop.f32.mrb[0].mxu0
      %v1167 = vadd.f32 0.0, %v1166
      %v1168 = vpop.f32.mrb[0].mxu0
      %v1169 = vadd.f32 0.0, %v1168
      %v1170 = vpop.f32.mrb[0].mxu0
      %v1171 = vadd.f32 0.0, %v1170
      %1172 = vdwg.mxu0
      %v1173 = vadd.f32 %v987, %v1155
      %v1174 = vadd.f32 %v988, %v1157
      %v1175 = vadd.f32 %v989, %v1159
      %v1176 = vadd.f32 %v990, %v1161
      %v1177 = vadd.f32 %v991, %v1165
      %v1178 = vadd.f32 %v992, %v1167
      %v1179 = vadd.f32 %v993, %v1169
      %v1180 = vadd.f32 %v994, %v1171
      %v1181 = vld [vmem:[%s3] sm:$0x3]
      %v1183 = vlaneseq
      %v1184 = vshrl.u32 %v1183, 7
      %v1185 = vsub.s32 0, %v1184
      %v1186 = vrot.slane %v1181, %v1185
      %v1187 = vlaneseq
      %v1188 = vshrl.u32 %v1187, 7
      %v1189 = vsub.s32 1, %v1188
      %v1190 = vrot.slane %v1181, %v1189
      %v1193 = vadd.f32 %v1087, %v1186
      %v1194 = vadd.f32 %v1088, %v1190
      %v1195 = vadd.f32 %v1089, %v1186
      %v1196 = vadd.f32 %v1090, %v1190
      %v1197 = vadd.f32 %v1091, %v1186
      %v1198 = vadd.f32 %v1092, %v1190
      %v1199 = vadd.f32 %v1093, %v1186
      %v1200 = vadd.f32 %v1094, %v1190
      %v1201 = vmax.f32 %v1193, 0.0
      %v1202 = vmax.f32 %v1194, 0.0
      %v1203 = vmax.f32 %v1195, 0.0
      %v1204 = vmax.f32 %v1196, 0.0
      %v1205 = vmax.f32 %v1197, 0.0
      %v1206 = vmax.f32 %v1198, 0.0
      %v1207 = vmax.f32 %v1199, 0.0
      %v1208 = vmax.f32 %v1200, 0.0
      %v1209 = vadd.f32 %v1173, %v1186
      %v1210 = vadd.f32 %v1174, %v1190
      %v1211 = vadd.f32 %v1175, %v1186
      %v1212 = vadd.f32 %v1176, %v1190
      %v1213 = vadd.f32 %v1177, %v1186
      %v1214 = vadd.f32 %v1178, %v1190
      %v1215 = vadd.f32 %v1179, %v1186
      %v1216 = vadd.f32 %v1180, %v1190
      %v1217 = vmax.f32 %v1209, 0.0
      %v1218 = vmax.f32 %v1210, 0.0
      %v1219 = vmax.f32 %v1211, 0.0
      %v1220 = vmax.f32 %v1212, 0.0
      %v1221 = vmax.f32 %v1213, 0.0
      %v1222 = vmax.f32 %v1214, 0.0
      %v1223 = vmax.f32 %v1215, 0.0
      %v1224 = vmax.f32 %v1216, 0.0
      %v1225 = vmax.f32 %v1201, %v1217
      %v1226 = vmax.f32 %v1202, %v1218
      %v1227 = vmax.f32 %v1203, %v1219
      %v1228 = vmax.f32 %v1204, %v1220
      %v1229 = vmax.f32 %v1205, %v1221
      %v1230 = vmax.f32 %v1206, %v1222
      %v1231 = vmax.f32 %v1207, %v1223
      %v1232 = vmax.f32 %v1208, %v1224
      %v1233 = vld [vmem:[%s4] sm:$0xff]
      %v1234 = vld [vmem:[%s4 + $0x8] sm:$0x3f]
      %vm1235 = vcmask 228352
      %v1237 = vsel %vm1235, %v1233, 0
      %v1240 = vsel %vm1235, %v1234, 0
      %vm1242 = vcmask 1043456
      %v1244 = vsel %vm1242, %v1231, 0
      %v1247 = vsel %vm1242, %v1232, 0
      %1249 = vmatprep.subr.mxu0 %v1226
      %1250 = vmatpush1.msra.mxu0 %v1225
      %1251 = vmatprep.subr.mxu0 %v1228
      %1252 = vmatpush1.msra.mxu0 %v1227
      %1253 = vmatprep.subr.mxu0 %v1230
      %1254 = vmatpush1.msra.mxu0 %v1229
      %1255 = vmatprep.subr.mxu0 %v1247
      %1256 = vmatpush1.msra.mxu0 %v1244
      %1257 = vmatprep.subr.mxu0 0.0
      %1258 = vmatpush1.msra.mxu0 0.0
      %1259 = vmatprep.subr.mxu0 0.0
      %1260 = vmatpush1.msra.mxu0 0.0
      %1261 = vmatprep.subr.mxu0 0.0
      %1262 = vmatpush1.msra.mxu0 0.0
      %1263 = vmatprep.subr.mxu0 0.0
      %1264 = vmatpush1.msra.mxu0 0.0
      %1265 = vmatprep.subr.mxu0 0.0
      %1266 = vmatpush1.msra.mxu0 0.0
      %1267 = vmatprep.subr.mxu0 0.0
      %1268 = vmatpush1.msra.mxu0 0.0
      %1269 = vmatprep.subr.mxu0 0.0
      %1270 = vmatpush1.msra.mxu0 0.0
      %1271 = vmatprep.subr.mxu0 0.0
      %1272 = vmatpush1.msra.mxu0 0.0
      %1273 = vmatprep.subr.mxu0 0.0
      %1274 = vmatpush1.msra.mxu0 0.0
      %1275 = vmatprep.subr.mxu0 0.0
      %1276 = vmatpush1.msra.mxu0 0.0
      %1277 = vmatprep.subr.mxu0 0.0
      %1278 = vmatpush1.msra.mxu0 0.0
      %1279 = vmatprep.subr.mxu0 0.0
      %1280 = vmatpush1.msra.mxu0 0.0
      %1281 = vmatprep.subr.mxu0 0.0
      %1282 = vmatpush1.msra.mxu0 0.0
      %1283 = vmatprep.subr.mxu0 0.0
      %1284 = vmatpush1.msra.mxu0 0.0
      %1285 = vmatprep.subr.mxu0 0.0
      %1286 = vmatpush1.msra.mxu0 0.0
      %1287 = vmatprep.subr.mxu0 0.0
      %1288 = vmatpush1.msra.mxu0 0.0
      %1289 = vmatprep.subr.mxu0 0.0
      %1290 = vmatpush1.msra.mxu0 0.0
      %1291 = vmatprep.subr.mxu0 0.0
      %1292 = vmatpush1.msra.mxu0 0.0
      %1293 = vmatprep.subr.mxu0 0.0
      %1294 = vmatpush1.msra.mxu0 0.0
      %1295 = vmatprep.subr.mxu0 0.0
      %1296 = vmatpush1.msra.mxu0 0.0
      %1297 = vmatprep.subr.mxu0 0.0
      %1298 = vmatpush1.msra.mxu0 0.0
      %1299 = vmatprep.subr.mxu0 0.0
      %1300 = vmatpush1.msra.mxu0 0.0
      %1301 = vmatprep.subr.mxu0 0.0
      %1302 = vmatpush1.msra.mxu0 0.0
      %1303 = vmatprep.subr.mxu0 0.0
      %1304 = vmatpush1.msra.mxu0 0.0
      %1305 = vmatprep.subr.mxu0 0.0
      %1306 = vmatpush1.msra.mxu0 0.0
      %1307 = vmatprep.subr.mxu0 0.0
      %1308 = vmatpush1.msra.mxu0 0.0
      %1309 = vmatprep.subr.mxu0 0.0
      %1310 = vmatpush1.msra.mxu0 0.0
      %1311 = vmatprep.subr.mxu0 0.0
      %1312 = vmatpush1.msra.mxu0 0.0
      %1313 = vmatprep.mubr.f32.mxu0 0.0
      %1314 = vmatmul.mubr.f32.gmra.mrb[0].mxu0 %v1237
      %v1315 = vpop.f32.mrb[0].mxu0
      %v1316 = vadd.f32 0.0, %v1315
      %v1317 = vpop.f32.mrb[0].mxu0
      %v1318 = vadd.f32 0.0, %v1317
      %1319 = vmatprep.mubr.f32.mxu0 0.0
      %1320 = vmatmul.mubr.f32.gmra.mrb[0].mxu0 %v1240
      %v1321 = vpop.f32.mrb[0].mxu0
      %v1322 = vadd.f32 0.0, %v1321
      %v1323 = vpop.f32.mrb[0].mxu0
      %v1324 = vadd.f32 0.0, %v1323
      %1325 = vdwg.mxu0
      %v1326 = vld [vmem:[%s5] sm:$0xff]
      %v1327 = vld [vmem:[%s5 + $0x8] sm:$0x3f]
      %v1329 = vsel %vm1235, %v1326, 0
      %v1332 = vsel %vm1235, %v1327, 0
      %1334 = vmatprep.subr.mxu0 %v1226
      %1335 = vmatpush1.msra.mxu0 %v1225
      %1336 = vmatprep.subr.mxu0 %v1228
      %1337 = vmatpush1.msra.mxu0 %v1227
      %1338 = vmatprep.subr.mxu0 %v1230
      %1339 = vmatpush1.msra.mxu0 %v1229
      %1340 = vmatprep.subr.mxu0 %v1247
      %1341 = vmatpush1.msra.mxu0 %v1244
      %1342 = vmatprep.subr.mxu0 0.0
      %1343 = vmatpush1.msra.mxu0 0.0
      %1344 = vmatprep.subr.mxu0 0.0
      %1345 = vmatpush1.msra.mxu0 0.0
      %1346 = vmatprep.subr.mxu0 0.0
      %1347 = vmatpush1.msra.mxu0 0.0
      %1348 = vmatprep.subr.mxu0 0.0
      %1349 = vmatpush1.msra.mxu0 0.0
      %1350 = vmatprep.subr.mxu0 0.0
      %1351 = vmatpush1.msra.mxu0 0.0
      %1352 = vmatprep.subr.mxu0 0.0
      %1353 = vmatpush1.msra.mxu0 0.0
      %1354 = vmatprep.subr.mxu0 0.0
      %1355 = vmatpush1.msra.mxu0 0.0
      %1356 = vmatprep.subr.mxu0 0.0
      %1357 = vmatpush1.msra.mxu0 0.0
      %1358 = vmatprep.subr.mxu0 0.0
      %1359 = vmatpush1.msra.mxu0 0.0
      %1360 = vmatprep.subr.mxu0 0.0
      %1361 = vmatpush1.msra.mxu0 0.0
      %1362 = vmatprep.subr.mxu0 0.0
      %1363 = vmatpush1.msra.mxu0 0.0
      %1364 = vmatprep.subr.mxu0 0.0
      %1365 = vmatpush1.msra.mxu0 0.0
      %1366 = vmatprep.subr.mxu0 0.0
      %1367 = vmatpush1.msra.mxu0 0.0
      %1368 = vmatprep.subr.mxu0 0.0
      %1369 = vmatpush1.msra.mxu0 0.0
      %1370 = vmatprep.subr.mxu0 0.0
      %1371 = vmatpush1.msra.mxu0 0.0
      %1372 = vmatprep.subr.mxu0 0.0
      %1373 = vmatpush1.msra.mxu0 0.0
      %1374 = vmatprep.subr.mxu0 0.0
      %1375 = vmatpush1.msra.mxu0 0.0
      %1376 = vmatprep.subr.mxu0 0.0
      %1377 = vmatpush1.msra.mxu0 0.0
      %1378 = vmatprep.subr.mxu0 0.0
      %1379 = vmatpush1.msra.mxu0 0.0
      %1380 = vmatprep.subr.mxu0 0.0
      %1381 = vmatpush1.msra.mxu0 0.0
      %1382 = vmatprep.subr.mxu0 0.0
      %1383 = vmatpush1.msra.mxu0 0.0
      %1384 = vmatprep.subr.mxu0 0.0
      %1385 = vmatpush1.msra.mxu0 0.0
      %1386 = vmatprep.subr.mxu0 0.0
      %1387 = vmatpush1.msra.mxu0 0.0
      %1388 = vmatprep.subr.mxu0 0.0
      %1389 = vmatpush1.msra.mxu0 0.0
      %1390 = vmatprep.subr.mxu0 0.0
      %1391 = vmatpush1.msra.mxu0 0.0
      %1392 = vmatprep.subr.mxu0 0.0
      %1393 = vmatpush1.msra.mxu0 0.0
      %1394 = vmatprep.subr.mxu0 0.0
      %1395 = vmatpush1.msra.mxu0 0.0
      %1396 = vmatprep.subr.mxu0 0.0
      %1397 = vmatpush1.msra.mxu0 0.0
      %1398 = vmatprep.mubr.f32.mxu0 0.0
      %1399 = vmatmul.mubr.f32.gmra.mrb[0].mxu0 %v1329
      %v1400 = vpop.f32.mrb[0].mxu0
      %v1401 = vadd.f32 0.0, %v1400
      %v1402 = vpop.f32.mrb[0].mxu0
      %v1403 = vadd.f32 0.0, %v1402
      %1404 = vmatprep.mubr.f32.mxu0 0.0
      %1405 = vmatmul.mubr.f32.gmra.mrb[0].mxu0 %v1332
      %v1406 = vpop.f32.mrb[0].mxu0
      %v1407 = vadd.f32 0.0, %v1406
      %v1408 = vpop.f32.mrb[0].mxu0
      %v1409 = vadd.f32 0.0, %v1408
      %1410 = vdwg.mxu0
      %v1411 = vmax.f32 %v1316, %v1401
      %v1412 = vmax.f32 %v1318, %v1403
      %v1413 = vmax.f32 %v1322, %v1407
      %v1414 = vmax.f32 %v1324, %v1409
      %1415 = vst [vmem:[%s251] sm:$0xff] %v1411
      %vm1416 = vcmask 785408
      %1417 = vst.msk [vmem:[%s251 + $0x8] sm:$0xff] %vm1416, %v1412
      %1418 = vst [vmem:[%s251 + $0x10] sm:$0x3f] %v1413
      %vm1419 = vcmask 783360
      %1420 = vst.msk [vmem:[%s251 + $0x18] sm:$0x3f] %vm1419, %v1414
      %p1421 = scmp.lt.s32.totalorder %s17, 1
      %s1422 = scalar_select %p1421, %s17, 1
      %s1423 = smul.addr %s1422, 4
      %s1424 = smul.addr %s1423, 8
      %s1425 = scalar_lea.vmem %s6, %s1424
      // Predicated region
      $region45: #{cnn_forward.3} parent=43 // pred_check
        %p1426 = pneg %p166
      $region46: #{cnn_forward.3} parent=43 // pred_check_branch
        %1428 = sbr.rel (%p1426) target = $region48
      $region47: #{cnn_forward.3} parent=43 // pred_region
        _
      $region48: #{cnn_forward.3} parent=43 // pred_fallthru
        _
    $region44: #{cnn_forward.3} parent=5 // pred_fallthru
      _
    %p1429 = scmp.le.s32.totalorder 2, %s12
    // Predicated region
    $region49: #{cnn_forward.3} parent=5 // pred_check
      %p1430 = pneg %p1429
    $region50: #{cnn_forward.3} parent=5 // pred_check_branch
      %1432 = sbr.rel (%p1430) target = $region52
    $region51: #{cnn_forward.3} parent=5 // pred_region
      %s1433 = ssub.s32 %s12, 2
      // Predicated region
      $region53: #{cnn_forward.3} parent=51 // pred_check
        %p1434 = pneg %p172
      $region54: #{cnn_forward.3} parent=51 // pred_check_branch
        %1436 = sbr.rel (%p1434) target = $region56
      $region55: #{cnn_forward.3} parent=51 // pred_region
        %p1437 = scmp.lt.s32.totalorder %s18, 1
        %s1438 = scalar_select %p1437, %s18, 1
        %s1439 = smul.addr %s1438, 4
        %s1440 = smul.addr %s1439, 8
        %s1441 = scalar_lea.vmem %s6, %s1440
      $region56: #{cnn_forward.3} parent=51 // pred_fallthru
        _
    $region52: #{cnn_forward.3} parent=5 // pred_fallthru
      _
  $region6: #{cnn_forward.3} parent=0 // loop_footer
    %s16 = sadd.s32 1, %s12
  $region7: #{cnn_forward.3} parent=0 // loop_footer_branch
    %11 = sbr.rel target = $region3
  $region8: #{cnn_forward.3} parent=0 // loop_exit
    _

// kernel: cnn_forward.4
$region0: #{cnn_forward.4}
  #allocation0 [shape = 'u32[]', space=smem, size = 0x4, offset = 0x4, fixed_abs, tag = 'smem constant byte address 0x4 - core index']
  #allocation1 [shape = 'u32[144,128]{1,0:T(1,128)}', space=vmem, size = 0x12000, scoped, tag = 'internal scratch']
  %s0 = inlined_call_operand.vmem [shape: bf16[2,18,288], index: 0, kind: input, shape index: {}]
  %s1 = inlined_call_operand.vmem [shape: bf16[5,288,224], index: 1, kind: input, shape index: {}]
  %s2 = inlined_call_operand.vmem [shape: bf16[5,288,224], index: 2, kind: input, shape index: {}]
  %s3 = inlined_call_operand.vmem [shape: f32[1,224], index: 3, kind: input, shape index: {}]
  %s4 = inlined_call_operand.vmem [shape: f32[7,14], index: 4, kind: input, shape index: {}]
  %s5 = inlined_call_operand.vmem [shape: f32[7,14], index: 5, kind: input, shape index: {}]
  %s6 = inlined_call_operand.vmem [shape: f32[2,7,224], index: 6, kind: output, shape index: {}]
  %s7 = sld [smem:[#allocation0]]
  $region57: #{cnn_forward.4} parent=0
    _
  %s9 = ssub.s32 1, %s7
  %s10 = scalar_select 0, %s9, %s7
  loop: start=0, step=1, limit=4
  $region2: #{cnn_forward.4} parent=0 // loop_pre_header
    _
  $region3: #{cnn_forward.4} parent=0 // loop_header
    %s12 = sphi 0, %s16
    %p13 = scmp.ge.s32.totalorder %s12, 4
    %s22 = sphi 0, %s24
    %s25 = sphi 0, %s22
    %s26 = sphi 0, %s25
    %s42 = sphi 0, %s26
    %s46 = sphi 0, %s46
    %s48 = sphi 0, %s46
    %s49 = sphi 0, %s48
    %s63 = sphi 0, %s49
    %s67 = sphi 0, %s67
    %s69 = sphi 0, %s67
    %s70 = sphi 0, %s69
    %s84 = sphi 0, %s70
    %s88 = sphi 0, %s88
    %s90 = sphi 0, %s88
    %s91 = sphi 0, %s90
    %s105 = sphi 0, %s91
    %s109 = sphi 0, %s109
    %s111 = sphi 0, %s109
    %s112 = sphi 0, %s111
    %s126 = sphi 0, %s112
    %s130 = sphi 0, %s130
    %s132 = sphi 0, %s130
    %s133 = sphi 0, %s132
    %s147 = sphi 0, %s133
    %s153 = sphi 0, %s155
    %s156 = sphi 0, %s153
    %s157 = sphi 0, %s156
    %s173 = sphi 0, %s157
  $region4: #{cnn_forward.4} parent=0 // loop_header_branch
    %15 = sbr.rel (%p13) target = $region8
  $region5: #{cnn_forward.4} parent=0 // loop_body
    %s17 = ssub.s32 %s12, 1
    %s18 = ssub.s32 %s12, 2
    %s19 = sadd.s32 %s12, 1
    %s20 = ssub.s32 %s12, %s19
    %p21 = scmp.eq.s32.totalorder %s20, 0
    %s23 = sadd.s32 %s22, 1
    %s24 = scalar_select %p21, %s22, %s23
    %p27 = pneg %p21
    %p28 = scmp.eq.s32.totalorder %s12, 1
    %p29 = por %p27, %p28
    %p30 = scmp.ne.s32.totalorder %s22, %s25
    %p31 = scmp.eq.s32.totalorder %s12, 0
    %p32 = por %p30, %p31
    %p33 = scmp.ne.s32.totalorder %s22, %s25
    %p34 = scmp.eq.s32.totalorder %s17, 1
    %p35 = por %p33, %p34
    %p36 = scmp.ne.s32.totalorder %s25, %s26
    %p37 = scmp.eq.s32.totalorder %s17, 0
    %p38 = por %p36, %p37
    %p39 = scmp.ne.s32.totalorder %s25, %s26
    %p40 = scmp.eq.s32.totalorder %s18, 1
    %p41 = por %p39, %p40
    %p43 = scmp.ne.s32.totalorder %s26, %s42
    %p44 = scmp.eq.s32.totalorder %s18, 0
    %p45 = por %p43, %p44
    %s47 = sadd.s32 %s46, 1
    %p50 = scmp.eq.s32.totalorder %s12, 1
    %p51 = scmp.ne.s32.totalorder %s46, %s48
    %p52 = scmp.eq.s32.totalorder %s12, 0
    %p53 = por %p51, %p52
    %p54 = scmp.ne.s32.totalorder %s46, %s48
    %p55 = scmp.eq.s32.totalorder %s17, 1
    %p56 = por %p54, %p55
    %p57 = scmp.ne.s32.totalorder %s48, %s49
    %p58 = scmp.eq.s32.totalorder %s17, 0
    %p59 = por %p57, %p58
    %p60 = scmp.ne.s32.totalorder %s48, %s49
    %p61 = scmp.eq.s32.totalorder %s18, 1
    %p62 = por %p60, %p61
    %p64 = scmp.ne.s32.totalorder %s49, %s63
    %p65 = scmp.eq.s32.totalorder %s18, 0
    %p66 = por %p64, %p65
    %s68 = sadd.s32 %s67, 1
    %p71 = scmp.eq.s32.totalorder %s12, 1
    %p72 = scmp.ne.s32.totalorder %s67, %s69
    %p73 = scmp.eq.s32.totalorder %s12, 0
    %p74 = por %p72, %p73
    %p75 = scmp.ne.s32.totalorder %s67, %s69
    %p76 = scmp.eq.s32.totalorder %s17, 1
    %p77 = por %p75, %p76
    %p78 = scmp.ne.s32.totalorder %s69, %s70
    %p79 = scmp.eq.s32.totalorder %s17, 0
    %p80 = por %p78, %p79
    %p81 = scmp.ne.s32.totalorder %s69, %s70
    %p82 = scmp.eq.s32.totalorder %s18, 1
    %p83 = por %p81, %p82
    %p85 = scmp.ne.s32.totalorder %s70, %s84
    %p86 = scmp.eq.s32.totalorder %s18, 0
    %p87 = por %p85, %p86
    %s89 = sadd.s32 %s88, 1
    %p92 = scmp.eq.s32.totalorder %s12, 1
    %p93 = scmp.ne.s32.totalorder %s88, %s90
    %p94 = scmp.eq.s32.totalorder %s12, 0
    %p95 = por %p93, %p94
    %p96 = scmp.ne.s32.totalorder %s88, %s90
    %p97 = scmp.eq.s32.totalorder %s17, 1
    %p98 = por %p96, %p97
    %p99 = scmp.ne.s32.totalorder %s90, %s91
    %p100 = scmp.eq.s32.totalorder %s17, 0
    %p101 = por %p99, %p100
    %p102 = scmp.ne.s32.totalorder %s90, %s91
    %p103 = scmp.eq.s32.totalorder %s18, 1
    %p104 = por %p102, %p103
    %p106 = scmp.ne.s32.totalorder %s91, %s105
    %p107 = scmp.eq.s32.totalorder %s18, 0
    %p108 = por %p106, %p107
    %s110 = sadd.s32 %s109, 1
    %p113 = scmp.eq.s32.totalorder %s12, 1
    %p114 = scmp.ne.s32.totalorder %s109, %s111
    %p115 = scmp.eq.s32.totalorder %s12, 0
    %p116 = por %p114, %p115
    %p117 = scmp.ne.s32.totalorder %s109, %s111
    %p118 = scmp.eq.s32.totalorder %s17, 1
    %p119 = por %p117, %p118
    %p120 = scmp.ne.s32.totalorder %s111, %s112
    %p121 = scmp.eq.s32.totalorder %s17, 0
    %p122 = por %p120, %p121
    %p123 = scmp.ne.s32.totalorder %s111, %s112
    %p124 = scmp.eq.s32.totalorder %s18, 1
    %p125 = por %p123, %p124
    %p127 = scmp.ne.s32.totalorder %s112, %s126
    %p128 = scmp.eq.s32.totalorder %s18, 0
    %p129 = por %p127, %p128
    %s131 = sadd.s32 %s130, 1
    %p134 = scmp.eq.s32.totalorder %s12, 1
    %p135 = scmp.ne.s32.totalorder %s130, %s132
    %p136 = scmp.eq.s32.totalorder %s12, 0
    %p137 = por %p135, %p136
    %p138 = scmp.ne.s32.totalorder %s130, %s132
    %p139 = scmp.eq.s32.totalorder %s17, 1
    %p140 = por %p138, %p139
    %p141 = scmp.ne.s32.totalorder %s132, %s133
    %p142 = scmp.eq.s32.totalorder %s17, 0
    %p143 = por %p141, %p142
    %p144 = scmp.ne.s32.totalorder %s132, %s133
    %p145 = scmp.eq.s32.totalorder %s18, 1
    %p146 = por %p144, %p145
    %p148 = scmp.ne.s32.totalorder %s133, %s147
    %p149 = scmp.eq.s32.totalorder %s18, 0
    %p150 = por %p148, %p149
    %s151 = ssub.s32 %s12, %s19
    %p152 = scmp.eq.s32.totalorder %s151, 0
    %s154 = sadd.s32 %s153, 1
    %s155 = scalar_select %p152, %s153, %s154
    %p158 = pneg %p152
    %p159 = scmp.eq.s32.totalorder %s12, 1
    %p160 = por %p158, %p159
    %p161 = scmp.ne.s32.totalorder %s153, %s156
    %p162 = scmp.eq.s32.totalorder %s12, 0
    %p163 = por %p161, %p162
    %p164 = scmp.ne.s32.totalorder %s153, %s156
    %p165 = scmp.eq.s32.totalorder %s17, 1
    %p166 = por %p164, %p165
    %p167 = scmp.ne.s32.totalorder %s156, %s157
    %p168 = scmp.eq.s32.totalorder %s17, 0
    %p169 = por %p167, %p168
    %p170 = scmp.ne.s32.totalorder %s156, %s157
    %p171 = scmp.eq.s32.totalorder %s18, 1
    %p172 = por %p170, %p171
    %p174 = scmp.ne.s32.totalorder %s157, %s173
    %p175 = scmp.eq.s32.totalorder %s18, 0
    %p176 = por %p174, %p175
    %p177 = scmp.le.s32.totalorder 1, %s12
    %p178 = scmp.lt.s32.totalorder %s12, 3
    %p179 = pnand %p177, %p178
    %p180 = pneg %p179
    // Predicated region
    $region9: #{cnn_forward.4} parent=5 // pred_check
      _
    $region10: #{cnn_forward.4} parent=5 // pred_check_branch
      %182 = sbr.rel (%p179) target = $region12
    $region11: #{cnn_forward.4} parent=5 // pred_region
      %s183 = ssub.s32 %s12, 1
      // Predicated region
      $region13: #{cnn_forward.4} parent=11 // pred_check
        %p184 = pneg %p59
      $region14: #{cnn_forward.4} parent=11 // pred_check_branch
        %186 = sbr.rel (%p184) target = $region16
      $region15: #{cnn_forward.4} parent=11 // pred_region
        _
      $region16: #{cnn_forward.4} parent=11 // pred_fallthru
        _
      // Predicated region
      $region17: #{cnn_forward.4} parent=11 // pred_check
        %p187 = pneg %p80
      $region18: #{cnn_forward.4} parent=11 // pred_check_branch
        %189 = sbr.rel (%p187) target = $region20
      $region19: #{cnn_forward.4} parent=11 // pred_region
        _
      $region20: #{cnn_forward.4} parent=11 // pred_fallthru
        _
      // Predicated region
      $region21: #{cnn_forward.4} parent=11 // pred_check
        %p190 = pneg %p101
      $region22: #{cnn_forward.4} parent=11 // pred_check_branch
        %192 = sbr.rel (%p190) target = $region24
      $region23: #{cnn_forward.4} parent=11 // pred_region
        _
      $region24: #{cnn_forward.4} parent=11 // pred_fallthru
        _
      // Predicated region
      $region25: #{cnn_forward.4} parent=11 // pred_check
        %p193 = pneg %p122
      $region26: #{cnn_forward.4} parent=11 // pred_check_branch
        %195 = sbr.rel (%p193) target = $region28
      $region27: #{cnn_forward.4} parent=11 // pred_region
        _
      $region28: #{cnn_forward.4} parent=11 // pred_fallthru
        _
      // Predicated region
      $region29: #{cnn_forward.4} parent=11 // pred_check
        %p196 = pneg %p143
      $region30: #{cnn_forward.4} parent=11 // pred_check_branch
        %198 = sbr.rel (%p196) target = $region32
      $region31: #{cnn_forward.4} parent=11 // pred_region
        _
      $region32: #{cnn_forward.4} parent=11 // pred_fallthru
        _
    $region12: #{cnn_forward.4} parent=5 // pred_fallthru
      _
    %p199 = scmp.lt.s32.totalorder %s12, 2
    // Predicated region
    $region33: #{cnn_forward.4} parent=5 // pred_check
      %p200 = pneg %p199
    $region34: #{cnn_forward.4} parent=5 // pred_check_branch
      %202 = sbr.rel (%p200) target = $region36
    $region35: #{cnn_forward.4} parent=5 // pred_region
      // Predicated region
      $region37: #{cnn_forward.4} parent=35 // pred_check
        %p203 = pneg %p32
      $region38: #{cnn_forward.4} parent=35 // pred_check_branch
        %205 = sbr.rel (%p203) target = $region40
      $region39: #{cnn_forward.4} parent=35 // pred_region
        %p206 = scmp.lt.s32.totalorder %s12, 1
        %s207 = scalar_select %p206, %s12, 1
        %s208 = smul.addr %s207, 9
        %s209 = smul.addr %s208, 4
        %s210 = scalar_lea.vmem %s0, %s209
      $region40: #{cnn_forward.4} parent=35 // pred_fallthru
        _
    $region36: #{cnn_forward.4} parent=5 // pred_fallthru
      _
    %p211 = scmp.le.s32.totalorder 1, %s12
    %p212 = scmp.lt.s32.totalorder %s12, 3
    %p213 = pnand %p211, %p212
    %p214 = pneg %p213
    // Predicated region
    $region41: #{cnn_forward.4} parent=5 // pred_check
      _
    $region42: #{cnn_forward.4} parent=5 // pred_check_branch
      %216 = sbr.rel (%p213) target = $region44
    $region43: #{cnn_forward.4} parent=5 // pred_region
      %s217 = ssub.s32 %s12, 1
      %p218 = scmp.lt.s32.totalorder %s17, 1
      %s219 = scalar_select %p218, %s17, 1
      %s220 = smul.addr %s219, 9
      %s221 = smul.addr %s220, 4
      %s222 = scalar_lea.vmem %s0, %s221
      %p223 = pneg %p38
      %p224 = pneg %p35
      %p225 = pneg %p59
      %p226 = pneg %p56
      %p227 = pneg %p80
      %p228 = pneg %p77
      %p229 = pneg %p101
      %p230 = pneg %p98
      %p231 = pneg %p122
      %p232 = pneg %p119
      %p233 = pneg %p143
      %p234 = pneg %p140
      %p235 = pneg %p169
      %p236 = pneg %p166
      %p237 = scmp.lt.s32.totalorder %s17, 1
      %s238 = scalar_select %p237, %s17, 1
      %s239 = smul.addr %s238, 2
      %s240 = smul.addr %s239, 8
      %s241 = scalar_lea.vmem %s6, %s240
      %p242 = scmp.lt.s32.totalorder %s17, 1
      %s243 = scalar_select %p242, %s17, 1
      %s244 = smul.addr %s243, 9
      %s245 = smul.addr %s244, 4
      %s246 = scalar_lea.vmem %s0, %s245
      %p247 = scmp.lt.s32.totalorder %s17, 1
      %s248 = scalar_select %p247, %s17, 1
      %s249 = smul.addr %s248, 2
      %s250 = smul.addr %s249, 8
      %s251 = scalar_lea.vmem %s6, %s250
      %v253 = vld [vmem:[%s246] sm:$0xff]
      %v254 = vld [vmem:[%s246 + $0x8] sm:$0xf]
      %v255 = vld [vmem:[%s246 + $0xc] sm:$0x77]
      %v256 = vld [vmem:[%s246 + $0x14] sm:$0x7]
      %v257 = vld [vmem:[%s1] sm:$0xff]
      %v258 = vld [vmem:[%s1 + $0x8] sm:$0xff]
      %v259 = vld [vmem:[%s1 + $0x10] sm:$0xff]
      %v260 = vld [vmem:[%s1 + $0x18] sm:$0xff]
      %v261 = vld [vmem:[%s1 + $0x20] sm:$0xff]
      %v262 = vld [vmem:[%s1 + $0x28] sm:$0xff]
      %v263 = vld [vmem:[%s1 + $0x30] sm:$0xff]
      %v264 = vld [vmem:[%s1 + $0x38] sm:$0xff]
      %v265 = vld [vmem:[%s1 + $0x40] sm:$0xff]
      %v266 = vld [vmem:[%s1 + $0x48] sm:$0xff]
      %v267 = vld [vmem:[%s1 + $0x50] sm:$0xff]
      %v268 = vld [vmem:[%s1 + $0x58] sm:$0xff]
      %v269 = vld [vmem:[%s1 + $0x60] sm:$0xff]
      %v270 = vld [vmem:[%s1 + $0x68] sm:$0xff]
      %v271 = vld [vmem:[%s1 + $0x70] sm:$0xff]
      %v272 = vld [vmem:[%s1 + $0x78] sm:$0xff]
      %v273 = vld [vmem:[%s1 + $0x80] sm:$0xff]
      %v274 = vld [vmem:[%s1 + $0x88] sm:$0xff]
      %v275 = vld [vmem:[%s1 + $0x90] sm:$0xff]
      %v276 = vld [vmem:[%s1 + $0x98] sm:$0xff]
      %v277 = vld [vmem:[%s1 + $0xa0] sm:$0xff]
      %v278 = vld [vmem:[%s1 + $0xa8] sm:$0xff]
      %v279 = vld [vmem:[%s1 + $0xb0] sm:$0xff]
      %v280 = vld [vmem:[%s1 + $0xb8] sm:$0xff]
      %v281 = vld [vmem:[%s1 + $0xc0] sm:$0xff]
      %v282 = vld [vmem:[%s1 + $0xc8] sm:$0xff]
      %v283 = vld [vmem:[%s1 + $0xd0] sm:$0xff]
      %v284 = vld [vmem:[%s1 + $0xd8] sm:$0xff]
      %v285 = vld [vmem:[%s1 + $0xe0] sm:$0xff]
      %v286 = vld [vmem:[%s1 + $0xe8] sm:$0xff]
      %v287 = vld [vmem:[%s1 + $0xf0] sm:$0xff]
      %v288 = vld [vmem:[%s1 + $0xf8] sm:$0xff]
      %v289 = vld [vmem:[%s1 + $0x100] sm:$0xff]
      %v290 = vld [vmem:[%s1 + $0x108] sm:$0xff]
      %v291 = vld [vmem:[%s1 + $0x110] sm:$0xff]
      %v292 = vld [vmem:[%s1 + $0x118] sm:$0xff]
      %v293 = vld [vmem:[%s2] sm:$0xff]
      %v294 = vld [vmem:[%s2 + $0x8] sm:$0xff]
      %v295 = vld [vmem:[%s2 + $0x10] sm:$0xff]
      %v296 = vld [vmem:[%s2 + $0x18] sm:$0xff]
      %v297 = vld [vmem:[%s2 + $0x20] sm:$0xff]
      %v298 = vld [vmem:[%s2 + $0x28] sm:$0xff]
      %v299 = vld [vmem:[%s2 + $0x30] sm:$0xff]
      %v300 = vld [vmem:[%s2 + $0x38] sm:$0xff]
      %v301 = vld [vmem:[%s2 + $0x40] sm:$0xff]
      %v302 = vld [vmem:[%s2 + $0x48] sm:$0xff]
      %v303 = vld [vmem:[%s2 + $0x50] sm:$0xff]
      %v304 = vld [vmem:[%s2 + $0x58] sm:$0xff]
      %v305 = vld [vmem:[%s2 + $0x60] sm:$0xff]
      %v306 = vld [vmem:[%s2 + $0x68] sm:$0xff]
      %v307 = vld [vmem:[%s2 + $0x70] sm:$0xff]
      %v308 = vld [vmem:[%s2 + $0x78] sm:$0xff]
      %v309 = vld [vmem:[%s2 + $0x80] sm:$0xff]
      %v310 = vld [vmem:[%s2 + $0x88] sm:$0xff]
      %v311 = vld [vmem:[%s2 + $0x90] sm:$0xff]
      %v312 = vld [vmem:[%s2 + $0x98] sm:$0xff]
      %v313 = vld [vmem:[%s2 + $0xa0] sm:$0xff]
      %v314 = vld [vmem:[%s2 + $0xa8] sm:$0xff]
      %v315 = vld [vmem:[%s2 + $0xb0] sm:$0xff]
      %v316 = vld [vmem:[%s2 + $0xb8] sm:$0xff]
      %v317 = vld [vmem:[%s2 + $0xc0] sm:$0xff]
      %v318 = vld [vmem:[%s2 + $0xc8] sm:$0xff]
      %v319 = vld [vmem:[%s2 + $0xd0] sm:$0xff]
      %v320 = vld [vmem:[%s2 + $0xd8] sm:$0xff]
      %v321 = vld [vmem:[%s2 + $0xe0] sm:$0xff]
      %v322 = vld [vmem:[%s2 + $0xe8] sm:$0xff]
      %v323 = vld [vmem:[%s2 + $0xf0] sm:$0xff]
      %v324 = vld [vmem:[%s2 + $0xf8] sm:$0xff]
      %v325 = vld [vmem:[%s2 + $0x100] sm:$0xff]
      %v326 = vld [vmem:[%s2 + $0x108] sm:$0xff]
      %v327 = vld [vmem:[%s2 + $0x110] sm:$0xff]
      %v328 = vld [vmem:[%s2 + $0x118] sm:$0xff]
      %v329 = vld [vmem:[%s246 + $0xc] sm:$0xff]
      %v330 = vld [vmem:[%s246 + $0x14] sm:$0xf]
      %s331 = scalar_lea.vmem %s1, 288
      %v332 = vld [vmem:[%s331] sm:$0xff]
      %v333 = vld [vmem:[%s331 + $0x8] sm:$0xff]
      %v334 = vld [vmem:[%s331 + $0x10] sm:$0xff]
      %v335 = vld [vmem:[%s331 + $0x18] sm:$0xff]
      %v336 = vld [vmem:[%s331 + $0x20] sm:$0xff]
      %v337 = vld [vmem:[%s331 + $0x28] sm:$0xff]
      %v338 = vld [vmem:[%s331 + $0x30] sm:$0xff]
      %v339 = vld [vmem:[%s331 + $0x38] sm:$0xff]
      %v340 = vld [vmem:[%s331 + $0x40] sm:$0xff]
      %v341 = vld [vmem:[%s331 + $0x48] sm:$0xff]
      %v342 = vld [vmem:[%s331 + $0x50] sm:$0xff]
      %v343 = vld [vmem:[%s331 + $0x58] sm:$0xff]
      %v344 = vld [vmem:[%s331 + $0x60] sm:$0xff]
      %v345 = vld [vmem:[%s331 + $0x68] sm:$0xff]
      %v346 = vld [vmem:[%s331 + $0x70] sm:$0xff]
      %v347 = vld [vmem:[%s331 + $0x78] sm:$0xff]
      %v348 = vld [vmem:[%s331 + $0x80] sm:$0xff]
      %v349 = vld [vmem:[%s331 + $0x88] sm:$0xff]
      %v350 = vld [vmem:[%s331 + $0x90] sm:$0xff]
      %v351 = vld [vmem:[%s331 + $0x98] sm:$0xff]
      %v352 = vld [vmem:[%s331 + $0xa0] sm:$0xff]
      %v353 = vld [vmem:[%s331 + $0xa8] sm:$0xff]
      %v354 = vld [vmem:[%s331 + $0xb0] sm:$0xff]
      %v355 = vld [vmem:[%s331 + $0xb8] sm:$0xff]
      %v356 = vld [vmem:[%s331 + $0xc0] sm:$0xff]
      %v357 = vld [vmem:[%s331 + $0xc8] sm:$0xff]
      %v358 = vld [vmem:[%s331 + $0xd0] sm:$0xff]
      %v359 = vld [vmem:[%s331 + $0xd8] sm:$0xff]
      %v360 = vld [vmem:[%s331 + $0xe0] sm:$0xff]
      %v361 = vld [vmem:[%s331 + $0xe8] sm:$0xff]
      %v362 = vld [vmem:[%s331 + $0xf0] sm:$0xff]
      %v363 = vld [vmem:[%s331 + $0xf8] sm:$0xff]
      %v364 = vld [vmem:[%s331 + $0x100] sm:$0xff]
      %v365 = vld [vmem:[%s331 + $0x108] sm:$0xff]
      %v366 = vld [vmem:[%s331 + $0x110] sm:$0xff]
      %v367 = vld [vmem:[%s331 + $0x118] sm:$0xff]
      %v372 = vunpack.c.l.b16 %v253
      %v373 = vunpack.c.h.b16 %v253
      %v374 = vunpack.c.l.b16 %v254
      %v375 = vunpack.c.l.b16 %v329
      %v376 = vunpack.c.h.b16 %v329
      %v377 = vunpack.c.l.b16 %v330
      %v378 = vpack.c.b16 %v375, %v372
      %v379 = vpack.c.b16 %v376, %v373
      %v380 = vpack.c.b16 %v377, %v374
      %v382 = vshrl.u32 %v378, 16
      %v384 = vshll.u32 %v378, 16
      %v386 = vrot.slane %v384, 1
      %v387 = vor.u32 %v382, %v386
      %v389 = vshrl.u32 %v379, 16
      %v391 = vshll.u32 %v379, 16
      %v393 = vrot.slane %v391, 1
      %v394 = vor.u32 %v389, %v393
      %v396 = vshrl.u32 %v380, 16
      %v398 = vshll.u32 %v380, 16
      %v400 = vrot.slane %v398, 1
      %v401 = vor.u32 %v396, %v400
      %v440 = vunpack.c.l.b16 %v332
      %v441 = vunpack.c.h.b16 %v332
      %v442 = vunpack.c.l.b16 %v333
      %v443 = vunpack.c.h.b16 %v333
      %v444 = vunpack.c.l.b16 %v334
      %v445 = vunpack.c.h.b16 %v334
      %v446 = vunpack.c.l.b16 %v335
      %v447 = vunpack.c.h.b16 %v335
      %v448 = vunpack.c.l.b16 %v336
      %v449 = vunpack.c.h.b16 %v336
      %v450 = vunpack.c.l.b16 %v337
      %v451 = vunpack.c.h.b16 %v337
      %v452 = vunpack.c.l.b16 %v338
      %v453 = vunpack.c.h.b16 %v338
      %v454 = vunpack.c.l.b16 %v339
      %v455 = vunpack.c.h.b16 %v339
      %v456 = vunpack.c.l.b16 %v340
      %v457 = vunpack.c.h.b16 %v340
      %v458 = vunpack.c.l.b16 %v341
      %v459 = vunpack.c.h.b16 %v341
      %v460 = vunpack.c.l.b16 %v342
      %v461 = vunpack.c.h.b16 %v342
      %v462 = vunpack.c.l.b16 %v343
      %v463 = vunpack.c.h.b16 %v343
      %v464 = vunpack.c.l.b16 %v344
      %v465 = vunpack.c.h.b16 %v344
      %v466 = vunpack.c.l.b16 %v345
      %v467 = vunpack.c.h.b16 %v345
      %v468 = vunpack.c.l.b16 %v346
      %v469 = vunpack.c.h.b16 %v346
      %v470 = vunpack.c.l.b16 %v347
      %v471 = vunpack.c.h.b16 %v347
      %v472 = vunpack.c.l.b16 %v348
      %v473 = vunpack.c.h.b16 %v348
      %v474 = vunpack.c.l.b16 %v349
      %v475 = vunpack.c.h.b16 %v349
      %v476 = vunpack.c.l.b16 %v350
      %v477 = vunpack.c.h.b16 %v350
      %v478 = vunpack.c.l.b16 %v351
      %v479 = vunpack.c.h.b16 %v351
      %v480 = vunpack.c.l.b16 %v352
      %v481 = vunpack.c.h.b16 %v352
      %v482 = vunpack.c.l.b16 %v353
      %v483 = vunpack.c.h.b16 %v353
      %v484 = vunpack.c.l.b16 %v354
      %v485 = vunpack.c.h.b16 %v354
      %v486 = vunpack.c.l.b16 %v355
      %v487 = vunpack.c.h.b16 %v355
      %v488 = vunpack.c.l.b16 %v356
      %v489 = vunpack.c.h.b16 %v356
      %v490 = vunpack.c.l.b16 %v357
      %v491 = vunpack.c.h.b16 %v357
      %v492 = vunpack.c.l.b16 %v358
      %v493 = vunpack.c.h.b16 %v358
      %v494 = vunpack.c.l.b16 %v359
      %v495 = vunpack.c.h.b16 %v359
      %v496 = vunpack.c.l.b16 %v360
      %v497 = vunpack.c.h.b16 %v360
      %v498 = vunpack.c.l.b16 %v361
      %v499 = vunpack.c.h.b16 %v361
      %v500 = vunpack.c.l.b16 %v362
      %v501 = vunpack.c.h.b16 %v362
      %v502 = vunpack.c.l.b16 %v363
      %v503 = vunpack.c.h.b16 %v363
      %v504 = vunpack.c.l.b16 %v364
      %v505 = vunpack.c.h.b16 %v364
      %v506 = vunpack.c.l.b16 %v365
      %v507 = vunpack.c.h.b16 %v365
      %v508 = vunpack.c.l.b16 %v366
      %v509 = vunpack.c.h.b16 %v366
      %v510 = vunpack.c.l.b16 %v367
      %v511 = vunpack.c.h.b16 %v367
      %v512 = vpack.c.b16 %v442, %v440
      %v513 = vpack.c.b16 %v443, %v441
      %v514 = vpack.c.b16 %v446, %v444
      %v515 = vpack.c.b16 %v447, %v445
      %v516 = vpack.c.b16 %v450, %v448
      %v517 = vpack.c.b16 %v451, %v449
      %v518 = vpack.c.b16 %v454, %v452
      %v519 = vpack.c.b16 %v455, %v453
      %v520 = vpack.c.b16 %v458, %v456
      %v521 = vpack.c.b16 %v459, %v457
      %v522 = vpack.c.b16 %v462, %v460
      %v523 = vpack.c.b16 %v463, %v461
      %v524 = vpack.c.b16 %v466, %v464
      %v525 = vpack.c.b16 %v467, %v465
      %v526 = vpack.c.b16 %v470, %v468
      %v527 = vpack.c.b16 %v471, %v469
      %v528 = vpack.c.b16 %v474, %v472
      %v529 = vpack.c.b16 %v475, %v473
      %v530 = vpack.c.b16 %v478, %v476
      %v531 = vpack.c.b16 %v479, %v477
      %v532 = vpack.c.b16 %v482, %v480
      %v533 = vpack.c.b16 %v483, %v481
      %v534 = vpack.c.b16 %v486, %v484
      %v535 = vpack.c.b16 %v487, %v485
      %v536 = vpack.c.b16 %v490, %v488
      %v537 = vpack.c.b16 %v491, %v489
      %v538 = vpack.c.b16 %v494, %v492
      %v539 = vpack.c.b16 %v495, %v493
      %v540 = vpack.c.b16 %v498, %v496
      %v541 = vpack.c.b16 %v499, %v497
      %v542 = vpack.c.b16 %v502, %v500
      %v543 = vpack.c.b16 %v503, %v501
      %v544 = vpack.c.b16 %v506, %v504
      %v545 = vpack.c.b16 %v507, %v505
      %v546 = vpack.c.b16 %v510, %v508
      %v547 = vpack.c.b16 %v511, %v509
      %vm584 = vcmask 261120
      %v586 = vsel %vm584, %v401, 0
      %588 = vmatprep.subr.bf16.mxu0 %v513
      %589 = vmatpush1.bf16.msra.mxu0 %v512
      %590 = vmatprep.subr.bf16.mxu0 %v515
      %591 = vmatpush1.bf16.msra.mxu0 %v514
      %592 = vmatprep.subr.bf16.mxu0 %v517
      %593 = vmatpush1.bf16.msra.mxu0 %v516
      %594 = vmatprep.subr.bf16.mxu0 %v519
      %595 = vmatpush1.bf16.msra.mxu0 %v518
      %596 = vmatprep.subr.bf16.mxu0 %v521
      %597 = vmatpush1.bf16.msra.mxu0 %v520
      %598 = vmatprep.subr.bf16.mxu0 %v523
      %599 = vmatpush1.bf16.msra.mxu0 %v522
      %600 = vmatprep.subr.bf16.mxu0 %v525
      %601 = vmatpush1.bf16.msra.mxu0 %v524
      %602 = vmatprep.subr.bf16.mxu0 %v527
      %603 = vmatpush1.bf16.msra.mxu0 %v526
      %604 = vmatprep.subr.bf16.mxu0 %v529
      %605 = vmatpush1.bf16.msra.mxu0 %v528
      %606 = vmatprep.subr.bf16.mxu0 %v531
      %607 = vmatpush1.bf16.msra.mxu0 %v530
      %608 = vmatprep.subr.bf16.mxu0 %v533
      %609 = vmatpush1.bf16.msra.mxu0 %v532
      %610 = vmatprep.subr.bf16.mxu0 %v535
      %611 = vmatpush1.bf16.msra.mxu0 %v534
      %612 = vmatprep.subr.bf16.mxu0 %v537
      %613 = vmatpush1.bf16.msra.mxu0 %v536
      %614 = vmatprep.subr.bf16.mxu0 %v539
      %615 = vmatpush1.bf16.msra.mxu0 %v538
      %616 = vmatprep.subr.bf16.mxu0 %v541
      %617 = vmatpush1.bf16.msra.mxu0 %v540
      %618 = vmatprep.subr.bf16.mxu0 %v543
      %619 = vmatpush1.bf16.msra.mxu0 %v542
      %620 = vmatprep.mubr.bf16.mxu0 %v394
      %621 = vmatmul.mubr.bf16.gmra.mrb[0].mxu0 %v387
      %v622 = vpop.f32.mrb[0].mxu0
      %v623 = vadd.f32 0.0, %v622
      %v624 = vpop.f32.mrb[0].mxu0
      %v625 = vadd.f32 0.0, %v624
      %v626 = vpop.f32.mrb[0].mxu0
      %v627 = vadd.f32 0.0, %v626
      %v628 = vpop.f32.mrb[0].mxu0
      %v629 = vadd.f32 0.0, %v628
      %630 = vdwg.mxu0
      %631 = vmatprep.subr.bf16.mxu0 %v545
      %632 = vmatpush1.bf16.msra.mxu0 %v544
      %633 = vmatprep.subr.bf16.mxu0 %v547
      %634 = vmatpush1.bf16.msra.mxu0 %v546
      %635 = vmatprep.subr.bf16.mxu0 0
      %636 = vmatpush1.bf16.msra.mxu0 0
      %637 = vmatprep.subr.bf16.mxu0 0
      %638 = vmatpush1.bf16.msra.mxu0 0
      %639 = vmatprep.subr.bf16.mxu0 0
      %640 = vmatpush1.bf16.msra.mxu0 0
      %641 = vmatprep.subr.bf16.mxu0 0
      %642 = vmatpush1.bf16.msra.mxu0 0
      %643 = vmatprep.subr.bf16.mxu0 0
      %644 = vmatpush1.bf16.msra.mxu0 0
      %645 = vmatprep.subr.bf16.mxu0 0
      %646 = vmatpush1.bf16.msra.mxu0 0
      %647 = vmatprep.subr.bf16.mxu0 0
      %648 = vmatpush1.bf16.msra.mxu0 0
      %649 = vmatprep.subr.bf16.mxu0 0
      %650 = vmatpush1.bf16.msra.mxu0 0
      %651 = vmatprep.subr.bf16.mxu0 0
      %652 = vmatpush1.bf16.msra.mxu0 0
      %653 = vmatprep.subr.bf16.mxu0 0
      %654 = vmatpush1.bf16.msra.mxu0 0
      %655 = vmatprep.subr.bf16.mxu0 0
      %656 = vmatpush1.bf16.msra.mxu0 0
      %657 = vmatprep.subr.bf16.mxu0 0
      %658 = vmatpush1.bf16.msra.mxu0 0
      %659 = vmatprep.subr.bf16.mxu0 0
      %660 = vmatpush1.bf16.msra.mxu0 0
      %661 = vmatprep.subr.bf16.mxu0 0
      %662 = vmatpush1.bf16.msra.mxu0 0
      %663 = vmatprep.mubr.bf16.mxu0 0
      %664 = vmatmul.mubr.bf16.gmra.mrb[0].mxu0 %v586
      %v665 = vpop.f32.mrb[0].mxu0
      %v666 = vadd.f32 %v623, %v665
      %v667 = vpop.f32.mrb[0].mxu0
      %v668 = vadd.f32 %v625, %v667
      %v669 = vpop.f32.mrb[0].mxu0
      %v670 = vadd.f32 %v627, %v669
      %v671 = vpop.f32.mrb[0].mxu0
      %v672 = vadd.f32 %v629, %v671
      %673 = vdwg.mxu0
      %v676 = vunpack.c.l.b16 %v255
      %v677 = vunpack.c.h.b16 %v255
      %v678 = vunpack.c.l.b16 %v256
      %v679 = vpack.c.b16 %v676, %v372
      %v680 = vpack.c.b16 %v677, %v373
      %v681 = vpack.c.b16 %v678, %v374
      %v720 = vunpack.c.l.b16 %v257
      %v721 = vunpack.c.h.b16 %v257
      %v722 = vunpack.c.l.b16 %v258
      %v723 = vunpack.c.h.b16 %v258
      %v724 = vunpack.c.l.b16 %v259
      %v725 = vunpack.c.h.b16 %v259
      %v726 = vunpack.c.l.b16 %v260
      %v727 = vunpack.c.h.b16 %v260
      %v728 = vunpack.c.l.b16 %v261
      %v729 = vunpack.c.h.b16 %v261
      %v730 = vunpack.c.l.b16 %v262
      %v731 = vunpack.c.h.b16 %v262
      %v732 = vunpack.c.l.b16 %v263
      %v733 = vunpack.c.h.b16 %v263
      %v734 = vunpack.c.l.b16 %v264
      %v735 = vunpack.c.h.b16 %v264
      %v736 = vunpack.c.l.b16 %v265
      %v737 = vunpack.c.h.b16 %v265
      %v738 = vunpack.c.l.b16 %v266
      %v739 = vunpack.c.h.b16 %v266
      %v740 = vunpack.c.l.b16 %v267
      %v741 = vunpack.c.h.b16 %v267
      %v742 = vunpack.c.l.b16 %v268
      %v743 = vunpack.c.h.b16 %v268
      %v744 = vunpack.c.l.b16 %v269
      %v745 = vunpack.c.h.b16 %v269
      %v746 = vunpack.c.l.b16 %v270
      %v747 = vunpack.c.h.b16 %v270
      %v748 = vunpack.c.l.b16 %v271
      %v749 = vunpack.c.h.b16 %v271
      %v750 = vunpack.c.l.b16 %v272
      %v751 = vunpack.c.h.b16 %v272
      %v752 = vunpack.c.l.b16 %v273
      %v753 = vunpack.c.h.b16 %v273
      %v754 = vunpack.c.l.b16 %v274
      %v755 = vunpack.c.h.b16 %v274
      %v756 = vunpack.c.l.b16 %v275
      %v757 = vunpack.c.h.b16 %v275
      %v758 = vunpack.c.l.b16 %v276
      %v759 = vunpack.c.h.b16 %v276
      %v760 = vunpack.c.l.b16 %v277
      %v761 = vunpack.c.h.b16 %v277
      %v762 = vunpack.c.l.b16 %v278
      %v763 = vunpack.c.h.b16 %v278
      %v764 = vunpack.c.l.b16 %v279
      %v765 = vunpack.c.h.b16 %v279
      %v766 = vunpack.c.l.b16 %v280
      %v767 = vunpack.c.h.b16 %v280
      %v768 = vunpack.c.l.b16 %v281
      %v769 = vunpack.c.h.b16 %v281
      %v770 = vunpack.c.l.b16 %v282
      %v771 = vunpack.c.h.b16 %v282
      %v772 = vunpack.c.l.b16 %v283
      %v773 = vunpack.c.h.b16 %v283
      %v774 = vunpack.c.l.b16 %v284
      %v775 = vunpack.c.h.b16 %v284
      %v776 = vunpack.c.l.b16 %v285
      %v777 = vunpack.c.h.b16 %v285
      %v778 = vunpack.c.l.b16 %v286
      %v779 = vunpack.c.h.b16 %v286
      %v780 = vunpack.c.l.b16 %v287
      %v781 = vunpack.c.h.b16 %v287
      %v782 = vunpack.c.l.b16 %v288
      %v783 = vunpack.c.h.b16 %v288
      %v784 = vunpack.c.l.b16 %v289
      %v785 = vunpack.c.h.b16 %v289
      %v786 = vunpack.c.l.b16 %v290
      %v787 = vunpack.c.h.b16 %v290
      %v788 = vunpack.c.l.b16 %v291
      %v789 = vunpack.c.h.b16 %v291
      %v790 = vunpack.c.l.b16 %v292
      %v791 = vunpack.c.h.b16 %v292
      %v792 = vpack.c.b16 %v722, %v720
      %v793 = vpack.c.b16 %v723, %v721
      %v794 = vpack.c.b16 %v726, %v724
      %v795 = vpack.c.b16 %v727, %v725
      %v796 = vpack.c.b16 %v730, %v728
      %v797 = vpack.c.b16 %v731, %v729
      %v798 = vpack.c.b16 %v734, %v732
      %v799 = vpack.c.b16 %v735, %v733
      %v800 = vpack.c.b16 %v738, %v736
      %v801 = vpack.c.b16 %v739, %v737
      %v802 = vpack.c.b16 %v742, %v740
      %v803 = vpack.c.b16 %v743, %v741
      %v804 = vpack.c.b16 %v746, %v744
      %v805 = vpack.c.b16 %v747, %v745
      %v806 = vpack.c.b16 %v750, %v748
      %v807 = vpack.c.b16 %v751, %v749
      %v808 = vpack.c.b16 %v754, %v752
      %v809 = vpack.c.b16 %v755, %v753
      %v810 = vpack.c.b16 %v758, %v756
      %v811 = vpack.c.b16 %v759, %v757
      %v812 = vpack.c.b16 %v762, %v760
      %v813 = vpack.c.b16 %v763, %v761
      %v814 = vpack.c.b16 %v766, %v764
      %v815 = vpack.c.b16 %v767, %v765
      %v816 = vpack.c.b16 %v770, %v768
      %v817 = vpack.c.b16 %v771, %v769
      %v818 = vpack.c.b16 %v774, %v772
      %v819 = vpack.c.b16 %v775, %v773
      %v820 = vpack.c.b16 %v778, %v776
      %v821 = vpack.c.b16 %v779, %v777
      %v822 = vpack.c.b16 %v782, %v780
      %v823 = vpack.c.b16 %v783, %v781
      %v824 = vpack.c.b16 %v786, %v784
      %v825 = vpack.c.b16 %v787, %v785
      %v826 = vpack.c.b16 %v790, %v788
      %v827 = vpack.c.b16 %v791, %v789
      %v865 = vsel %vm584, %v681, 0
      %867 = vmatprep.subr.bf16.mxu0 %v793
      %868 = vmatpush1.bf16.msra.mxu0 %v792
      %869 = vmatprep.subr.bf16.mxu0 %v795
      %870 = vmatpush1.bf16.msra.mxu0 %v794
      %871 = vmatprep.subr.bf16.mxu0 %v797
      %872 = vmatpush1.bf16.msra.mxu0 %v796
      %873 = vmatprep.subr.bf16.mxu0 %v799
      %874 = vmatpush1.bf16.msra.mxu0 %v798
      %875 = vmatprep.subr.bf16.mxu0 %v801
      %876 = vmatpush1.bf16.msra.mxu0 %v800
      %877 = vmatprep.subr.bf16.mxu0 %v803
      %878 = vmatpush1.bf16.msra.mxu0 %v802
      %879 = vmatprep.subr.bf16.mxu0 %v805
      %880 = vmatpush1.bf16.msra.mxu0 %v804
      %881 = vmatprep.subr.bf16.mxu0 %v807
      %882 = vmatpush1.bf16.msra.mxu0 %v806
      %883 = vmatprep.subr.bf16.mxu0 %v809
      %884 = vmatpush1.bf16.msra.mxu0 %v808
      %885 = vmatprep.subr.bf16.mxu0 %v811
      %886 = vmatpush1.bf16.msra.mxu0 %v810
      %887 = vmatprep.subr.bf16.mxu0 %v813
      %888 = vmatpush1.bf16.msra.mxu0 %v812
      %889 = vmatprep.subr.bf16.mxu0 %v815
      %890 = vmatpush1.bf16.msra.mxu0 %v814
      %891 = vmatprep.subr.bf16.mxu0 %v817
      %892 = vmatpush1.bf16.msra.mxu0 %v816
      %893 = vmatprep.subr.bf16.mxu0 %v819
      %894 = vmatpush1.bf16.msra.mxu0 %v818
      %895 = vmatprep.subr.bf16.mxu0 %v821
      %896 = vmatpush1.bf16.msra.mxu0 %v820
      %897 = vmatprep.subr.bf16.mxu0 %v823
      %898 = vmatpush1.bf16.msra.mxu0 %v822
      %899 = vmatprep.mubr.bf16.mxu0 %v680
      %900 = vmatmul.mubr.bf16.gmra.mrb[0].mxu0 %v679
      %v901 = vpop.f32.mrb[0].mxu0
      %v902 = vadd.f32 %v666, %v901
      %v903 = vpop.f32.mrb[0].mxu0
      %v904 = vadd.f32 %v668, %v903
      %v905 = vpop.f32.mrb[0].mxu0
      %v906 = vadd.f32 %v670, %v905
      %v907 = vpop.f32.mrb[0].mxu0
      %v908 = vadd.f32 %v672, %v907
      %909 = vdwg.mxu0
      %910 = vmatprep.subr.bf16.mxu0 %v825
      %911 = vmatpush1.bf16.msra.mxu0 %v824
      %912 = vmatprep.subr.bf16.mxu0 %v827
      %913 = vmatpush1.bf16.msra.mxu0 %v826
      %914 = vmatprep.subr.bf16.mxu0 0
      %915 = vmatpush1.bf16.msra.mxu0 0
      %916 = vmatprep.subr.bf16.mxu0 0
      %917 = vmatpush1.bf16.msra.mxu0 0
      %918 = vmatprep.subr.bf16.mxu0 0
      %919 = vmatpush1.bf16.msra.mxu0 0
      %920 = vmatprep.subr.bf16.mxu0 0
      %921 = vmatpush1.bf16.msra.mxu0 0
      %922 = vmatprep.subr.bf16.mxu0 0
      %923 = vmatpush1.bf16.msra.mxu0 0
      %924 = vmatprep.subr.bf16.mxu0 0
      %925 = vmatpush1.bf16.msra.mxu0 0
      %926 = vmatprep.subr.bf16.mxu0 0
      %927 = vmatpush1.bf16.msra.mxu0 0
      %928 = vmatprep.subr.bf16.mxu0 0
      %929 = vmatpush1.bf16.msra.mxu0 0
      %930 = vmatprep.subr.bf16.mxu0 0
      %931 = vmatpush1.bf16.msra.mxu0 0
      %932 = vmatprep.subr.bf16.mxu0 0
      %933 = vmatpush1.bf16.msra.mxu0 0
      %934 = vmatprep.subr.bf16.mxu0 0
      %935 = vmatpush1.bf16.msra.mxu0 0
      %936 = vmatprep.subr.bf16.mxu0 0
      %937 = vmatpush1.bf16.msra.mxu0 0
      %938 = vmatprep.subr.bf16.mxu0 0
      %939 = vmatpush1.bf16.msra.mxu0 0
      %940 = vmatprep.subr.bf16.mxu0 0
      %941 = vmatpush1.bf16.msra.mxu0 0
      %942 = vmatprep.mubr.bf16.mxu0 0
      %943 = vmatmul.mubr.bf16.gmra.mrb[0].mxu0 %v865
      %v944 = vpop.f32.mrb[0].mxu0
      %v945 = vadd.f32 %v902, %v944
      %v946 = vpop.f32.mrb[0].mxu0
      %v947 = vadd.f32 %v904, %v946
      %v948 = vpop.f32.mrb[0].mxu0
      %v949 = vadd.f32 %v906, %v948
      %v950 = vpop.f32.mrb[0].mxu0
      %v951 = vadd.f32 %v908, %v950
      %952 = vdwg.mxu0
      %s953 = scalar_lea.vmem %s2, 288
      %v954 = vld [vmem:[%s953] sm:$0xff]
      %v955 = vld [vmem:[%s953 + $0x8] sm:$0xff]
      %v956 = vld [vmem:[%s953 + $0x10] sm:$0xff]
      %v957 = vld [vmem:[%s953 + $0x18] sm:$0xff]
      %v958 = vld [vmem:[%s953 + $0x20] sm:$0xff]
      %v959 = vld [vmem:[%s953 + $0x28] sm:$0xff]
      %v960 = vld [vmem:[%s953 + $0x30] sm:$0xff]
      %v961 = vld [vmem:[%s953 + $0x38] sm:$0xff]
      %v962 = vld [vmem:[%s953 + $0x40] sm:$0xff]
      %v963 = vld [vmem:[%s953 + $0x48] sm:$0xff]
      %v964 = vld [vmem:[%s953 + $0x50] sm:$0xff]
      %v965 = vld [vmem:[%s953 + $0x58] sm:$0xff]
      %v966 = vld [vmem:[%s953 + $0x60] sm:$0xff]
      %v967 = vld [vmem:[%s953 + $0x68] sm:$0xff]
      %v968 = vld [vmem:[%s953 + $0x70] sm:$0xff]
      %v969 = vld [vmem:[%s953 + $0x78] sm:$0xff]
      %v970 = vld [vmem:[%s953 + $0x80] sm:$0xff]
      %v971 = vld [vmem:[%s953 + $0x88] sm:$0xff]
      %v972 = vld [vmem:[%s953 + $0x90] sm:$0xff]
      %v973 = vld [vmem:[%s953 + $0x98] sm:$0xff]
      %v974 = vld [vmem:[%s953 + $0xa0] sm:$0xff]
      %v975 = vld [vmem:[%s953 + $0xa8] sm:$0xff]
      %v976 = vld [vmem:[%s953 + $0xb0] sm:$0xff]
      %v977 = vld [vmem:[%s953 + $0xb8] sm:$0xff]
      %v978 = vld [vmem:[%s953 + $0xc0] sm:$0xff]
      %v979 = vld [vmem:[%s953 + $0xc8] sm:$0xff]
      %v980 = vld [vmem:[%s953 + $0xd0] sm:$0xff]
      %v981 = vld [vmem:[%s953 + $0xd8] sm:$0xff]
      %v982 = vld [vmem:[%s953 + $0xe0] sm:$0xff]
      %v983 = vld [vmem:[%s953 + $0xe8] sm:$0xff]
      %v984 = vld [vmem:[%s953 + $0xf0] sm:$0xff]
      %v985 = vld [vmem:[%s953 + $0xf8] sm:$0xff]
      %v986 = vld [vmem:[%s953 + $0x100] sm:$0xff]
      %v987 = vld [vmem:[%s953 + $0x108] sm:$0xff]
      %v988 = vld [vmem:[%s953 + $0x110] sm:$0xff]
      %v989 = vld [vmem:[%s953 + $0x118] sm:$0xff]
      %v1026 = vunpack.c.l.b16 %v954
      %v1027 = vunpack.c.h.b16 %v954
      %v1028 = vunpack.c.l.b16 %v955
      %v1029 = vunpack.c.h.b16 %v955
      %v1030 = vunpack.c.l.b16 %v956
      %v1031 = vunpack.c.h.b16 %v956
      %v1032 = vunpack.c.l.b16 %v957
      %v1033 = vunpack.c.h.b16 %v957
      %v1034 = vunpack.c.l.b16 %v958
      %v1035 = vunpack.c.h.b16 %v958
      %v1036 = vunpack.c.l.b16 %v959
      %v1037 = vunpack.c.h.b16 %v959
      %v1038 = vunpack.c.l.b16 %v960
      %v1039 = vunpack.c.h.b16 %v960
      %v1040 = vunpack.c.l.b16 %v961
      %v1041 = vunpack.c.h.b16 %v961
      %v1042 = vunpack.c.l.b16 %v962
      %v1043 = vunpack.c.h.b16 %v962
      %v1044 = vunpack.c.l.b16 %v963
      %v1045 = vunpack.c.h.b16 %v963
      %v1046 = vunpack.c.l.b16 %v964
      %v1047 = vunpack.c.h.b16 %v964
      %v1048 = vunpack.c.l.b16 %v965
      %v1049 = vunpack.c.h.b16 %v965
      %v1050 = vunpack.c.l.b16 %v966
      %v1051 = vunpack.c.h.b16 %v966
      %v1052 = vunpack.c.l.b16 %v967
      %v1053 = vunpack.c.h.b16 %v967
      %v1054 = vunpack.c.l.b16 %v968
      %v1055 = vunpack.c.h.b16 %v968
      %v1056 = vunpack.c.l.b16 %v969
      %v1057 = vunpack.c.h.b16 %v969
      %v1058 = vunpack.c.l.b16 %v970
      %v1059 = vunpack.c.h.b16 %v970
      %v1060 = vunpack.c.l.b16 %v971
      %v1061 = vunpack.c.h.b16 %v971
      %v1062 = vunpack.c.l.b16 %v972
      %v1063 = vunpack.c.h.b16 %v972
      %v1064 = vunpack.c.l.b16 %v973
      %v1065 = vunpack.c.h.b16 %v973
      %v1066 = vunpack.c.l.b16 %v974
      %v1067 = vunpack.c.h.b16 %v974
      %v1068 = vunpack.c.l.b16 %v975
      %v1069 = vunpack.c.h.b16 %v975
      %v1070 = vunpack.c.l.b16 %v976
      %v1071 = vunpack.c.h.b16 %v976
      %v1072 = vunpack.c.l.b16 %v977
      %v1073 = vunpack.c.h.b16 %v977
      %v1074 = vunpack.c.l.b16 %v978
      %v1075 = vunpack.c.h.b16 %v978
      %v1076 = vunpack.c.l.b16 %v979
      %v1077 = vunpack.c.h.b16 %v979
      %v1078 = vunpack.c.l.b16 %v980
      %v1079 = vunpack.c.h.b16 %v980
      %v1080 = vunpack.c.l.b16 %v981
      %v1081 = vunpack.c.h.b16 %v981
      %v1082 = vunpack.c.l.b16 %v982
      %v1083 = vunpack.c.h.b16 %v982
      %v1084 = vunpack.c.l.b16 %v983
      %v1085 = vunpack.c.h.b16 %v983
      %v1086 = vunpack.c.l.b16 %v984
      %v1087 = vunpack.c.h.b16 %v984
      %v1088 = vunpack.c.l.b16 %v985
      %v1089 = vunpack.c.h.b16 %v985
      %v1090 = vunpack.c.l.b16 %v986
      %v1091 = vunpack.c.h.b16 %v986
      %v1092 = vunpack.c.l.b16 %v987
      %v1093 = vunpack.c.h.b16 %v987
      %v1094 = vunpack.c.l.b16 %v988
      %v1095 = vunpack.c.h.b16 %v988
      %v1096 = vunpack.c.l.b16 %v989
      %v1097 = vunpack.c.h.b16 %v989
      %v1098 = vpack.c.b16 %v1028, %v1026
      %v1099 = vpack.c.b16 %v1029, %v1027
      %v1100 = vpack.c.b16 %v1032, %v1030
      %v1101 = vpack.c.b16 %v1033, %v1031
      %v1102 = vpack.c.b16 %v1036, %v1034
      %v1103 = vpack.c.b16 %v1037, %v1035
      %v1104 = vpack.c.b16 %v1040, %v1038
      %v1105 = vpack.c.b16 %v1041, %v1039
      %v1106 = vpack.c.b16 %v1044, %v1042
      %v1107 = vpack.c.b16 %v1045, %v1043
      %v1108 = vpack.c.b16 %v1048, %v1046
      %v1109 = vpack.c.b16 %v1049, %v1047
      %v1110 = vpack.c.b16 %v1052, %v1050
      %v1111 = vpack.c.b16 %v1053, %v1051
      %v1112 = vpack.c.b16 %v1056, %v1054
      %v1113 = vpack.c.b16 %v1057, %v1055
      %v1114 = vpack.c.b16 %v1060, %v1058
      %v1115 = vpack.c.b16 %v1061, %v1059
      %v1116 = vpack.c.b16 %v1064, %v1062
      %v1117 = vpack.c.b16 %v1065, %v1063
      %v1118 = vpack.c.b16 %v1068, %v1066
      %v1119 = vpack.c.b16 %v1069, %v1067
      %v1120 = vpack.c.b16 %v1072, %v1070
      %v1121 = vpack.c.b16 %v1073, %v1071
      %v1122 = vpack.c.b16 %v1076, %v1074
      %v1123 = vpack.c.b16 %v1077, %v1075
      %v1124 = vpack.c.b16 %v1080, %v1078
      %v1125 = vpack.c.b16 %v1081, %v1079
      %v1126 = vpack.c.b16 %v1084, %v1082
      %v1127 = vpack.c.b16 %v1085, %v1083
      %v1128 = vpack.c.b16 %v1088, %v1086
      %v1129 = vpack.c.b16 %v1089, %v1087
      %v1130 = vpack.c.b16 %v1092, %v1090
      %v1131 = vpack.c.b16 %v1093, %v1091
      %v1132 = vpack.c.b16 %v1096, %v1094
      %v1133 = vpack.c.b16 %v1097, %v1095
      %1170 = vmatprep.subr.bf16.mxu0 %v1099
      %1171 = vmatpush1.bf16.msra.mxu0 %v1098
      %1172 = vmatprep.subr.bf16.mxu0 %v1101
      %1173 = vmatpush1.bf16.msra.mxu0 %v1100
      %1174 = vmatprep.subr.bf16.mxu0 %v1103
      %1175 = vmatpush1.bf16.msra.mxu0 %v1102
      %1176 = vmatprep.subr.bf16.mxu0 %v1105
      %1177 = vmatpush1.bf16.msra.mxu0 %v1104
      %1178 = vmatprep.subr.bf16.mxu0 %v1107
      %1179 = vmatpush1.bf16.msra.mxu0 %v1106
      %1180 = vmatprep.subr.bf16.mxu0 %v1109
      %1181 = vmatpush1.bf16.msra.mxu0 %v1108
      %1182 = vmatprep.subr.bf16.mxu0 %v1111
      %1183 = vmatpush1.bf16.msra.mxu0 %v1110
      %1184 = vmatprep.subr.bf16.mxu0 %v1113
      %1185 = vmatpush1.bf16.msra.mxu0 %v1112
      %1186 = vmatprep.subr.bf16.mxu0 %v1115
      %1187 = vmatpush1.bf16.msra.mxu0 %v1114
      %1188 = vmatprep.subr.bf16.mxu0 %v1117
      %1189 = vmatpush1.bf16.msra.mxu0 %v1116
      %1190 = vmatprep.subr.bf16.mxu0 %v1119
      %1191 = vmatpush1.bf16.msra.mxu0 %v1118
      %1192 = vmatprep.subr.bf16.mxu0 %v1121
      %1193 = vmatpush1.bf16.msra.mxu0 %v1120
      %1194 = vmatprep.subr.bf16.mxu0 %v1123
      %1195 = vmatpush1.bf16.msra.mxu0 %v1122
      %1196 = vmatprep.subr.bf16.mxu0 %v1125
      %1197 = vmatpush1.bf16.msra.mxu0 %v1124
      %1198 = vmatprep.subr.bf16.mxu0 %v1127
      %1199 = vmatpush1.bf16.msra.mxu0 %v1126
      %1200 = vmatprep.subr.bf16.mxu0 %v1129
      %1201 = vmatpush1.bf16.msra.mxu0 %v1128
      %1202 = vmatprep.mubr.bf16.mxu0 %v394
      %1203 = vmatmul.mubr.bf16.gmra.mrb[0].mxu0 %v387
      %v1204 = vpop.f32.mrb[0].mxu0
      %v1205 = vadd.f32 0.0, %v1204
      %v1206 = vpop.f32.mrb[0].mxu0
      %v1207 = vadd.f32 0.0, %v1206
      %v1208 = vpop.f32.mrb[0].mxu0
      %v1209 = vadd.f32 0.0, %v1208
      %v1210 = vpop.f32.mrb[0].mxu0
      %v1211 = vadd.f32 0.0, %v1210
      %1212 = vdwg.mxu0
      %1213 = vmatprep.subr.bf16.mxu0 %v1131
      %1214 = vmatpush1.bf16.msra.mxu0 %v1130
      %1215 = vmatprep.subr.bf16.mxu0 %v1133
      %1216 = vmatpush1.bf16.msra.mxu0 %v1132
      %1217 = vmatprep.subr.bf16.mxu0 0
      %1218 = vmatpush1.bf16.msra.mxu0 0
      %1219 = vmatprep.subr.bf16.mxu0 0
      %1220 = vmatpush1.bf16.msra.mxu0 0
      %1221 = vmatprep.subr.bf16.mxu0 0
      %1222 = vmatpush1.bf16.msra.mxu0 0
      %1223 = vmatprep.subr.bf16.mxu0 0
      %1224 = vmatpush1.bf16.msra.mxu0 0
      %1225 = vmatprep.subr.bf16.mxu0 0
      %1226 = vmatpush1.bf16.msra.mxu0 0
      %1227 = vmatprep.subr.bf16.mxu0 0
      %1228 = vmatpush1.bf16.msra.mxu0 0
      %1229 = vmatprep.subr.bf16.mxu0 0
      %1230 = vmatpush1.bf16.msra.mxu0 0
      %1231 = vmatprep.subr.bf16.mxu0 0
      %1232 = vmatpush1.bf16.msra.mxu0 0
      %1233 = vmatprep.subr.bf16.mxu0 0
      %1234 = vmatpush1.bf16.msra.mxu0 0
      %1235 = vmatprep.subr.bf16.mxu0 0
      %1236 = vmatpush1.bf16.msra.mxu0 0
      %1237 = vmatprep.subr.bf16.mxu0 0
      %1238 = vmatpush1.bf16.msra.mxu0 0
      %1239 = vmatprep.subr.bf16.mxu0 0
      %1240 = vmatpush1.bf16.msra.mxu0 0
      %1241 = vmatprep.subr.bf16.mxu0 0
      %1242 = vmatpush1.bf16.msra.mxu0 0
      %1243 = vmatprep.subr.bf16.mxu0 0
      %1244 = vmatpush1.bf16.msra.mxu0 0
      %1245 = vmatprep.mubr.bf16.mxu0 0
      %1246 = vmatmul.mubr.bf16.gmra.mrb[0].mxu0 %v586
      %v1247 = vpop.f32.mrb[0].mxu0
      %v1248 = vadd.f32 %v1205, %v1247
      %v1249 = vpop.f32.mrb[0].mxu0
      %v1250 = vadd.f32 %v1207, %v1249
      %v1251 = vpop.f32.mrb[0].mxu0
      %v1252 = vadd.f32 %v1209, %v1251
      %v1253 = vpop.f32.mrb[0].mxu0
      %v1254 = vadd.f32 %v1211, %v1253
      %1255 = vdwg.mxu0
      %v1292 = vunpack.c.l.b16 %v293
      %v1293 = vunpack.c.h.b16 %v293
      %v1294 = vunpack.c.l.b16 %v294
      %v1295 = vunpack.c.h.b16 %v294
      %v1296 = vunpack.c.l.b16 %v295
      %v1297 = vunpack.c.h.b16 %v295
      %v1298 = vunpack.c.l.b16 %v296
      %v1299 = vunpack.c.h.b16 %v296
      %v1300 = vunpack.c.l.b16 %v297
      %v1301 = vunpack.c.h.b16 %v297
      %v1302 = vunpack.c.l.b16 %v298
      %v1303 = vunpack.c.h.b16 %v298
      %v1304 = vunpack.c.l.b16 %v299
      %v1305 = vunpack.c.h.b16 %v299
      %v1306 = vunpack.c.l.b16 %v300
      %v1307 = vunpack.c.h.b16 %v300
      %v1308 = vunpack.c.l.b16 %v301
      %v1309 = vunpack.c.h.b16 %v301
      %v1310 = vunpack.c.l.b16 %v302
      %v1311 = vunpack.c.h.b16 %v302
      %v1312 = vunpack.c.l.b16 %v303
      %v1313 = vunpack.c.h.b16 %v303
      %v1314 = vunpack.c.l.b16 %v304
      %v1315 = vunpack.c.h.b16 %v304
      %v1316 = vunpack.c.l.b16 %v305
      %v1317 = vunpack.c.h.b16 %v305
      %v1318 = vunpack.c.l.b16 %v306
      %v1319 = vunpack.c.h.b16 %v306
      %v1320 = vunpack.c.l.b16 %v307
      %v1321 = vunpack.c.h.b16 %v307
      %v1322 = vunpack.c.l.b16 %v308
      %v1323 = vunpack.c.h.b16 %v308
      %v1324 = vunpack.c.l.b16 %v309
      %v1325 = vunpack.c.h.b16 %v309
      %v1326 = vunpack.c.l.b16 %v310
      %v1327 = vunpack.c.h.b16 %v310
      %v1328 = vunpack.c.l.b16 %v311
      %v1329 = vunpack.c.h.b16 %v311
      %v1330 = vunpack.c.l.b16 %v312
      %v1331 = vunpack.c.h.b16 %v312
      %v1332 = vunpack.c.l.b16 %v313
      %v1333 = vunpack.c.h.b16 %v313
      %v1334 = vunpack.c.l.b16 %v314
      %v1335 = vunpack.c.h.b16 %v314
      %v1336 = vunpack.c.l.b16 %v315
      %v1337 = vunpack.c.h.b16 %v315
      %v1338 = vunpack.c.l.b16 %v316
      %v1339 = vunpack.c.h.b16 %v316
      %v1340 = vunpack.c.l.b16 %v317
      %v1341 = vunpack.c.h.b16 %v317
      %v1342 = vunpack.c.l.b16 %v318
      %v1343 = vunpack.c.h.b16 %v318
      %v1344 = vunpack.c.l.b16 %v319
      %v1345 = vunpack.c.h.b16 %v319
      %v1346 = vunpack.c.l.b16 %v320
      %v1347 = vunpack.c.h.b16 %v320
      %v1348 = vunpack.c.l.b16 %v321
      %v1349 = vunpack.c.h.b16 %v321
      %v1350 = vunpack.c.l.b16 %v322
      %v1351 = vunpack.c.h.b16 %v322
      %v1352 = vunpack.c.l.b16 %v323
      %v1353 = vunpack.c.h.b16 %v323
      %v1354 = vunpack.c.l.b16 %v324
      %v1355 = vunpack.c.h.b16 %v324
      %v1356 = vunpack.c.l.b16 %v325
      %v1357 = vunpack.c.h.b16 %v325
      %v1358 = vunpack.c.l.b16 %v326
      %v1359 = vunpack.c.h.b16 %v326
      %v1360 = vunpack.c.l.b16 %v327
      %v1361 = vunpack.c.h.b16 %v327
      %v1362 = vunpack.c.l.b16 %v328
      %v1363 = vunpack.c.h.b16 %v328
      %v1364 = vpack.c.b16 %v1294, %v1292
      %v1365 = vpack.c.b16 %v1295, %v1293
      %v1366 = vpack.c.b16 %v1298, %v1296
      %v1367 = vpack.c.b16 %v1299, %v1297
      %v1368 = vpack.c.b16 %v1302, %v1300
      %v1369 = vpack.c.b16 %v1303, %v1301
      %v1370 = vpack.c.b16 %v1306, %v1304
      %v1371 = vpack.c.b16 %v1307, %v1305
      %v1372 = vpack.c.b16 %v1310, %v1308
      %v1373 = vpack.c.b16 %v1311, %v1309
      %v1374 = vpack.c.b16 %v1314, %v1312
      %v1375 = vpack.c.b16 %v1315, %v1313
      %v1376 = vpack.c.b16 %v1318, %v1316
      %v1377 = vpack.c.b16 %v1319, %v1317
      %v1378 = vpack.c.b16 %v1322, %v1320
      %v1379 = vpack.c.b16 %v1323, %v1321
      %v1380 = vpack.c.b16 %v1326, %v1324
      %v1381 = vpack.c.b16 %v1327, %v1325
      %v1382 = vpack.c.b16 %v1330, %v1328
      %v1383 = vpack.c.b16 %v1331, %v1329
      %v1384 = vpack.c.b16 %v1334, %v1332
      %v1385 = vpack.c.b16 %v1335, %v1333
      %v1386 = vpack.c.b16 %v1338, %v1336
      %v1387 = vpack.c.b16 %v1339, %v1337
      %v1388 = vpack.c.b16 %v1342, %v1340
      %v1389 = vpack.c.b16 %v1343, %v1341
      %v1390 = vpack.c.b16 %v1346, %v1344
      %v1391 = vpack.c.b16 %v1347, %v1345
      %v1392 = vpack.c.b16 %v1350, %v1348
      %v1393 = vpack.c.b16 %v1351, %v1349
      %v1394 = vpack.c.b16 %v1354, %v1352
      %v1395 = vpack.c.b16 %v1355, %v1353
      %v1396 = vpack.c.b16 %v1358, %v1356
      %v1397 = vpack.c.b16 %v1359, %v1357
      %v1398 = vpack.c.b16 %v1362, %v1360
      %v1399 = vpack.c.b16 %v1363, %v1361
      %1436 = vmatprep.subr.bf16.mxu0 %v1365
      %1437 = vmatpush1.bf16.msra.mxu0 %v1364
      %1438 = vmatprep.subr.bf16.mxu0 %v1367
      %1439 = vmatpush1.bf16.msra.mxu0 %v1366
      %1440 = vmatprep.subr.bf16.mxu0 %v1369
      %1441 = vmatpush1.bf16.msra.mxu0 %v1368
      %1442 = vmatprep.subr.bf16.mxu0 %v1371
      %1443 = vmatpush1.bf16.msra.mxu0 %v1370
      %1444 = vmatprep.subr.bf16.mxu0 %v1373
      %1445 = vmatpush1.bf16.msra.mxu0 %v1372
      %1446 = vmatprep.subr.bf16.mxu0 %v1375
      %1447 = vmatpush1.bf16.msra.mxu0 %v1374
      %1448 = vmatprep.subr.bf16.mxu0 %v1377
      %1449 = vmatpush1.bf16.msra.mxu0 %v1376
      %1450 = vmatprep.subr.bf16.mxu0 %v1379
      %1451 = vmatpush1.bf16.msra.mxu0 %v1378
      %1452 = vmatprep.subr.bf16.mxu0 %v1381
      %1453 = vmatpush1.bf16.msra.mxu0 %v1380
      %1454 = vmatprep.subr.bf16.mxu0 %v1383
      %1455 = vmatpush1.bf16.msra.mxu0 %v1382
      %1456 = vmatprep.subr.bf16.mxu0 %v1385
      %1457 = vmatpush1.bf16.msra.mxu0 %v1384
      %1458 = vmatprep.subr.bf16.mxu0 %v1387
      %1459 = vmatpush1.bf16.msra.mxu0 %v1386
      %1460 = vmatprep.subr.bf16.mxu0 %v1389
      %1461 = vmatpush1.bf16.msra.mxu0 %v1388
      %1462 = vmatprep.subr.bf16.mxu0 %v1391
      %1463 = vmatpush1.bf16.msra.mxu0 %v1390
      %1464 = vmatprep.subr.bf16.mxu0 %v1393
      %1465 = vmatpush1.bf16.msra.mxu0 %v1392
      %1466 = vmatprep.subr.bf16.mxu0 %v1395
      %1467 = vmatpush1.bf16.msra.mxu0 %v1394
      %1468 = vmatprep.mubr.bf16.mxu0 %v680
      %1469 = vmatmul.mubr.bf16.gmra.mrb[0].mxu0 %v679
      %v1470 = vpop.f32.mrb[0].mxu0
      %v1471 = vadd.f32 %v1248, %v1470
      %v1472 = vpop.f32.mrb[0].mxu0
      %v1473 = vadd.f32 %v1250, %v1472
      %v1474 = vpop.f32.mrb[0].mxu0
      %v1475 = vadd.f32 %v1252, %v1474
      %v1476 = vpop.f32.mrb[0].mxu0
      %v1477 = vadd.f32 %v1254, %v1476
      %1478 = vdwg.mxu0
      %1479 = vmatprep.subr.bf16.mxu0 %v1397
      %1480 = vmatpush1.bf16.msra.mxu0 %v1396
      %1481 = vmatprep.subr.bf16.mxu0 %v1399
      %1482 = vmatpush1.bf16.msra.mxu0 %v1398
      %1483 = vmatprep.subr.bf16.mxu0 0
      %1484 = vmatpush1.bf16.msra.mxu0 0
      %1485 = vmatprep.subr.bf16.mxu0 0
      %1486 = vmatpush1.bf16.msra.mxu0 0
      %1487 = vmatprep.subr.bf16.mxu0 0
      %1488 = vmatpush1.bf16.msra.mxu0 0
      %1489 = vmatprep.subr.bf16.mxu0 0
      %1490 = vmatpush1.bf16.msra.mxu0 0
      %1491 = vmatprep.subr.bf16.mxu0 0
      %1492 = vmatpush1.bf16.msra.mxu0 0
      %1493 = vmatprep.subr.bf16.mxu0 0
      %1494 = vmatpush1.bf16.msra.mxu0 0
      %1495 = vmatprep.subr.bf16.mxu0 0
      %1496 = vmatpush1.bf16.msra.mxu0 0
      %1497 = vmatprep.subr.bf16.mxu0 0
      %1498 = vmatpush1.bf16.msra.mxu0 0
      %1499 = vmatprep.subr.bf16.mxu0 0
      %1500 = vmatpush1.bf16.msra.mxu0 0
      %1501 = vmatprep.subr.bf16.mxu0 0
      %1502 = vmatpush1.bf16.msra.mxu0 0
      %1503 = vmatprep.subr.bf16.mxu0 0
      %1504 = vmatpush1.bf16.msra.mxu0 0
      %1505 = vmatprep.subr.bf16.mxu0 0
      %1506 = vmatpush1.bf16.msra.mxu0 0
      %1507 = vmatprep.subr.bf16.mxu0 0
      %1508 = vmatpush1.bf16.msra.mxu0 0
      %1509 = vmatprep.subr.bf16.mxu0 0
      %1510 = vmatpush1.bf16.msra.mxu0 0
      %1511 = vmatprep.mubr.bf16.mxu0 0
      %1512 = vmatmul.mubr.bf16.gmra.mrb[0].mxu0 %v865
      %v1513 = vpop.f32.mrb[0].mxu0
      %v1514 = vadd.f32 %v1471, %v1513
      %v1515 = vpop.f32.mrb[0].mxu0
      %v1516 = vadd.f32 %v1473, %v1515
      %v1517 = vpop.f32.mrb[0].mxu0
      %v1518 = vadd.f32 %v1475, %v1517
      %v1519 = vpop.f32.mrb[0].mxu0
      %v1520 = vadd.f32 %v1477, %v1519
      %1521 = vdwg.mxu0
      %v1522 = vld [vmem:[%s246] sm:$0xee]
      %v1523 = vld [vmem:[%s246 + $0x8] sm:$0xe]
      %s1524 = scalar_lea.vmem %s1, 576
      %v1525 = vld [vmem:[%s1524] sm:$0xff]
      %v1526 = vld [vmem:[%s1524 + $0x8] sm:$0xff]
      %v1527 = vld [vmem:[%s1524 + $0x10] sm:$0xff]
      %v1528 = vld [vmem:[%s1524 + $0x18] sm:$0xff]
      %v1529 = vld [vmem:[%s1524 + $0x20] sm:$0xff]
      %v1530 = vld [vmem:[%s1524 + $0x28] sm:$0xff]
      %v1531 = vld [vmem:[%s1524 + $0x30] sm:$0xff]
      %v1532 = vld [vmem:[%s1524 + $0x38] sm:$0xff]
      %v1533 = vld [vmem:[%s1524 + $0x40] sm:$0xff]
      %v1534 = vld [vmem:[%s1524 + $0x48] sm:$0xff]
      %v1535 = vld [vmem:[%s1524 + $0x50] sm:$0xff]
      %v1536 = vld [vmem:[%s1524 + $0x58] sm:$0xff]
      %v1537 = vld [vmem:[%s1524 + $0x60] sm:$0xff]
      %v1538 = vld [vmem:[%s1524 + $0x68] sm:$0xff]
      %v1539 = vld [vmem:[%s1524 + $0x70] sm:$0xff]
      %v1540 = vld [vmem:[%s1524 + $0x78] sm:$0xff]
      %v1541 = vld [vmem:[%s1524 + $0x80] sm:$0xff]
      %v1542 = vld [vmem:[%s1524 + $0x88] sm:$0xff]
      %v1543 = vld [vmem:[%s1524 + $0x90] sm:$0xff]
      %v1544 = vld [vmem:[%s1524 + $0x98] sm:$0xff]
      %v1545 = vld [vmem:[%s1524 + $0xa0] sm:$0xff]
      %v1546 = vld [vmem:[%s1524 + $0xa8] sm:$0xff]
      %v1547 = vld [vmem:[%s1524 + $0xb0] sm:$0xff]
      %v1548 = vld [vmem:[%s1524 + $0xb8] sm:$0xff]
      %v1549 = vld [vmem:[%s1524 + $0xc0] sm:$0xff]
      %v1550 = vld [vmem:[%s1524 + $0xc8] sm:$0xff]
      %v1551 = vld [vmem:[%s1524 + $0xd0] sm:$0xff]
      %v1552 = vld [vmem:[%s1524 + $0xd8] sm:$0xff]
      %v1553 = vld [vmem:[%s1524 + $0xe0] sm:$0xff]
      %v1554 = vld [vmem:[%s1524 + $0xe8] sm:$0xff]
      %v1555 = vld [vmem:[%s1524 + $0xf0] sm:$0xff]
      %v1556 = vld [vmem:[%s1524 + $0xf8] sm:$0xff]
      %v1557 = vld [vmem:[%s1524 + $0x100] sm:$0xff]
      %v1558 = vld [vmem:[%s1524 + $0x108] sm:$0xff]
      %v1559 = vld [vmem:[%s1524 + $0x110] sm:$0xff]
      %v1560 = vld [vmem:[%s1524 + $0x118] sm:$0xff]
      %v1563 = vunpack.c.l.b16 %v1522
      %v1564 = vunpack.c.h.b16 %v1522
      %v1565 = vunpack.c.l.b16 %v1523
      %v1566 = vpack.c.b16 %v375, %v1563
      %v1567 = vpack.c.b16 %v376, %v1564
      %v1568 = vpack.c.b16 %v377, %v1565
      %v1569 = vrot.slane %v1566, 1
      %v1570 = vrot.slane %v1567, 1
      %v1571 = vrot.slane %v1568, 1
      %v1610 = vunpack.c.l.b16 %v1525
      %v1611 = vunpack.c.h.b16 %v1525
      %v1612 = vunpack.c.l.b16 %v1526
      %v1613 = vunpack.c.h.b16 %v1526
      %v1614 = vunpack.c.l.b16 %v1527
      %v1615 = vunpack.c.h.b16 %v1527
      %v1616 = vunpack.c.l.b16 %v1528
      %v1617 = vunpack.c.h.b16 %v1528
      %v1618 = vunpack.c.l.b16 %v1529
      %v1619 = vunpack.c.h.b16 %v1529
      %v1620 = vunpack.c.l.b16 %v1530
      %v1621 = vunpack.c.h.b16 %v1530
      %v1622 = vunpack.c.l.b16 %v1531
      %v1623 = vunpack.c.h.b16 %v1531
      %v1624 = vunpack.c.l.b16 %v1532
      %v1625 = vunpack.c.h.b16 %v1532
      %v1626 = vunpack.c.l.b16 %v1533
      %v1627 = vunpack.c.h.b16 %v1533
      %v1628 = vunpack.c.l.b16 %v1534
      %v1629 = vunpack.c.h.b16 %v1534
      %v1630 = vunpack.c.l.b16 %v1535
      %v1631 = vunpack.c.h.b16 %v1535
      %v1632 = vunpack.c.l.b16 %v1536
      %v1633 = vunpack.c.h.b16 %v1536
      %v1634 = vunpack.c.l.b16 %v1537
      %v1635 = vunpack.c.h.b16 %v1537
      %v1636 = vunpack.c.l.b16 %v1538
      %v1637 = vunpack.c.h.b16 %v1538
      %v1638 = vunpack.c.l.b16 %v1539
      %v1639 = vunpack.c.h.b16 %v1539
      %v1640 = vunpack.c.l.b16 %v1540
      %v1641 = vunpack.c.h.b16 %v1540
      %v1642 = vunpack.c.l.b16 %v1541
      %v1643 = vunpack.c.h.b16 %v1541
      %v1644 = vunpack.c.l.b16 %v1542
      %v1645 = vunpack.c.h.b16 %v1542
      %v1646 = vunpack.c.l.b16 %v1543
      %v1647 = vunpack.c.h.b16 %v1543
      %v1648 = vunpack.c.l.b16 %v1544
      %v1649 = vunpack.c.h.b16 %v1544
      %v1650 = vunpack.c.l.b16 %v1545
      %v1651 = vunpack.c.h.b16 %v1545
      %v1652 = vunpack.c.l.b16 %v1546
      %v1653 = vunpack.c.h.b16 %v1546
      %v1654 = vunpack.c.l.b16 %v1547
      %v1655 = vunpack.c.h.b16 %v1547
      %v1656 = vunpack.c.l.b16 %v1548
      %v1657 = vunpack.c.h.b16 %v1548
      %v1658 = vunpack.c.l.b16 %v1549
      %v1659 = vunpack.c.h.b16 %v1549
      %v1660 = vunpack.c.l.b16 %v1550
      %v1661 = vunpack.c.h.b16 %v1550
      %v1662 = vunpack.c.l.b16 %v1551
      %v1663 = vunpack.c.h.b16 %v1551
      %v1664 = vunpack.c.l.b16 %v1552
      %v1665 = vunpack.c.h.b16 %v1552
      %v1666 = vunpack.c.l.b16 %v1553
      %v1667 = vunpack.c.h.b16 %v1553
      %v1668 = vunpack.c.l.b16 %v1554
      %v1669 = vunpack.c.h.b16 %v1554
      %v1670 = vunpack.c.l.b16 %v1555
      %v1671 = vunpack.c.h.b16 %v1555
      %v1672 = vunpack.c.l.b16 %v1556
      %v1673 = vunpack.c.h.b16 %v1556
      %v1674 = vunpack.c.l.b16 %v1557
      %v1675 = vunpack.c.h.b16 %v1557
      %v1676 = vunpack.c.l.b16 %v1558
      %v1677 = vunpack.c.h.b16 %v1558
      %v1678 = vunpack.c.l.b16 %v1559
      %v1679 = vunpack.c.h.b16 %v1559
      %v1680 = vunpack.c.l.b16 %v1560
      %v1681 = vunpack.c.h.b16 %v1560
      %v1682 = vpack.c.b16 %v1612, %v1610
      %v1683 = vpack.c.b16 %v1613, %v1611
      %v1684 = vpack.c.b16 %v1616, %v1614
      %v1685 = vpack.c.b16 %v1617, %v1615
      %v1686 = vpack.c.b16 %v1620, %v1618
      %v1687 = vpack.c.b16 %v1621, %v1619
      %v1688 = vpack.c.b16 %v1624, %v1622
      %v1689 = vpack.c.b16 %v1625, %v1623
      %v1690 = vpack.c.b16 %v1628, %v1626
      %v1691 = vpack.c.b16 %v1629, %v1627
      %v1692 = vpack.c.b16 %v1632, %v1630
      %v1693 = vpack.c.b16 %v1633, %v1631
      %v1694 = vpack.c.b16 %v1636, %v1634
      %v1695 = vpack.c.b16 %v1637, %v1635
      %v1696 = vpack.c.b16 %v1640, %v1638
      %v1697 = vpack.c.b16 %v1641, %v1639
      %v1698 = vpack.c.b16 %v1644, %v1642
      %v1699 = vpack.c.b16 %v1645, %v1643
      %v1700 = vpack.c.b16 %v1648, %v1646
      %v1701 = vpack.c.b16 %v1649, %v1647
      %v1702 = vpack.c.b16 %v1652, %v1650
      %v1703 = vpack.c.b16 %v1653, %v1651
      %v1704 = vpack.c.b16 %v1656, %v1654
      %v1705 = vpack.c.b16 %v1657, %v1655
      %v1706 = vpack.c.b16 %v1660, %v1658
      %v1707 = vpack.c.b16 %v1661, %v1659
      %v1708 = vpack.c.b16 %v1664, %v1662
      %v1709 = vpack.c.b16 %v1665, %v1663
      %v1710 = vpack.c.b16 %v1668, %v1666
      %v1711 = vpack.c.b16 %v1669, %v1667
      %v1712 = vpack.c.b16 %v1672, %v1670
      %v1713 = vpack.c.b16 %v1673, %v1671
      %v1714 = vpack.c.b16 %v1676, %v1674
      %v1715 = vpack.c.b16 %v1677, %v1675
      %v1716 = vpack.c.b16 %v1680, %v1678
      %v1717 = vpack.c.b16 %v1681, %v1679
      %v1755 = vsel %vm584, %v1571, 0
      %1757 = vmatprep.subr.bf16.mxu0 %v1683
      %1758 = vmatpush1.bf16.msra.mxu0 %v1682
      %1759 = vmatprep.subr.bf16.mxu0 %v1685
      %1760 = vmatpush1.bf16.msra.mxu0 %v1684
      %1761 = vmatprep.subr.bf16.mxu0 %v1687
      %1762 = vmatpush1.bf16.msra.mxu0 %v1686
      %1763 = vmatprep.subr.bf16.mxu0 %v1689
      %1764 = vmatpush1.bf16.msra.mxu0 %v1688
      %1765 = vmatprep.subr.bf16.mxu0 %v1691
      %1766 = vmatpush1.bf16.msra.mxu0 %v1690
      %1767 = vmatprep.subr.bf16.mxu0 %v1693
      %1768 = vmatpush1.bf16.msra.mxu0 %v1692
      %1769 = vmatprep.subr.bf16.mxu0 %v1695
      %1770 = vmatpush1.bf16.msra.mxu0 %v1694
      %1771 = vmatprep.subr.bf16.mxu0 %v1697
      %1772 = vmatpush1.bf16.msra.mxu0 %v1696
      %1773 = vmatprep.subr.bf16.mxu0 %v1699
      %1774 = vmatpush1.bf16.msra.mxu0 %v1698
      %1775 = vmatprep.subr.bf16.mxu0 %v1701
      %1776 = vmatpush1.bf16.msra.mxu0 %v1700
      %1777 = vmatprep.subr.bf16.mxu0 %v1703
      %1778 = vmatpush1.bf16.msra.mxu0 %v1702
      %1779 = vmatprep.subr.bf16.mxu0 %v1705
      %1780 = vmatpush1.bf16.msra.mxu0 %v1704
      %1781 = vmatprep.subr.bf16.mxu0 %v1707
      %1782 = vmatpush1.bf16.msra.mxu0 %v1706
      %1783 = vmatprep.subr.bf16.mxu0 %v1709
      %1784 = vmatpush1.bf16.msra.mxu0 %v1708
      %1785 = vmatprep.subr.bf16.mxu0 %v1711
      %1786 = vmatpush1.bf16.msra.mxu0 %v1710
      %1787 = vmatprep.subr.bf16.mxu0 %v1713
      %1788 = vmatpush1.bf16.msra.mxu0 %v1712
      %1789 = vmatprep.mubr.bf16.mxu0 %v1570
      %1790 = vmatmul.mubr.bf16.gmra.mrb[0].mxu0 %v1569
      %v1791 = vpop.f32.mrb[0].mxu0
      %v1792 = vadd.f32 0.0, %v1791
      %v1793 = vpop.f32.mrb[0].mxu0
      %v1794 = vadd.f32 0.0, %v1793
      %v1795 = vpop.f32.mrb[0].mxu0
      %v1796 = vadd.f32 0.0, %v1795
      %v1797 = vpop.f32.mrb[0].mxu0
      %v1798 = vadd.f32 0.0, %v1797
      %1799 = vdwg.mxu0
      %1800 = vmatprep.subr.bf16.mxu0 %v1715
      %1801 = vmatpush1.bf16.msra.mxu0 %v1714
      %1802 = vmatprep.subr.bf16.mxu0 %v1717
      %1803 = vmatpush1.bf16.msra.mxu0 %v1716
      %1804 = vmatprep.subr.bf16.mxu0 0
      %1805 = vmatpush1.bf16.msra.mxu0 0
      %1806 = vmatprep.subr.bf16.mxu0 0
      %1807 = vmatpush1.bf16.msra.mxu0 0
      %1808 = vmatprep.subr.bf16.mxu0 0
      %1809 = vmatpush1.bf16.msra.mxu0 0
      %1810 = vmatprep.subr.bf16.mxu0 0
      %1811 = vmatpush1.bf16.msra.mxu0 0
      %1812 = vmatprep.subr.bf16.mxu0 0
      %1813 = vmatpush1.bf16.msra.mxu0 0
      %1814 = vmatprep.subr.bf16.mxu0 0
      %1815 = vmatpush1.bf16.msra.mxu0 0
      %1816 = vmatprep.subr.bf16.mxu0 0
      %1817 = vmatpush1.bf16.msra.mxu0 0
      %1818 = vmatprep.subr.bf16.mxu0 0
      %1819 = vmatpush1.bf16.msra.mxu0 0
      %1820 = vmatprep.subr.bf16.mxu0 0
      %1821 = vmatpush1.bf16.msra.mxu0 0
      %1822 = vmatprep.subr.bf16.mxu0 0
      %1823 = vmatpush1.bf16.msra.mxu0 0
      %1824 = vmatprep.subr.bf16.mxu0 0
      %1825 = vmatpush1.bf16.msra.mxu0 0
      %1826 = vmatprep.subr.bf16.mxu0 0
      %1827 = vmatpush1.bf16.msra.mxu0 0
      %1828 = vmatprep.subr.bf16.mxu0 0
      %1829 = vmatpush1.bf16.msra.mxu0 0
      %1830 = vmatprep.subr.bf16.mxu0 0
      %1831 = vmatpush1.bf16.msra.mxu0 0
      %1832 = vmatprep.mubr.bf16.mxu0 0
      %1833 = vmatmul.mubr.bf16.gmra.mrb[0].mxu0 %v1755
      %v1834 = vpop.f32.mrb[0].mxu0
      %v1835 = vadd.f32 %v1792, %v1834
      %v1836 = vpop.f32.mrb[0].mxu0
      %v1837 = vadd.f32 %v1794, %v1836
      %v1838 = vpop.f32.mrb[0].mxu0
      %v1839 = vadd.f32 %v1796, %v1838
      %v1840 = vpop.f32.mrb[0].mxu0
      %v1841 = vadd.f32 %v1798, %v1840
      %1842 = vdwg.mxu0
      %v1843 = vadd.f32 %v945, %v1835
      %v1844 = vadd.f32 %v947, %v1837
      %v1845 = vadd.f32 %v949, %v1839
      %v1846 = vadd.f32 %v951, %v1841
      %s1847 = scalar_lea.vmem %s2, 576
      %v1848 = vld [vmem:[%s1847] sm:$0xff]
      %v1849 = vld [vmem:[%s1847 + $0x8] sm:$0xff]
      %v1850 = vld [vmem:[%s1847 + $0x10] sm:$0xff]
      %v1851 = vld [vmem:[%s1847 + $0x18] sm:$0xff]
      %v1852 = vld [vmem:[%s1847 + $0x20] sm:$0xff]
      %v1853 = vld [vmem:[%s1847 + $0x28] sm:$0xff]
      %v1854 = vld [vmem:[%s1847 + $0x30] sm:$0xff]
      %v1855 = vld [vmem:[%s1847 + $0x38] sm:$0xff]
      %v1856 = vld [vmem:[%s1847 + $0x40] sm:$0xff]
      %v1857 = vld [vmem:[%s1847 + $0x48] sm:$0xff]
      %v1858 = vld [vmem:[%s1847 + $0x50] sm:$0xff]
      %v1859 = vld [vmem:[%s1847 + $0x58] sm:$0xff]
      %v1860 = vld [vmem:[%s1847 + $0x60] sm:$0xff]
      %v1861 = vld [vmem:[%s1847 + $0x68] sm:$0xff]
      %v1862 = vld [vmem:[%s1847 + $0x70] sm:$0xff]
      %v1863 = vld [vmem:[%s1847 + $0x78] sm:$0xff]
      %v1864 = vld [vmem:[%s1847 + $0x80] sm:$0xff]
      %v1865 = vld [vmem:[%s1847 + $0x88] sm:$0xff]
      %v1866 = vld [vmem:[%s1847 + $0x90] sm:$0xff]
      %v1867 = vld [vmem:[%s1847 + $0x98] sm:$0xff]
      %v1868 = vld [vmem:[%s1847 + $0xa0] sm:$0xff]
      %v1869 = vld [vmem:[%s1847 + $0xa8] sm:$0xff]
      %v1870 = vld [vmem:[%s1847 + $0xb0] sm:$0xff]
      %v1871 = vld [vmem:[%s1847 + $0xb8] sm:$0xff]
      %v1872 = vld [vmem:[%s1847 + $0xc0] sm:$0xff]
      %v1873 = vld [vmem:[%s1847 + $0xc8] sm:$0xff]
      %v1874 = vld [vmem:[%s1847 + $0xd0] sm:$0xff]
      %v1875 = vld [vmem:[%s1847 + $0xd8] sm:$0xff]
      %v1876 = vld [vmem:[%s1847 + $0xe0] sm:$0xff]
      %v1877 = vld [vmem:[%s1847 + $0xe8] sm:$0xff]
      %v1878 = vld [vmem:[%s1847 + $0xf0] sm:$0xff]
      %v1879 = vld [vmem:[%s1847 + $0xf8] sm:$0xff]
      %v1880 = vld [vmem:[%s1847 + $0x100] sm:$0xff]
      %v1881 = vld [vmem:[%s1847 + $0x108] sm:$0xff]
      %v1882 = vld [vmem:[%s1847 + $0x110] sm:$0xff]
      %v1883 = vld [vmem:[%s1847 + $0x118] sm:$0xff]
      %v1920 = vunpack.c.l.b16 %v1848
      %v1921 = vunpack.c.h.b16 %v1848
      %v1922 = vunpack.c.l.b16 %v1849
      %v1923 = vunpack.c.h.b16 %v1849
      %v1924 = vunpack.c.l.b16 %v1850
      %v1925 = vunpack.c.h.b16 %v1850
      %v1926 = vunpack.c.l.b16 %v1851
      %v1927 = vunpack.c.h.b16 %v1851
      %v1928 = vunpack.c.l.b16 %v1852
      %v1929 = vunpack.c.h.b16 %v1852
      %v1930 = vunpack.c.l.b16 %v1853
      %v1931 = vunpack.c.h.b16 %v1853
      %v1932 = vunpack.c.l.b16 %v1854
      %v1933 = vunpack.c.h.b16 %v1854
      %v1934 = vunpack.c.l.b16 %v1855
      %v1935 = vunpack.c.h.b16 %v1855
      %v1936 = vunpack.c.l.b16 %v1856
      %v1937 = vunpack.c.h.b16 %v1856
      %v1938 = vunpack.c.l.b16 %v1857
      %v1939 = vunpack.c.h.b16 %v1857
      %v1940 = vunpack.c.l.b16 %v1858
      %v1941 = vunpack.c.h.b16 %v1858
      %v1942 = vunpack.c.l.b16 %v1859
      %v1943 = vunpack.c.h.b16 %v1859
      %v1944 = vunpack.c.l.b16 %v1860
      %v1945 = vunpack.c.h.b16 %v1860
      %v1946 = vunpack.c.l.b16 %v1861
      %v1947 = vunpack.c.h.b16 %v1861
      %v1948 = vunpack.c.l.b16 %v1862
      %v1949 = vunpack.c.h.b16 %v1862
      %v1950 = vunpack.c.l.b16 %v1863
      %v1951 = vunpack.c.h.b16 %v1863
      %v1952 = vunpack.c.l.b16 %v1864
      %v1953 = vunpack.c.h.b16 %v1864
      %v1954 = vunpack.c.l.b16 %v1865
      %v1955 = vunpack.c.h.b16 %v1865
      %v1956 = vunpack.c.l.b16 %v1866
      %v1957 = vunpack.c.h.b16 %v1866
      %v1958 = vunpack.c.l.b16 %v1867
      %v1959 = vunpack.c.h.b16 %v1867
      %v1960 = vunpack.c.l.b16 %v1868
      %v1961 = vunpack.c.h.b16 %v1868
      %v1962 = vunpack.c.l.b16 %v1869
      %v1963 = vunpack.c.h.b16 %v1869
      %v1964 = vunpack.c.l.b16 %v1870
      %v1965 = vunpack.c.h.b16 %v1870
      %v1966 = vunpack.c.l.b16 %v1871
      %v1967 = vunpack.c.h.b16 %v1871
      %v1968 = vunpack.c.l.b16 %v1872
      %v1969 = vunpack.c.h.b16 %v1872
      %v1970 = vunpack.c.l.b16 %v1873
      %v1971 = vunpack.c.h.b16 %v1873
      %v1972 = vunpack.c.l.b16 %v1874
      %v1973 = vunpack.c.h.b16 %v1874
      %v1974 = vunpack.c.l.b16 %v1875
      %v1975 = vunpack.c.h.b16 %v1875
      %v1976 = vunpack.c.l.b16 %v1876
      %v1977 = vunpack.c.h.b16 %v1876
      %v1978 = vunpack.c.l.b16 %v1877
      %v1979 = vunpack.c.h.b16 %v1877
      %v1980 = vunpack.c.l.b16 %v1878
      %v1981 = vunpack.c.h.b16 %v1878
      %v1982 = vunpack.c.l.b16 %v1879
      %v1983 = vunpack.c.h.b16 %v1879
      %v1984 = vunpack.c.l.b16 %v1880
      %v1985 = vunpack.c.h.b16 %v1880
      %v1986 = vunpack.c.l.b16 %v1881
      %v1987 = vunpack.c.h.b16 %v1881
      %v1988 = vunpack.c.l.b16 %v1882
      %v1989 = vunpack.c.h.b16 %v1882
      %v1990 = vunpack.c.l.b16 %v1883
      %v1991 = vunpack.c.h.b16 %v1883
      %v1992 = vpack.c.b16 %v1922, %v1920
      %v1993 = vpack.c.b16 %v1923, %v1921
      %v1994 = vpack.c.b16 %v1926, %v1924
      %v1995 = vpack.c.b16 %v1927, %v1925
      %v1996 = vpack.c.b16 %v1930, %v1928
      %v1997 = vpack.c.b16 %v1931, %v1929
      %v1998 = vpack.c.b16 %v1934, %v1932
      %v1999 = vpack.c.b16 %v1935, %v1933
      %v2000 = vpack.c.b16 %v1938, %v1936
      %v2001 = vpack.c.b16 %v1939, %v1937
      %v2002 = vpack.c.b16 %v1942, %v1940
      %v2003 = vpack.c.b16 %v1943, %v1941
      %v2004 = vpack.c.b16 %v1946, %v1944
      %v2005 = vpack.c.b16 %v1947, %v1945
      %v2006 = vpack.c.b16 %v1950, %v1948
      %v2007 = vpack.c.b16 %v1951, %v1949
      %v2008 = vpack.c.b16 %v1954, %v1952
      %v2009 = vpack.c.b16 %v1955, %v1953
      %v2010 = vpack.c.b16 %v1958, %v1956
      %v2011 = vpack.c.b16 %v1959, %v1957
      %v2012 = vpack.c.b16 %v1962, %v1960
      %v2013 = vpack.c.b16 %v1963, %v1961
      %v2014 = vpack.c.b16 %v1966, %v1964
      %v2015 = vpack.c.b16 %v1967, %v1965
      %v2016 = vpack.c.b16 %v1970, %v1968
      %v2017 = vpack.c.b16 %v1971, %v1969
      %v2018 = vpack.c.b16 %v1974, %v1972
      %v2019 = vpack.c.b16 %v1975, %v1973
      %v2020 = vpack.c.b16 %v1978, %v1976
      %v2021 = vpack.c.b16 %v1979, %v1977
      %v2022 = vpack.c.b16 %v1982, %v1980
      %v2023 = vpack.c.b16 %v1983, %v1981
      %v2024 = vpack.c.b16 %v1986, %v1984
      %v2025 = vpack.c.b16 %v1987, %v1985
      %v2026 = vpack.c.b16 %v1990, %v1988
      %v2027 = vpack.c.b16 %v1991, %v1989
      %2064 = vmatprep.subr.bf16.mxu0 %v1993
      %2065 = vmatpush1.bf16.msra.mxu0 %v1992
      %2066 = vmatprep.subr.bf16.mxu0 %v1995
      %2067 = vmatpush1.bf16.msra.mxu0 %v1994
      %2068 = vmatprep.subr.bf16.mxu0 %v1997
      %2069 = vmatpush1.bf16.msra.mxu0 %v1996
      %2070 = vmatprep.subr.bf16.mxu0 %v1999
      %2071 = vmatpush1.bf16.msra.mxu0 %v1998
      %2072 = vmatprep.subr.bf16.mxu0 %v2001
      %2073 = vmatpush1.bf16.msra.mxu0 %v2000
      %2074 = vmatprep.subr.bf16.mxu0 %v2003
      %2075 = vmatpush1.bf16.msra.mxu0 %v2002
      %2076 = vmatprep.subr.bf16.mxu0 %v2005
      %2077 = vmatpush1.bf16.msra.mxu0 %v2004
      %2078 = vmatprep.subr.bf16.mxu0 %v2007
      %2079 = vmatpush1.bf16.msra.mxu0 %v2006
      %2080 = vmatprep.subr.bf16.mxu0 %v2009
      %2081 = vmatpush1.bf16.msra.mxu0 %v2008
      %2082 = vmatprep.subr.bf16.mxu0 %v2011
      %2083 = vmatpush1.bf16.msra.mxu0 %v2010
      %2084 = vmatprep.subr.bf16.mxu0 %v2013
      %2085 = vmatpush1.bf16.msra.mxu0 %v2012
      %2086 = vmatprep.subr.bf16.mxu0 %v2015
      %2087 = vmatpush1.bf16.msra.mxu0 %v2014
      %2088 = vmatprep.subr.bf16.mxu0 %v2017
      %2089 = vmatpush1.bf16.msra.mxu0 %v2016
      %2090 = vmatprep.subr.bf16.mxu0 %v2019
      %2091 = vmatpush1.bf16.msra.mxu0 %v2018
      %2092 = vmatprep.subr.bf16.mxu0 %v2021
      %2093 = vmatpush1.bf16.msra.mxu0 %v2020
      %2094 = vmatprep.subr.bf16.mxu0 %v2023
      %2095 = vmatpush1.bf16.msra.mxu0 %v2022
      %2096 = vmatprep.mubr.bf16.mxu0 %v1570
      %2097 = vmatmul.mubr.bf16.gmra.mrb[0].mxu0 %v1569
      %v2098 = vpop.f32.mrb[0].mxu0
      %v2099 = vadd.f32 0.0, %v2098
      %v2100 = vpop.f32.mrb[0].mxu0
      %v2101 = vadd.f32 0.0, %v2100
      %v2102 = vpop.f32.mrb[0].mxu0
      %v2103 = vadd.f32 0.0, %v2102
      %v2104 = vpop.f32.mrb[0].mxu0
      %v2105 = vadd.f32 0.0, %v2104
      %2106 = vdwg.mxu0
      %2107 = vmatprep.subr.bf16.mxu0 %v2025
      %2108 = vmatpush1.bf16.msra.mxu0 %v2024
      %2109 = vmatprep.subr.bf16.mxu0 %v2027
      %2110 = vmatpush1.bf16.msra.mxu0 %v2026
      %2111 = vmatprep.subr.bf16.mxu0 0
      %2112 = vmatpush1.bf16.msra.mxu0 0
      %2113 = vmatprep.subr.bf16.mxu0 0
      %2114 = vmatpush1.bf16.msra.mxu0 0
      %2115 = vmatprep.subr.bf16.mxu0 0
      %2116 = vmatpush1.bf16.msra.mxu0 0
      %2117 = vmatprep.subr.bf16.mxu0 0
      %2118 = vmatpush1.bf16.msra.mxu0 0
      %2119 = vmatprep.subr.bf16.mxu0 0
      %2120 = vmatpush1.bf16.msra.mxu0 0
      %2121 = vmatprep.subr.bf16.mxu0 0
      %2122 = vmatpush1.bf16.msra.mxu0 0
      %2123 = vmatprep.subr.bf16.mxu0 0
      %2124 = vmatpush1.bf16.msra.mxu0 0
      %2125 = vmatprep.subr.bf16.mxu0 0
      %2126 = vmatpush1.bf16.msra.mxu0 0
      %2127 = vmatprep.subr.bf16.mxu0 0
      %2128 = vmatpush1.bf16.msra.mxu0 0
      %2129 = vmatprep.subr.bf16.mxu0 0
      %2130 = vmatpush1.bf16.msra.mxu0 0
      %2131 = vmatprep.subr.bf16.mxu0 0
      %2132 = vmatpush1.bf16.msra.mxu0 0
      %2133 = vmatprep.subr.bf16.mxu0 0
      %2134 = vmatpush1.bf16.msra.mxu0 0
      %2135 = vmatprep.subr.bf16.mxu0 0
      %2136 = vmatpush1.bf16.msra.mxu0 0
      %2137 = vmatprep.subr.bf16.mxu0 0
      %2138 = vmatpush1.bf16.msra.mxu0 0
      %2139 = vmatprep.mubr.bf16.mxu0 0
      %2140 = vmatmul.mubr.bf16.gmra.mrb[0].mxu0 %v1755
      %v2141 = vpop.f32.mrb[0].mxu0
      %v2142 = vadd.f32 %v2099, %v2141
      %v2143 = vpop.f32.mrb[0].mxu0
      %v2144 = vadd.f32 %v2101, %v2143
      %v2145 = vpop.f32.mrb[0].mxu0
      %v2146 = vadd.f32 %v2103, %v2145
      %v2147 = vpop.f32.mrb[0].mxu0
      %v2148 = vadd.f32 %v2105, %v2147
      %2149 = vdwg.mxu0
      %v2150 = vadd.f32 %v1514, %v2142
      %v2151 = vadd.f32 %v1516, %v2144
      %v2152 = vadd.f32 %v1518, %v2146
      %v2153 = vadd.f32 %v1520, %v2148
      %v2154 = vld [vmem:[%s246] sm:$0xee]
      %v2155 = vld [vmem:[%s246 + $0x8] sm:$0xe]
      %v2156 = vld [vmem:[%s246 + $0xc] sm:$0xff]
      %v2157 = vld [vmem:[%s246 + $0x14] sm:$0xf]
      %v2158 = vld [vmem:[%s246 + $0x18] sm:$0x11]
      %v2159 = vld [vmem:[%s246 + $0x20] sm:$0x1]
      %s2160 = scalar_lea.vmem %s1, 864
      %v2161 = vld [vmem:[%s2160] sm:$0xff]
      %v2162 = vld [vmem:[%s2160 + $0x8] sm:$0xff]
      %v2163 = vld [vmem:[%s2160 + $0x10] sm:$0xff]
      %v2164 = vld [vmem:[%s2160 + $0x18] sm:$0xff]
      %v2165 = vld [vmem:[%s2160 + $0x20] sm:$0xff]
      %v2166 = vld [vmem:[%s2160 + $0x28] sm:$0xff]
      %v2167 = vld [vmem:[%s2160 + $0x30] sm:$0xff]
      %v2168 = vld [vmem:[%s2160 + $0x38] sm:$0xff]
      %v2169 = vld [vmem:[%s2160 + $0x40] sm:$0xff]
      %v2170 = vld [vmem:[%s2160 + $0x48] sm:$0xff]
      %v2171 = vld [vmem:[%s2160 + $0x50] sm:$0xff]
      %v2172 = vld [vmem:[%s2160 + $0x58] sm:$0xff]
      %v2173 = vld [vmem:[%s2160 + $0x60] sm:$0xff]
      %v2174 = vld [vmem:[%s2160 + $0x68] sm:$0xff]
      %v2175 = vld [vmem:[%s2160 + $0x70] sm:$0xff]
      %v2176 = vld [vmem:[%s2160 + $0x78] sm:$0xff]
      %v2177 = vld [vmem:[%s2160 + $0x80] sm:$0xff]
      %v2178 = vld [vmem:[%s2160 + $0x88] sm:$0xff]
      %v2179 = vld [vmem:[%s2160 + $0x90] sm:$0xff]
      %v2180 = vld [vmem:[%s2160 + $0x98] sm:$0xff]
      %v2181 = vld [vmem:[%s2160 + $0xa0] sm:$0xff]
      %v2182 = vld [vmem:[%s2160 + $0xa8] sm:$0xff]
      %v2183 = vld [vmem:[%s2160 + $0xb0] sm:$0xff]
      %v2184 = vld [vmem:[%s2160 + $0xb8] sm:$0xff]
      %v2185 = vld [vmem:[%s2160 + $0xc0] sm:$0xff]
      %v2186 = vld [vmem:[%s2160 + $0xc8] sm:$0xff]
      %v2187 = vld [vmem:[%s2160 + $0xd0] sm:$0xff]
      %v2188 = vld [vmem:[%s2160 + $0xd8] sm:$0xff]
      %v2189 = vld [vmem:[%s2160 + $0xe0] sm:$0xff]
      %v2190 = vld [vmem:[%s2160 + $0xe8] sm:$0xff]
      %v2191 = vld [vmem:[%s2160 + $0xf0] sm:$0xff]
      %v2192 = vld [vmem:[%s2160 + $0xf8] sm:$0xff]
      %v2193 = vld [vmem:[%s2160 + $0x100] sm:$0xff]
      %v2194 = vld [vmem:[%s2160 + $0x108] sm:$0xff]
      %v2195 = vld [vmem:[%s2160 + $0x110] sm:$0xff]
      %v2196 = vld [vmem:[%s2160 + $0x118] sm:$0xff]
      %v2203 = vunpack.c.l.b16 %v2154
      %v2204 = vunpack.c.h.b16 %v2154
      %v2205 = vunpack.c.l.b16 %v2155
      %v2206 = vunpack.c.l.b16 %v2156
      %v2207 = vunpack.c.h.b16 %v2156
      %v2208 = vunpack.c.l.b16 %v2157
      %v2209 = vunpack.c.l.b16 %v2158
      %v2210 = vunpack.c.h.b16 %v2158
      %v2211 = vunpack.c.l.b16 %v2159
      %v2212 = vpack.c.b16 %v2206, %v2203
      %v2213 = vpack.c.b16 %v2207, %v2204
      %v2214 = vpack.c.b16 %v2208, %v2205
      %v2215 = vpack.c.b16 %v2209, %v2209
      %v2216 = vpack.c.b16 %v2210, %v2210
      %v2217 = vpack.c.b16 %v2211, %v2211
      %vm2218 = vsmask.f32 6400
      %v2220 = vshrl.u32 %v2212, 16
      %v2222 = vrot.slane %v2220, 1
      %v2223 = vshll.u32 %v2212, 16
      %v2225 = vrot.slane %v2223, 2
      %v2226 = vor.u32 %v2222, %v2225
      %v2228 = vshll.u32 %v2215, 16
      %v2230 = vrot.slane %v2228, 2
      %v2231 = vsel %vm2218, %v2226, %v2230
      %v2233 = vshrl.u32 %v2213, 16
      %v2235 = vrot.slane %v2233, 1
      %v2236 = vshll.u32 %v2213, 16
      %v2238 = vrot.slane %v2236, 2
      %v2239 = vor.u32 %v2235, %v2238
      %v2241 = vshll.u32 %v2216, 16
      %v2243 = vrot.slane %v2241, 2
      %v2244 = vsel %vm2218, %v2239, %v2243
      %v2246 = vshrl.u32 %v2214, 16
      %v2248 = vrot.slane %v2246, 1
      %v2249 = vshll.u32 %v2214, 16
      %v2251 = vrot.slane %v2249, 2
      %v2252 = vor.u32 %v2248, %v2251
      %v2254 = vshll.u32 %v2217, 16
      %v2256 = vrot.slane %v2254, 2
      %v2257 = vsel %vm2218, %v2252, %v2256
      %v2296 = vunpack.c.l.b16 %v2161
      %v2297 = vunpack.c.h.b16 %v2161
      %v2298 = vunpack.c.l.b16 %v2162
      %v2299 = vunpack.c.h.b16 %v2162
      %v2300 = vunpack.c.l.b16 %v2163
      %v2301 = vunpack.c.h.b16 %v2163
      %v2302 = vunpack.c.l.b16 %v2164
      %v2303 = vunpack.c.h.b16 %v2164
      %v2304 = vunpack.c.l.b16 %v2165
      %v2305 = vunpack.c.h.b16 %v2165
      %v2306 = vunpack.c.l.b16 %v2166
      %v2307 = vunpack.c.h.b16 %v2166
      %v2308 = vunpack.c.l.b16 %v2167
      %v2309 = vunpack.c.h.b16 %v2167
      %v2310 = vunpack.c.l.b16 %v2168
      %v2311 = vunpack.c.h.b16 %v2168
      %v2312 = vunpack.c.l.b16 %v2169
      %v2313 = vunpack.c.h.b16 %v2169
      %v2314 = vunpack.c.l.b16 %v2170
      %v2315 = vunpack.c.h.b16 %v2170
      %v2316 = vunpack.c.l.b16 %v2171
      %v2317 = vunpack.c.h.b16 %v2171
      %v2318 = vunpack.c.l.b16 %v2172
      %v2319 = vunpack.c.h.b16 %v2172
      %v2320 = vunpack.c.l.b16 %v2173
      %v2321 = vunpack.c.h.b16 %v2173
      %v2322 = vunpack.c.l.b16 %v2174
      %v2323 = vunpack.c.h.b16 %v2174
      %v2324 = vunpack.c.l.b16 %v2175
      %v2325 = vunpack.c.h.b16 %v2175
      %v2326 = vunpack.c.l.b16 %v2176
      %v2327 = vunpack.c.h.b16 %v2176
      %v2328 = vunpack.c.l.b16 %v2177
      %v2329 = vunpack.c.h.b16 %v2177
      %v2330 = vunpack.c.l.b16 %v2178
      %v2331 = vunpack.c.h.b16 %v2178
      %v2332 = vunpack.c.l.b16 %v2179
      %v2333 = vunpack.c.h.b16 %v2179
      %v2334 = vunpack.c.l.b16 %v2180
      %v2335 = vunpack.c.h.b16 %v2180
      %v2336 = vunpack.c.l.b16 %v2181
      %v2337 = vunpack.c.h.b16 %v2181
      %v2338 = vunpack.c.l.b16 %v2182
      %v2339 = vunpack.c.h.b16 %v2182
      %v2340 = vunpack.c.l.b16 %v2183
      %v2341 = vunpack.c.h.b16 %v2183
      %v2342 = vunpack.c.l.b16 %v2184
      %v2343 = vunpack.c.h.b16 %v2184
      %v2344 = vunpack.c.l.b16 %v2185
      %v2345 = vunpack.c.h.b16 %v2185
      %v2346 = vunpack.c.l.b16 %v2186
      %v2347 = vunpack.c.h.b16 %v2186
      %v2348 = vunpack.c.l.b16 %v2187
      %v2349 = vunpack.c.h.b16 %v2187
      %v2350 = vunpack.c.l.b16 %v2188
      %v2351 = vunpack.c.h.b16 %v2188
      %v2352 = vunpack.c.l.b16 %v2189
      %v2353 = vunpack.c.h.b16 %v2189
      %v2354 = vunpack.c.l.b16 %v2190
      %v2355 = vunpack.c.h.b16 %v2190
      %v2356 = vunpack.c.l.b16 %v2191
      %v2357 = vunpack.c.h.b16 %v2191
      %v2358 = vunpack.c.l.b16 %v2192
      %v2359 = vunpack.c.h.b16 %v2192
      %v2360 = vunpack.c.l.b16 %v2193
      %v2361 = vunpack.c.h.b16 %v2193
      %v2362 = vunpack.c.l.b16 %v2194
      %v2363 = vunpack.c.h.b16 %v2194
      %v2364 = vunpack.c.l.b16 %v2195
      %v2365 = vunpack.c.h.b16 %v2195
      %v2366 = vunpack.c.l.b16 %v2196
      %v2367 = vunpack.c.h.b16 %v2196
      %v2368 = vpack.c.b16 %v2298, %v2296
      %v2369 = vpack.c.b16 %v2299, %v2297
      %v2370 = vpack.c.b16 %v2302, %v2300
      %v2371 = vpack.c.b16 %v2303, %v2301
      %v2372 = vpack.c.b16 %v2306, %v2304
      %v2373 = vpack.c.b16 %v2307, %v2305
      %v2374 = vpack.c.b16 %v2310, %v2308
      %v2375 = vpack.c.b16 %v2311, %v2309
      %v2376 = vpack.c.b16 %v2314, %v2312
      %v2377 = vpack.c.b16 %v2315, %v2313
      %v2378 = vpack.c.b16 %v2318, %v2316
      %v2379 = vpack.c.b16 %v2319, %v2317
      %v2380 = vpack.c.b16 %v2322, %v2320
      %v2381 = vpack.c.b16 %v2323, %v2321
      %v2382 = vpack.c.b16 %v2326, %v2324
      %v2383 = vpack.c.b16 %v2327, %v2325
      %v2384 = vpack.c.b16 %v2330, %v2328
      %v2385 = vpack.c.b16 %v2331, %v2329
      %v2386 = vpack.c.b16 %v2334, %v2332
      %v2387 = vpack.c.b16 %v2335, %v2333
      %v2388 = vpack.c.b16 %v2338, %v2336
      %v2389 = vpack.c.b16 %v2339, %v2337
      %v2390 = vpack.c.b16 %v2342, %v2340
      %v2391 = vpack.c.b16 %v2343, %v2341
      %v2392 = vpack.c.b16 %v2346, %v2344
      %v2393 = vpack.c.b16 %v2347, %v2345
      %v2394 = vpack.c.b16 %v2350, %v2348
      %v2395 = vpack.c.b16 %v2351, %v2349
      %v2396 = vpack.c.b16 %v2354, %v2352
      %v2397 = vpack.c.b16 %v2355, %v2353
      %v2398 = vpack.c.b16 %v2358, %v2356
      %v2399 = vpack.c.b16 %v2359, %v2357
      %v2400 = vpack.c.b16 %v2362, %v2360
      %v2401 = vpack.c.b16 %v2363, %v2361
      %v2402 = vpack.c.b16 %v2366, %v2364
      %v2403 = vpack.c.b16 %v2367, %v2365
      %v2441 = vsel %vm584, %v2257, 0
      %2443 = vmatprep.subr.bf16.mxu0 %v2369
      %2444 = vmatpush1.bf16.msra.mxu0 %v2368
      %2445 = vmatprep.subr.bf16.mxu0 %v2371
      %2446 = vmatpush1.bf16.msra.mxu0 %v2370
      %2447 = vmatprep.subr.bf16.mxu0 %v2373
      %2448 = vmatpush1.bf16.msra.mxu0 %v2372
      %2449 = vmatprep.subr.bf16.mxu0 %v2375
      %2450 = vmatpush1.bf16.msra.mxu0 %v2374
      %2451 = vmatprep.subr.bf16.mxu0 %v2377
      %2452 = vmatpush1.bf16.msra.mxu0 %v2376
      %2453 = vmatprep.subr.bf16.mxu0 %v2379
      %2454 = vmatpush1.bf16.msra.mxu0 %v2378
      %2455 = vmatprep.subr.bf16.mxu0 %v2381
      %2456 = vmatpush1.bf16.msra.mxu0 %v2380
      %2457 = vmatprep.subr.bf16.mxu0 %v2383
      %2458 = vmatpush1.bf16.msra.mxu0 %v2382
      %2459 = vmatprep.subr.bf16.mxu0 %v2385
      %2460 = vmatpush1.bf16.msra.mxu0 %v2384
      %2461 = vmatprep.subr.bf16.mxu0 %v2387
      %2462 = vmatpush1.bf16.msra.mxu0 %v2386
      %2463 = vmatprep.subr.bf16.mxu0 %v2389
      %2464 = vmatpush1.bf16.msra.mxu0 %v2388
      %2465 = vmatprep.subr.bf16.mxu0 %v2391
      %2466 = vmatpush1.bf16.msra.mxu0 %v2390
      %2467 = vmatprep.subr.bf16.mxu0 %v2393
      %2468 = vmatpush1.bf16.msra.mxu0 %v2392
      %2469 = vmatprep.subr.bf16.mxu0 %v2395
      %2470 = vmatpush1.bf16.msra.mxu0 %v2394
      %2471 = vmatprep.subr.bf16.mxu0 %v2397
      %2472 = vmatpush1.bf16.msra.mxu0 %v2396
      %2473 = vmatprep.subr.bf16.mxu0 %v2399
      %2474 = vmatpush1.bf16.msra.mxu0 %v2398
      %2475 = vmatprep.mubr.bf16.mxu0 %v2244
      %2476 = vmatmul.mubr.bf16.gmra.mrb[0].mxu0 %v2231
      %v2477 = vpop.f32.mrb[0].mxu0
      %v2478 = vadd.f32 0.0, %v2477
      %v2479 = vpop.f32.mrb[0].mxu0
      %v2480 = vadd.f32 0.0, %v2479
      %v2481 = vpop.f32.mrb[0].mxu0
      %v2482 = vadd.f32 0.0, %v2481
      %v2483 = vpop.f32.mrb[0].mxu0
      %v2484 = vadd.f32 0.0, %v2483
      %2485 = vdwg.mxu0
      %2486 = vmatprep.subr.bf16.mxu0 %v2401
      %2487 = vmatpush1.bf16.msra.mxu0 %v2400
      %2488 = vmatprep.subr.bf16.mxu0 %v2403
      %2489 = vmatpush1.bf16.msra.mxu0 %v2402
      %2490 = vmatprep.subr.bf16.mxu0 0
      %2491 = vmatpush1.bf16.msra.mxu0 0
      %2492 = vmatprep.subr.bf16.mxu0 0
      %2493 = vmatpush1.bf16.msra.mxu0 0
      %2494 = vmatprep.subr.bf16.mxu0 0
      %2495 = vmatpush1.bf16.msra.mxu0 0
      %2496 = vmatprep.subr.bf16.mxu0 0
      %2497 = vmatpush1.bf16.msra.mxu0 0
      %2498 = vmatprep.subr.bf16.mxu0 0
      %2499 = vmatpush1.bf16.msra.mxu0 0
      %2500 = vmatprep.subr.bf16.mxu0 0
      %2501 = vmatpush1.bf16.msra.mxu0 0
      %2502 = vmatprep.subr.bf16.mxu0 0
      %2503 = vmatpush1.bf16.msra.mxu0 0
      %2504 = vmatprep.subr.bf16.mxu0 0
      %2505 = vmatpush1.bf16.msra.mxu0 0
      %2506 = vmatprep.subr.bf16.mxu0 0
      %2507 = vmatpush1.bf16.msra.mxu0 0
      %2508 = vmatprep.subr.bf16.mxu0 0
      %2509 = vmatpush1.bf16.msra.mxu0 0
      %2510 = vmatprep.subr.bf16.mxu0 0
      %2511 = vmatpush1.bf16.msra.mxu0 0
      %2512 = vmatprep.subr.bf16.mxu0 0
      %2513 = vmatpush1.bf16.msra.mxu0 0
      %2514 = vmatprep.subr.bf16.mxu0 0
      %2515 = vmatpush1.bf16.msra.mxu0 0
      %2516 = vmatprep.subr.bf16.mxu0 0
      %2517 = vmatpush1.bf16.msra.mxu0 0
      %2518 = vmatprep.mubr.bf16.mxu0 0
      %2519 = vmatmul.mubr.bf16.gmra.mrb[0].mxu0 %v2441
      %v2520 = vpop.f32.mrb[0].mxu0
      %v2521 = vadd.f32 %v2478, %v2520
      %v2522 = vpop.f32.mrb[0].mxu0
      %v2523 = vadd.f32 %v2480, %v2522
      %v2524 = vpop.f32.mrb[0].mxu0
      %v2525 = vadd.f32 %v2482, %v2524
      %v2526 = vpop.f32.mrb[0].mxu0
      %v2527 = vadd.f32 %v2484, %v2526
      %2528 = vdwg.mxu0
      %v2529 = vadd.f32 %v1843, %v2521
      %v2530 = vadd.f32 %v1844, %v2523
      %v2531 = vadd.f32 %v1845, %v2525
      %v2532 = vadd.f32 %v1846, %v2527
      %s2533 = scalar_lea.vmem %s2, 864
      %v2534 = vld [vmem:[%s2533] sm:$0xff]
      %v2535 = vld [vmem:[%s2533 + $0x8] sm:$0xff]
      %v2536 = vld [vmem:[%s2533 + $0x10] sm:$0xff]
      %v2537 = vld [vmem:[%s2533 + $0x18] sm:$0xff]
      %v2538 = vld [vmem:[%s2533 + $0x20] sm:$0xff]
      %v2539 = vld [vmem:[%s2533 + $0x28] sm:$0xff]
      %v2540 = vld [vmem:[%s2533 + $0x30] sm:$0xff]
      %v2541 = vld [vmem:[%s2533 + $0x38] sm:$0xff]
      %v2542 = vld [vmem:[%s2533 + $0x40] sm:$0xff]
      %v2543 = vld [vmem:[%s2533 + $0x48] sm:$0xff]
      %v2544 = vld [vmem:[%s2533 + $0x50] sm:$0xff]
      %v2545 = vld [vmem:[%s2533 + $0x58] sm:$0xff]
      %v2546 = vld [vmem:[%s2533 + $0x60] sm:$0xff]
      %v2547 = vld [vmem:[%s2533 + $0x68] sm:$0xff]
      %v2548 = vld [vmem:[%s2533 + $0x70] sm:$0xff]
      %v2549 = vld [vmem:[%s2533 + $0x78] sm:$0xff]
      %v2550 = vld [vmem:[%s2533 + $0x80] sm:$0xff]
      %v2551 = vld [vmem:[%s2533 + $0x88] sm:$0xff]
      %v2552 = vld [vmem:[%s2533 + $0x90] sm:$0xff]
      %v2553 = vld [vmem:[%s2533 + $0x98] sm:$0xff]
      %v2554 = vld [vmem:[%s2533 + $0xa0] sm:$0xff]
      %v2555 = vld [vmem:[%s2533 + $0xa8] sm:$0xff]
      %v2556 = vld [vmem:[%s2533 + $0xb0] sm:$0xff]
      %v2557 = vld [vmem:[%s2533 + $0xb8] sm:$0xff]
      %v2558 = vld [vmem:[%s2533 + $0xc0] sm:$0xff]
      %v2559 = vld [vmem:[%s2533 + $0xc8] sm:$0xff]
      %v2560 = vld [vmem:[%s2533 + $0xd0] sm:$0xff]
      %v2561 = vld [vmem:[%s2533 + $0xd8] sm:$0xff]
      %v2562 = vld [vmem:[%s2533 + $0xe0] sm:$0xff]
      %v2563 = vld [vmem:[%s2533 + $0xe8] sm:$0xff]
      %v2564 = vld [vmem:[%s2533 + $0xf0] sm:$0xff]
      %v2565 = vld [vmem:[%s2533 + $0xf8] sm:$0xff]
      %v2566 = vld [vmem:[%s2533 + $0x100] sm:$0xff]
      %v2567 = vld [vmem:[%s2533 + $0x108] sm:$0xff]
      %v2568 = vld [vmem:[%s2533 + $0x110] sm:$0xff]
      %v2569 = vld [vmem:[%s2533 + $0x118] sm:$0xff]
      %v2606 = vunpack.c.l.b16 %v2534
      %v2607 = vunpack.c.h.b16 %v2534
      %v2608 = vunpack.c.l.b16 %v2535
      %v2609 = vunpack.c.h.b16 %v2535
      %v2610 = vunpack.c.l.b16 %v2536
      %v2611 = vunpack.c.h.b16 %v2536
      %v2612 = vunpack.c.l.b16 %v2537
      %v2613 = vunpack.c.h.b16 %v2537
      %v2614 = vunpack.c.l.b16 %v2538
      %v2615 = vunpack.c.h.b16 %v2538
      %v2616 = vunpack.c.l.b16 %v2539
      %v2617 = vunpack.c.h.b16 %v2539
      %v2618 = vunpack.c.l.b16 %v2540
      %v2619 = vunpack.c.h.b16 %v2540
      %v2620 = vunpack.c.l.b16 %v2541
      %v2621 = vunpack.c.h.b16 %v2541
      %v2622 = vunpack.c.l.b16 %v2542
      %v2623 = vunpack.c.h.b16 %v2542
      %v2624 = vunpack.c.l.b16 %v2543
      %v2625 = vunpack.c.h.b16 %v2543
      %v2626 = vunpack.c.l.b16 %v2544
      %v2627 = vunpack.c.h.b16 %v2544
      %v2628 = vunpack.c.l.b16 %v2545
      %v2629 = vunpack.c.h.b16 %v2545
      %v2630 = vunpack.c.l.b16 %v2546
      %v2631 = vunpack.c.h.b16 %v2546
      %v2632 = vunpack.c.l.b16 %v2547
      %v2633 = vunpack.c.h.b16 %v2547
      %v2634 = vunpack.c.l.b16 %v2548
      %v2635 = vunpack.c.h.b16 %v2548
      %v2636 = vunpack.c.l.b16 %v2549
      %v2637 = vunpack.c.h.b16 %v2549
      %v2638 = vunpack.c.l.b16 %v2550
      %v2639 = vunpack.c.h.b16 %v2550
      %v2640 = vunpack.c.l.b16 %v2551
      %v2641 = vunpack.c.h.b16 %v2551
      %v2642 = vunpack.c.l.b16 %v2552
      %v2643 = vunpack.c.h.b16 %v2552
      %v2644 = vunpack.c.l.b16 %v2553
      %v2645 = vunpack.c.h.b16 %v2553
      %v2646 = vunpack.c.l.b16 %v2554
      %v2647 = vunpack.c.h.b16 %v2554
      %v2648 = vunpack.c.l.b16 %v2555
      %v2649 = vunpack.c.h.b16 %v2555
      %v2650 = vunpack.c.l.b16 %v2556
      %v2651 = vunpack.c.h.b16 %v2556
      %v2652 = vunpack.c.l.b16 %v2557
      %v2653 = vunpack.c.h.b16 %v2557
      %v2654 = vunpack.c.l.b16 %v2558
      %v2655 = vunpack.c.h.b16 %v2558
      %v2656 = vunpack.c.l.b16 %v2559
      %v2657 = vunpack.c.h.b16 %v2559
      %v2658 = vunpack.c.l.b16 %v2560
      %v2659 = vunpack.c.h.b16 %v2560
      %v2660 = vunpack.c.l.b16 %v2561
      %v2661 = vunpack.c.h.b16 %v2561
      %v2662 = vunpack.c.l.b16 %v2562
      %v2663 = vunpack.c.h.b16 %v2562
      %v2664 = vunpack.c.l.b16 %v2563
      %v2665 = vunpack.c.h.b16 %v2563
      %v2666 = vunpack.c.l.b16 %v2564
      %v2667 = vunpack.c.h.b16 %v2564
      %v2668 = vunpack.c.l.b16 %v2565
      %v2669 = vunpack.c.h.b16 %v2565
      %v2670 = vunpack.c.l.b16 %v2566
      %v2671 = vunpack.c.h.b16 %v2566
      %v2672 = vunpack.c.l.b16 %v2567
      %v2673 = vunpack.c.h.b16 %v2567
      %v2674 = vunpack.c.l.b16 %v2568
      %v2675 = vunpack.c.h.b16 %v2568
      %v2676 = vunpack.c.l.b16 %v2569
      %v2677 = vunpack.c.h.b16 %v2569
      %v2678 = vpack.c.b16 %v2608, %v2606
      %v2679 = vpack.c.b16 %v2609, %v2607
      %v2680 = vpack.c.b16 %v2612, %v2610
      %v2681 = vpack.c.b16 %v2613, %v2611
      %v2682 = vpack.c.b16 %v2616, %v2614
      %v2683 = vpack.c.b16 %v2617, %v2615
      %v2684 = vpack.c.b16 %v2620, %v2618
      %v2685 = vpack.c.b16 %v2621, %v2619
      %v2686 = vpack.c.b16 %v2624, %v2622
      %v2687 = vpack.c.b16 %v2625, %v2623
      %v2688 = vpack.c.b16 %v2628, %v2626
      %v2689 = vpack.c.b16 %v2629, %v2627
      %v2690 = vpack.c.b16 %v2632, %v2630
      %v2691 = vpack.c.b16 %v2633, %v2631
      %v2692 = vpack.c.b16 %v2636, %v2634
      %v2693 = vpack.c.b16 %v2637, %v2635
      %v2694 = vpack.c.b16 %v2640, %v2638
      %v2695 = vpack.c.b16 %v2641, %v2639
      %v2696 = vpack.c.b16 %v2644, %v2642
      %v2697 = vpack.c.b16 %v2645, %v2643
      %v2698 = vpack.c.b16 %v2648, %v2646
      %v2699 = vpack.c.b16 %v2649, %v2647
      %v2700 = vpack.c.b16 %v2652, %v2650
      %v2701 = vpack.c.b16 %v2653, %v2651
      %v2702 = vpack.c.b16 %v2656, %v2654
      %v2703 = vpack.c.b16 %v2657, %v2655
      %v2704 = vpack.c.b16 %v2660, %v2658
      %v2705 = vpack.c.b16 %v2661, %v2659
      %v2706 = vpack.c.b16 %v2664, %v2662
      %v2707 = vpack.c.b16 %v2665, %v2663
      %v2708 = vpack.c.b16 %v2668, %v2666
      %v2709 = vpack.c.b16 %v2669, %v2667
      %v2710 = vpack.c.b16 %v2672, %v2670
      %v2711 = vpack.c.b16 %v2673, %v2671
      %v2712 = vpack.c.b16 %v2676, %v2674
      %v2713 = vpack.c.b16 %v2677, %v2675
      %2750 = vmatprep.subr.bf16.mxu0 %v2679
      %2751 = vmatpush1.bf16.msra.mxu0 %v2678
      %2752 = vmatprep.subr.bf16.mxu0 %v2681
      %2753 = vmatpush1.bf16.msra.mxu0 %v2680
      %2754 = vmatprep.subr.bf16.mxu0 %v2683
      %2755 = vmatpush1.bf16.msra.mxu0 %v2682
      %2756 = vmatprep.subr.bf16.mxu0 %v2685
      %2757 = vmatpush1.bf16.msra.mxu0 %v2684
      %2758 = vmatprep.subr.bf16.mxu0 %v2687
      %2759 = vmatpush1.bf16.msra.mxu0 %v2686
      %2760 = vmatprep.subr.bf16.mxu0 %v2689
      %2761 = vmatpush1.bf16.msra.mxu0 %v2688
      %2762 = vmatprep.subr.bf16.mxu0 %v2691
      %2763 = vmatpush1.bf16.msra.mxu0 %v2690
      %2764 = vmatprep.subr.bf16.mxu0 %v2693
      %2765 = vmatpush1.bf16.msra.mxu0 %v2692
      %2766 = vmatprep.subr.bf16.mxu0 %v2695
      %2767 = vmatpush1.bf16.msra.mxu0 %v2694
      %2768 = vmatprep.subr.bf16.mxu0 %v2697
      %2769 = vmatpush1.bf16.msra.mxu0 %v2696
      %2770 = vmatprep.subr.bf16.mxu0 %v2699
      %2771 = vmatpush1.bf16.msra.mxu0 %v2698
      %2772 = vmatprep.subr.bf16.mxu0 %v2701
      %2773 = vmatpush1.bf16.msra.mxu0 %v2700
      %2774 = vmatprep.subr.bf16.mxu0 %v2703
      %2775 = vmatpush1.bf16.msra.mxu0 %v2702
      %2776 = vmatprep.subr.bf16.mxu0 %v2705
      %2777 = vmatpush1.bf16.msra.mxu0 %v2704
      %2778 = vmatprep.subr.bf16.mxu0 %v2707
      %2779 = vmatpush1.bf16.msra.mxu0 %v2706
      %2780 = vmatprep.subr.bf16.mxu0 %v2709
      %2781 = vmatpush1.bf16.msra.mxu0 %v2708
      %2782 = vmatprep.mubr.bf16.mxu0 %v2244
      %2783 = vmatmul.mubr.bf16.gmra.mrb[0].mxu0 %v2231
      %v2784 = vpop.f32.mrb[0].mxu0
      %v2785 = vadd.f32 0.0, %v2784
      %v2786 = vpop.f32.mrb[0].mxu0
      %v2787 = vadd.f32 0.0, %v2786
      %v2788 = vpop.f32.mrb[0].mxu0
      %v2789 = vadd.f32 0.0, %v2788
      %v2790 = vpop.f32.mrb[0].mxu0
      %v2791 = vadd.f32 0.0, %v2790
      %2792 = vdwg.mxu0
      %2793 = vmatprep.subr.bf16.mxu0 %v2711
      %2794 = vmatpush1.bf16.msra.mxu0 %v2710
      %2795 = vmatprep.subr.bf16.mxu0 %v2713
      %2796 = vmatpush1.bf16.msra.mxu0 %v2712
      %2797 = vmatprep.subr.bf16.mxu0 0
      %2798 = vmatpush1.bf16.msra.mxu0 0
      %2799 = vmatprep.subr.bf16.mxu0 0
      %2800 = vmatpush1.bf16.msra.mxu0 0
      %2801 = vmatprep.subr.bf16.mxu0 0
      %2802 = vmatpush1.bf16.msra.mxu0 0
      %2803 = vmatprep.subr.bf16.mxu0 0
      %2804 = vmatpush1.bf16.msra.mxu0 0
      %2805 = vmatprep.subr.bf16.mxu0 0
      %2806 = vmatpush1.bf16.msra.mxu0 0
      %2807 = vmatprep.subr.bf16.mxu0 0
      %2808 = vmatpush1.bf16.msra.mxu0 0
      %2809 = vmatprep.subr.bf16.mxu0 0
      %2810 = vmatpush1.bf16.msra.mxu0 0
      %2811 = vmatprep.subr.bf16.mxu0 0
      %2812 = vmatpush1.bf16.msra.mxu0 0
      %2813 = vmatprep.subr.bf16.mxu0 0
      %2814 = vmatpush1.bf16.msra.mxu0 0
      %2815 = vmatprep.subr.bf16.mxu0 0
      %2816 = vmatpush1.bf16.msra.mxu0 0
      %2817 = vmatprep.subr.bf16.mxu0 0
      %2818 = vmatpush1.bf16.msra.mxu0 0
      %2819 = vmatprep.subr.bf16.mxu0 0
      %2820 = vmatpush1.bf16.msra.mxu0 0
      %2821 = vmatprep.subr.bf16.mxu0 0
      %2822 = vmatpush1.bf16.msra.mxu0 0
      %2823 = vmatprep.subr.bf16.mxu0 0
      %2824 = vmatpush1.bf16.msra.mxu0 0
      %2825 = vmatprep.mubr.bf16.mxu0 0
      %2826 = vmatmul.mubr.bf16.gmra.mrb[0].mxu0 %v2441
      %v2827 = vpop.f32.mrb[0].mxu0
      %v2828 = vadd.f32 %v2785, %v2827
      %v2829 = vpop.f32.mrb[0].mxu0
      %v2830 = vadd.f32 %v2787, %v2829
      %v2831 = vpop.f32.mrb[0].mxu0
      %v2832 = vadd.f32 %v2789, %v2831
      %v2833 = vpop.f32.mrb[0].mxu0
      %v2834 = vadd.f32 %v2791, %v2833
      %2835 = vdwg.mxu0
      %v2836 = vadd.f32 %v2150, %v2828
      %v2837 = vadd.f32 %v2151, %v2830
      %v2838 = vadd.f32 %v2152, %v2832
      %v2839 = vadd.f32 %v2153, %v2834
      %v2840 = vld [vmem:[%s246] sm:$0xcc]
      %v2841 = vld [vmem:[%s246 + $0x8] sm:$0xc]
      %s2842 = scalar_lea.vmem %s1, 1152
      %v2843 = vld [vmem:[%s2842] sm:$0xff]
      %v2844 = vld [vmem:[%s2842 + $0x8] sm:$0xff]
      %v2845 = vld [vmem:[%s2842 + $0x10] sm:$0xff]
      %v2846 = vld [vmem:[%s2842 + $0x18] sm:$0xff]
      %v2847 = vld [vmem:[%s2842 + $0x20] sm:$0xff]
      %v2848 = vld [vmem:[%s2842 + $0x28] sm:$0xff]
      %v2849 = vld [vmem:[%s2842 + $0x30] sm:$0xff]
      %v2850 = vld [vmem:[%s2842 + $0x38] sm:$0xff]
      %v2851 = vld [vmem:[%s2842 + $0x40] sm:$0xff]
      %v2852 = vld [vmem:[%s2842 + $0x48] sm:$0xff]
      %v2853 = vld [vmem:[%s2842 + $0x50] sm:$0xff]
      %v2854 = vld [vmem:[%s2842 + $0x58] sm:$0xff]
      %v2855 = vld [vmem:[%s2842 + $0x60] sm:$0xff]
      %v2856 = vld [vmem:[%s2842 + $0x68] sm:$0xff]
      %v2857 = vld [vmem:[%s2842 + $0x70] sm:$0xff]
      %v2858 = vld [vmem:[%s2842 + $0x78] sm:$0xff]
      %v2859 = vld [vmem:[%s2842 + $0x80] sm:$0xff]
      %v2860 = vld [vmem:[%s2842 + $0x88] sm:$0xff]
      %v2861 = vld [vmem:[%s2842 + $0x90] sm:$0xff]
      %v2862 = vld [vmem:[%s2842 + $0x98] sm:$0xff]
      %v2863 = vld [vmem:[%s2842 + $0xa0] sm:$0xff]
      %v2864 = vld [vmem:[%s2842 + $0xa8] sm:$0xff]
      %v2865 = vld [vmem:[%s2842 + $0xb0] sm:$0xff]
      %v2866 = vld [vmem:[%s2842 + $0xb8] sm:$0xff]
      %v2867 = vld [vmem:[%s2842 + $0xc0] sm:$0xff]
      %v2868 = vld [vmem:[%s2842 + $0xc8] sm:$0xff]
      %v2869 = vld [vmem:[%s2842 + $0xd0] sm:$0xff]
      %v2870 = vld [vmem:[%s2842 + $0xd8] sm:$0xff]
      %v2871 = vld [vmem:[%s2842 + $0xe0] sm:$0xff]
      %v2872 = vld [vmem:[%s2842 + $0xe8] sm:$0xff]
      %v2873 = vld [vmem:[%s2842 + $0xf0] sm:$0xff]
      %v2874 = vld [vmem:[%s2842 + $0xf8] sm:$0xff]
      %v2875 = vld [vmem:[%s2842 + $0x100] sm:$0xff]
      %v2876 = vld [vmem:[%s2842 + $0x108] sm:$0xff]
      %v2877 = vld [vmem:[%s2842 + $0x110] sm:$0xff]
      %v2878 = vld [vmem:[%s2842 + $0x118] sm:$0xff]
      %v2881 = vunpack.c.l.b16 %v2840
      %v2882 = vunpack.c.h.b16 %v2840
      %v2883 = vunpack.c.l.b16 %v2841
      %v2884 = vpack.c.b16 %v2206, %v2881
      %v2885 = vpack.c.b16 %v2207, %v2882
      %v2886 = vpack.c.b16 %v2208, %v2883
      %vm2887 = vcmask 1045504
      %v2888 = vrot.slane %v2884, 2
      %v2889 = vrot.slane %v2215, 2
      %v2890 = vsel %vm2887, %v2888, %v2889
      %v2891 = vrot.slane %v2885, 2
      %v2892 = vrot.slane %v2216, 2
      %v2893 = vsel %vm2887, %v2891, %v2892
      %v2894 = vrot.slane %v2886, 2
      %v2895 = vrot.slane %v2217, 2
      %v2896 = vsel %vm2887, %v2894, %v2895
      %v2935 = vunpack.c.l.b16 %v2843
      %v2936 = vunpack.c.h.b16 %v2843
      %v2937 = vunpack.c.l.b16 %v2844
      %v2938 = vunpack.c.h.b16 %v2844
      %v2939 = vunpack.c.l.b16 %v2845
      %v2940 = vunpack.c.h.b16 %v2845
      %v2941 = vunpack.c.l.b16 %v2846
      %v2942 = vunpack.c.h.b16 %v2846
      %v2943 = vunpack.c.l.b16 %v2847
      %v2944 = vunpack.c.h.b16 %v2847
      %v2945 = vunpack.c.l.b16 %v2848
      %v2946 = vunpack.c.h.b16 %v2848
      %v2947 = vunpack.c.l.b16 %v2849
      %v2948 = vunpack.c.h.b16 %v2849
      %v2949 = vunpack.c.l.b16 %v2850
      %v2950 = vunpack.c.h.b16 %v2850
      %v2951 = vunpack.c.l.b16 %v2851
      %v2952 = vunpack.c.h.b16 %v2851
      %v2953 = vunpack.c.l.b16 %v2852
      %v2954 = vunpack.c.h.b16 %v2852
      %v2955 = vunpack.c.l.b16 %v2853
      %v2956 = vunpack.c.h.b16 %v2853
      %v2957 = vunpack.c.l.b16 %v2854
      %v2958 = vunpack.c.h.b16 %v2854
      %v2959 = vunpack.c.l.b16 %v2855
      %v2960 = vunpack.c.h.b16 %v2855
      %v2961 = vunpack.c.l.b16 %v2856
      %v2962 = vunpack.c.h.b16 %v2856
      %v2963 = vunpack.c.l.b16 %v2857
      %v2964 = vunpack.c.h.b16 %v2857
      %v2965 = vunpack.c.l.b16 %v2858
      %v2966 = vunpack.c.h.b16 %v2858
      %v2967 = vunpack.c.l.b16 %v2859
      %v2968 = vunpack.c.h.b16 %v2859
      %v2969 = vunpack.c.l.b16 %v2860
      %v2970 = vunpack.c.h.b16 %v2860
      %v2971 = vunpack.c.l.b16 %v2861
      %v2972 = vunpack.c.h.b16 %v2861
      %v2973 = vunpack.c.l.b16 %v2862
      %v2974 = vunpack.c.h.b16 %v2862
      %v2975 = vunpack.c.l.b16 %v2863
      %v2976 = vunpack.c.h.b16 %v2863
      %v2977 = vunpack.c.l.b16 %v2864
      %v2978 = vunpack.c.h.b16 %v2864
      %v2979 = vunpack.c.l.b16 %v2865
      %v2980 = vunpack.c.h.b16 %v2865
      %v2981 = vunpack.c.l.b16 %v2866
      %v2982 = vunpack.c.h.b16 %v2866
      %v2983 = vunpack.c.l.b16 %v2867
      %v2984 = vunpack.c.h.b16 %v2867
      %v2985 = vunpack.c.l.b16 %v2868
      %v2986 = vunpack.c.h.b16 %v2868
      %v2987 = vunpack.c.l.b16 %v2869
      %v2988 = vunpack.c.h.b16 %v2869
      %v2989 = vunpack.c.l.b16 %v2870
      %v2990 = vunpack.c.h.b16 %v2870
      %v2991 = vunpack.c.l.b16 %v2871
      %v2992 = vunpack.c.h.b16 %v2871
      %v2993 = vunpack.c.l.b16 %v2872
      %v2994 = vunpack.c.h.b16 %v2872
      %v2995 = vunpack.c.l.b16 %v2873
      %v2996 = vunpack.c.h.b16 %v2873
      %v2997 = vunpack.c.l.b16 %v2874
      %v2998 = vunpack.c.h.b16 %v2874
      %v2999 = vunpack.c.l.b16 %v2875
      %v3000 = vunpack.c.h.b16 %v2875
      %v3001 = vunpack.c.l.b16 %v2876
      %v3002 = vunpack.c.h.b16 %v2876
      %v3003 = vunpack.c.l.b16 %v2877
      %v3004 = vunpack.c.h.b16 %v2877
      %v3005 = vunpack.c.l.b16 %v2878
      %v3006 = vunpack.c.h.b16 %v2878
      %v3007 = vpack.c.b16 %v2937, %v2935
      %v3008 = vpack.c.b16 %v2938, %v2936
      %v3009 = vpack.c.b16 %v2941, %v2939
      %v3010 = vpack.c.b16 %v2942, %v2940
      %v3011 = vpack.c.b16 %v2945, %v2943
      %v3012 = vpack.c.b16 %v2946, %v2944
      %v3013 = vpack.c.b16 %v2949, %v2947
      %v3014 = vpack.c.b16 %v2950, %v2948
      %v3015 = vpack.c.b16 %v2953, %v2951
      %v3016 = vpack.c.b16 %v2954, %v2952
      %v3017 = vpack.c.b16 %v2957, %v2955
      %v3018 = vpack.c.b16 %v2958, %v2956
      %v3019 = vpack.c.b16 %v2961, %v2959
      %v3020 = vpack.c.b16 %v2962, %v2960
      %v3021 = vpack.c.b16 %v2965, %v2963
      %v3022 = vpack.c.b16 %v2966, %v2964
      %v3023 = vpack.c.b16 %v2969, %v2967
      %v3024 = vpack.c.b16 %v2970, %v2968
      %v3025 = vpack.c.b16 %v2973, %v2971
      %v3026 = vpack.c.b16 %v2974, %v2972
      %v3027 = vpack.c.b16 %v2977, %v2975
      %v3028 = vpack.c.b16 %v2978, %v2976
      %v3029 = vpack.c.b16 %v2981, %v2979
      %v3030 = vpack.c.b16 %v2982, %v2980
      %v3031 = vpack.c.b16 %v2985, %v2983
      %v3032 = vpack.c.b16 %v2986, %v2984
      %v3033 = vpack.c.b16 %v2989, %v2987
      %v3034 = vpack.c.b16 %v2990, %v2988
      %v3035 = vpack.c.b16 %v2993, %v2991
      %v3036 = vpack.c.b16 %v2994, %v2992
      %v3037 = vpack.c.b16 %v2997, %v2995
      %v3038 = vpack.c.b16 %v2998, %v2996
      %v3039 = vpack.c.b16 %v3001, %v2999
      %v3040 = vpack.c.b16 %v3002, %v3000
      %v3041 = vpack.c.b16 %v3005, %v3003
      %v3042 = vpack.c.b16 %v3006, %v3004
      %v3080 = vsel %vm584, %v2896, 0
      %3082 = vmatprep.subr.bf16.mxu0 %v3008
      %3083 = vmatpush1.bf16.msra.mxu0 %v3007
      %3084 = vmatprep.subr.bf16.mxu0 %v3010
      %3085 = vmatpush1.bf16.msra.mxu0 %v3009
      %3086 = vmatprep.subr.bf16.mxu0 %v3012
      %3087 = vmatpush1.bf16.msra.mxu0 %v3011
      %3088 = vmatprep.subr.bf16.mxu0 %v3014
      %3089 = vmatpush1.bf16.msra.mxu0 %v3013
      %3090 = vmatprep.subr.bf16.mxu0 %v3016
      %3091 = vmatpush1.bf16.msra.mxu0 %v3015
      %3092 = vmatprep.subr.bf16.mxu0 %v3018
      %3093 = vmatpush1.bf16.msra.mxu0 %v3017
      %3094 = vmatprep.subr.bf16.mxu0 %v3020
      %3095 = vmatpush1.bf16.msra.mxu0 %v3019
      %3096 = vmatprep.subr.bf16.mxu0 %v3022
      %3097 = vmatpush1.bf16.msra.mxu0 %v3021
      %3098 = vmatprep.subr.bf16.mxu0 %v3024
      %3099 = vmatpush1.bf16.msra.mxu0 %v3023
      %3100 = vmatprep.subr.bf16.mxu0 %v3026
      %3101 = vmatpush1.bf16.msra.mxu0 %v3025
      %3102 = vmatprep.subr.bf16.mxu0 %v3028
      %3103 = vmatpush1.bf16.msra.mxu0 %v3027
      %3104 = vmatprep.subr.bf16.mxu0 %v3030
      %3105 = vmatpush1.bf16.msra.mxu0 %v3029
      %3106 = vmatprep.subr.bf16.mxu0 %v3032
      %3107 = vmatpush1.bf16.msra.mxu0 %v3031
      %3108 = vmatprep.subr.bf16.mxu0 %v3034
      %3109 = vmatpush1.bf16.msra.mxu0 %v3033
      %3110 = vmatprep.subr.bf16.mxu0 %v3036
      %3111 = vmatpush1.bf16.msra.mxu0 %v3035
      %3112 = vmatprep.subr.bf16.mxu0 %v3038
      %3113 = vmatpush1.bf16.msra.mxu0 %v3037
      %3114 = vmatprep.mubr.bf16.mxu0 %v2893
      %3115 = vmatmul.mubr.bf16.gmra.mrb[0].mxu0 %v2890
      %v3116 = vpop.f32.mrb[0].mxu0
      %v3117 = vadd.f32 0.0, %v3116
      %v3118 = vpop.f32.mrb[0].mxu0
      %v3119 = vadd.f32 0.0, %v3118
      %v3120 = vpop.f32.mrb[0].mxu0
      %v3121 = vadd.f32 0.0, %v3120
      %v3122 = vpop.f32.mrb[0].mxu0
      %v3123 = vadd.f32 0.0, %v3122
      %3124 = vdwg.mxu0
      %3125 = vmatprep.subr.bf16.mxu0 %v3040
      %3126 = vmatpush1.bf16.msra.mxu0 %v3039
      %3127 = vmatprep.subr.bf16.mxu0 %v3042
      %3128 = vmatpush1.bf16.msra.mxu0 %v3041
      %3129 = vmatprep.subr.bf16.mxu0 0
      %3130 = vmatpush1.bf16.msra.mxu0 0
      %3131 = vmatprep.subr.bf16.mxu0 0
      %3132 = vmatpush1.bf16.msra.mxu0 0
      %3133 = vmatprep.subr.bf16.mxu0 0
      %3134 = vmatpush1.bf16.msra.mxu0 0
      %3135 = vmatprep.subr.bf16.mxu0 0
      %3136 = vmatpush1.bf16.msra.mxu0 0
      %3137 = vmatprep.subr.bf16.mxu0 0
      %3138 = vmatpush1.bf16.msra.mxu0 0
      %3139 = vmatprep.subr.bf16.mxu0 0
      %3140 = vmatpush1.bf16.msra.mxu0 0
      %3141 = vmatprep.subr.bf16.mxu0 0
      %3142 = vmatpush1.bf16.msra.mxu0 0
      %3143 = vmatprep.subr.bf16.mxu0 0
      %3144 = vmatpush1.bf16.msra.mxu0 0
      %3145 = vmatprep.subr.bf16.mxu0 0
      %3146 = vmatpush1.bf16.msra.mxu0 0
      %3147 = vmatprep.subr.bf16.mxu0 0
      %3148 = vmatpush1.bf16.msra.mxu0 0
      %3149 = vmatprep.subr.bf16.mxu0 0
      %3150 = vmatpush1.bf16.msra.mxu0 0
      %3151 = vmatprep.subr.bf16.mxu0 0
      %3152 = vmatpush1.bf16.msra.mxu0 0
      %3153 = vmatprep.subr.bf16.mxu0 0
      %3154 = vmatpush1.bf16.msra.mxu0 0
      %3155 = vmatprep.subr.bf16.mxu0 0
      %3156 = vmatpush1.bf16.msra.mxu0 0
      %3157 = vmatprep.mubr.bf16.mxu0 0
      %3158 = vmatmul.mubr.bf16.gmra.mrb[0].mxu0 %v3080
      %v3159 = vpop.f32.mrb[0].mxu0
      %v3160 = vadd.f32 %v3117, %v3159
      %v3161 = vpop.f32.mrb[0].mxu0
      %v3162 = vadd.f32 %v3119, %v3161
      %v3163 = vpop.f32.mrb[0].mxu0
      %v3164 = vadd.f32 %v3121, %v3163
      %v3165 = vpop.f32.mrb[0].mxu0
      %v3166 = vadd.f32 %v3123, %v3165
      %3167 = vdwg.mxu0
      %v3168 = vadd.f32 %v2529, %v3160
      %v3169 = vadd.f32 %v2530, %v3162
      %v3170 = vadd.f32 %v2531, %v3164
      %v3171 = vadd.f32 %v2532, %v3166
      %s3172 = scalar_lea.vmem %s2, 1152
      %v3173 = vld [vmem:[%s3172] sm:$0xff]
      %v3174 = vld [vmem:[%s3172 + $0x8] sm:$0xff]
      %v3175 = vld [vmem:[%s3172 + $0x10] sm:$0xff]
      %v3176 = vld [vmem:[%s3172 + $0x18] sm:$0xff]
      %v3177 = vld [vmem:[%s3172 + $0x20] sm:$0xff]
      %v3178 = vld [vmem:[%s3172 + $0x28] sm:$0xff]
      %v3179 = vld [vmem:[%s3172 + $0x30] sm:$0xff]
      %v3180 = vld [vmem:[%s3172 + $0x38] sm:$0xff]
      %v3181 = vld [vmem:[%s3172 + $0x40] sm:$0xff]
      %v3182 = vld [vmem:[%s3172 + $0x48] sm:$0xff]
      %v3183 = vld [vmem:[%s3172 + $0x50] sm:$0xff]
      %v3184 = vld [vmem:[%s3172 + $0x58] sm:$0xff]
      %v3185 = vld [vmem:[%s3172 + $0x60] sm:$0xff]
      %v3186 = vld [vmem:[%s3172 + $0x68] sm:$0xff]
      %v3187 = vld [vmem:[%s3172 + $0x70] sm:$0xff]
      %v3188 = vld [vmem:[%s3172 + $0x78] sm:$0xff]
      %v3189 = vld [vmem:[%s3172 + $0x80] sm:$0xff]
      %v3190 = vld [vmem:[%s3172 + $0x88] sm:$0xff]
      %v3191 = vld [vmem:[%s3172 + $0x90] sm:$0xff]
      %v3192 = vld [vmem:[%s3172 + $0x98] sm:$0xff]
      %v3193 = vld [vmem:[%s3172 + $0xa0] sm:$0xff]
      %v3194 = vld [vmem:[%s3172 + $0xa8] sm:$0xff]
      %v3195 = vld [vmem:[%s3172 + $0xb0] sm:$0xff]
      %v3196 = vld [vmem:[%s3172 + $0xb8] sm:$0xff]
      %v3197 = vld [vmem:[%s3172 + $0xc0] sm:$0xff]
      %v3198 = vld [vmem:[%s3172 + $0xc8] sm:$0xff]
      %v3199 = vld [vmem:[%s3172 + $0xd0] sm:$0xff]
      %v3200 = vld [vmem:[%s3172 + $0xd8] sm:$0xff]
      %v3201 = vld [vmem:[%s3172 + $0xe0] sm:$0xff]
      %v3202 = vld [vmem:[%s3172 + $0xe8] sm:$0xff]
      %v3203 = vld [vmem:[%s3172 + $0xf0] sm:$0xff]
      %v3204 = vld [vmem:[%s3172 + $0xf8] sm:$0xff]
      %v3205 = vld [vmem:[%s3172 + $0x100] sm:$0xff]
      %v3206 = vld [vmem:[%s3172 + $0x108] sm:$0xff]
      %v3207 = vld [vmem:[%s3172 + $0x110] sm:$0xff]
      %v3208 = vld [vmem:[%s3172 + $0x118] sm:$0xff]
      %v3245 = vunpack.c.l.b16 %v3173
      %v3246 = vunpack.c.h.b16 %v3173
      %v3247 = vunpack.c.l.b16 %v3174
      %v3248 = vunpack.c.h.b16 %v3174
      %v3249 = vunpack.c.l.b16 %v3175
      %v3250 = vunpack.c.h.b16 %v3175
      %v3251 = vunpack.c.l.b16 %v3176
      %v3252 = vunpack.c.h.b16 %v3176
      %v3253 = vunpack.c.l.b16 %v3177
      %v3254 = vunpack.c.h.b16 %v3177
      %v3255 = vunpack.c.l.b16 %v3178
      %v3256 = vunpack.c.h.b16 %v3178
      %v3257 = vunpack.c.l.b16 %v3179
      %v3258 = vunpack.c.h.b16 %v3179
      %v3259 = vunpack.c.l.b16 %v3180
      %v3260 = vunpack.c.h.b16 %v3180
      %v3261 = vunpack.c.l.b16 %v3181
      %v3262 = vunpack.c.h.b16 %v3181
      %v3263 = vunpack.c.l.b16 %v3182
      %v3264 = vunpack.c.h.b16 %v3182
      %v3265 = vunpack.c.l.b16 %v3183
      %v3266 = vunpack.c.h.b16 %v3183
      %v3267 = vunpack.c.l.b16 %v3184
      %v3268 = vunpack.c.h.b16 %v3184
      %v3269 = vunpack.c.l.b16 %v3185
      %v3270 = vunpack.c.h.b16 %v3185
      %v3271 = vunpack.c.l.b16 %v3186
      %v3272 = vunpack.c.h.b16 %v3186
      %v3273 = vunpack.c.l.b16 %v3187
      %v3274 = vunpack.c.h.b16 %v3187
      %v3275 = vunpack.c.l.b16 %v3188
      %v3276 = vunpack.c.h.b16 %v3188
      %v3277 = vunpack.c.l.b16 %v3189
      %v3278 = vunpack.c.h.b16 %v3189
      %v3279 = vunpack.c.l.b16 %v3190
      %v3280 = vunpack.c.h.b16 %v3190
      %v3281 = vunpack.c.l.b16 %v3191
      %v3282 = vunpack.c.h.b16 %v3191
      %v3283 = vunpack.c.l.b16 %v3192
      %v3284 = vunpack.c.h.b16 %v3192
      %v3285 = vunpack.c.l.b16 %v3193
      %v3286 = vunpack.c.h.b16 %v3193
      %v3287 = vunpack.c.l.b16 %v3194
      %v3288 = vunpack.c.h.b16 %v3194
      %v3289 = vunpack.c.l.b16 %v3195
      %v3290 = vunpack.c.h.b16 %v3195
      %v3291 = vunpack.c.l.b16 %v3196
      %v3292 = vunpack.c.h.b16 %v3196
      %v3293 = vunpack.c.l.b16 %v3197
      %v3294 = vunpack.c.h.b16 %v3197
      %v3295 = vunpack.c.l.b16 %v3198
      %v3296 = vunpack.c.h.b16 %v3198
      %v3297 = vunpack.c.l.b16 %v3199
      %v3298 = vunpack.c.h.b16 %v3199
      %v3299 = vunpack.c.l.b16 %v3200
      %v3300 = vunpack.c.h.b16 %v3200
      %v3301 = vunpack.c.l.b16 %v3201
      %v3302 = vunpack.c.h.b16 %v3201
      %v3303 = vunpack.c.l.b16 %v3202
      %v3304 = vunpack.c.h.b16 %v3202
      %v3305 = vunpack.c.l.b16 %v3203
      %v3306 = vunpack.c.h.b16 %v3203
      %v3307 = vunpack.c.l.b16 %v3204
      %v3308 = vunpack.c.h.b16 %v3204
      %v3309 = vunpack.c.l.b16 %v3205
      %v3310 = vunpack.c.h.b16 %v3205
      %v3311 = vunpack.c.l.b16 %v3206
      %v3312 = vunpack.c.h.b16 %v3206
      %v3313 = vunpack.c.l.b16 %v3207
      %v3314 = vunpack.c.h.b16 %v3207
      %v3315 = vunpack.c.l.b16 %v3208
      %v3316 = vunpack.c.h.b16 %v3208
      %v3317 = vpack.c.b16 %v3247, %v3245
      %v3318 = vpack.c.b16 %v3248, %v3246
      %v3319 = vpack.c.b16 %v3251, %v3249
      %v3320 = vpack.c.b16 %v3252, %v3250
      %v3321 = vpack.c.b16 %v3255, %v3253
      %v3322 = vpack.c.b16 %v3256, %v3254
      %v3323 = vpack.c.b16 %v3259, %v3257
      %v3324 = vpack.c.b16 %v3260, %v3258
      %v3325 = vpack.c.b16 %v3263, %v3261
      %v3326 = vpack.c.b16 %v3264, %v3262
      %v3327 = vpack.c.b16 %v3267, %v3265
      %v3328 = vpack.c.b16 %v3268, %v3266
      %v3329 = vpack.c.b16 %v3271, %v3269
      %v3330 = vpack.c.b16 %v3272, %v3270
      %v3331 = vpack.c.b16 %v3275, %v3273
      %v3332 = vpack.c.b16 %v3276, %v3274
      %v3333 = vpack.c.b16 %v3279, %v3277
      %v3334 = vpack.c.b16 %v3280, %v3278
      %v3335 = vpack.c.b16 %v3283, %v3281
      %v3336 = vpack.c.b16 %v3284, %v3282
      %v3337 = vpack.c.b16 %v3287, %v3285
      %v3338 = vpack.c.b16 %v3288, %v3286
      %v3339 = vpack.c.b16 %v3291, %v3289
      %v3340 = vpack.c.b16 %v3292, %v3290
      %v3341 = vpack.c.b16 %v3295, %v3293
      %v3342 = vpack.c.b16 %v3296, %v3294
      %v3343 = vpack.c.b16 %v3299, %v3297
      %v3344 = vpack.c.b16 %v3300, %v3298
      %v3345 = vpack.c.b16 %v3303, %v3301
      %v3346 = vpack.c.b16 %v3304, %v3302
      %v3347 = vpack.c.b16 %v3307, %v3305
      %v3348 = vpack.c.b16 %v3308, %v3306
      %v3349 = vpack.c.b16 %v3311, %v3309
      %v3350 = vpack.c.b16 %v3312, %v3310
      %v3351 = vpack.c.b16 %v3315, %v3313
      %v3352 = vpack.c.b16 %v3316, %v3314
      %3389 = vmatprep.subr.bf16.mxu0 %v3318
      %3390 = vmatpush1.bf16.msra.mxu0 %v3317
      %3391 = vmatprep.subr.bf16.mxu0 %v3320
      %3392 = vmatpush1.bf16.msra.mxu0 %v3319
      %3393 = vmatprep.subr.bf16.mxu0 %v3322
      %3394 = vmatpush1.bf16.msra.mxu0 %v3321
      %3395 = vmatprep.subr.bf16.mxu0 %v3324
      %3396 = vmatpush1.bf16.msra.mxu0 %v3323
      %3397 = vmatprep.subr.bf16.mxu0 %v3326
      %3398 = vmatpush1.bf16.msra.mxu0 %v3325
      %3399 = vmatprep.subr.bf16.mxu0 %v3328
      %3400 = vmatpush1.bf16.msra.mxu0 %v3327
      %3401 = vmatprep.subr.bf16.mxu0 %v3330
      %3402 = vmatpush1.bf16.msra.mxu0 %v3329
      %3403 = vmatprep.subr.bf16.mxu0 %v3332
      %3404 = vmatpush1.bf16.msra.mxu0 %v3331
      %3405 = vmatprep.subr.bf16.mxu0 %v3334
      %3406 = vmatpush1.bf16.msra.mxu0 %v3333
      %3407 = vmatprep.subr.bf16.mxu0 %v3336
      %3408 = vmatpush1.bf16.msra.mxu0 %v3335
      %3409 = vmatprep.subr.bf16.mxu0 %v3338
      %3410 = vmatpush1.bf16.msra.mxu0 %v3337
      %3411 = vmatprep.subr.bf16.mxu0 %v3340
      %3412 = vmatpush1.bf16.msra.mxu0 %v3339
      %3413 = vmatprep.subr.bf16.mxu0 %v3342
      %3414 = vmatpush1.bf16.msra.mxu0 %v3341
      %3415 = vmatprep.subr.bf16.mxu0 %v3344
      %3416 = vmatpush1.bf16.msra.mxu0 %v3343
      %3417 = vmatprep.subr.bf16.mxu0 %v3346
      %3418 = vmatpush1.bf16.msra.mxu0 %v3345
      %3419 = vmatprep.subr.bf16.mxu0 %v3348
      %3420 = vmatpush1.bf16.msra.mxu0 %v3347
      %3421 = vmatprep.mubr.bf16.mxu0 %v2893
      %3422 = vmatmul.mubr.bf16.gmra.mrb[0].mxu0 %v2890
      %v3423 = vpop.f32.mrb[0].mxu0
      %v3424 = vadd.f32 0.0, %v3423
      %v3425 = vpop.f32.mrb[0].mxu0
      %v3426 = vadd.f32 0.0, %v3425
      %v3427 = vpop.f32.mrb[0].mxu0
      %v3428 = vadd.f32 0.0, %v3427
      %v3429 = vpop.f32.mrb[0].mxu0
      %v3430 = vadd.f32 0.0, %v3429
      %3431 = vdwg.mxu0
      %3432 = vmatprep.subr.bf16.mxu0 %v3350
      %3433 = vmatpush1.bf16.msra.mxu0 %v3349
      %3434 = vmatprep.subr.bf16.mxu0 %v3352
      %3435 = vmatpush1.bf16.msra.mxu0 %v3351
      %3436 = vmatprep.subr.bf16.mxu0 0
      %3437 = vmatpush1.bf16.msra.mxu0 0
      %3438 = vmatprep.subr.bf16.mxu0 0
      %3439 = vmatpush1.bf16.msra.mxu0 0
      %3440 = vmatprep.subr.bf16.mxu0 0
      %3441 = vmatpush1.bf16.msra.mxu0 0
      %3442 = vmatprep.subr.bf16.mxu0 0
      %3443 = vmatpush1.bf16.msra.mxu0 0
      %3444 = vmatprep.subr.bf16.mxu0 0
      %3445 = vmatpush1.bf16.msra.mxu0 0
      %3446 = vmatprep.subr.bf16.mxu0 0
      %3447 = vmatpush1.bf16.msra.mxu0 0
      %3448 = vmatprep.subr.bf16.mxu0 0
      %3449 = vmatpush1.bf16.msra.mxu0 0
      %3450 = vmatprep.subr.bf16.mxu0 0
      %3451 = vmatpush1.bf16.msra.mxu0 0
      %3452 = vmatprep.subr.bf16.mxu0 0
      %3453 = vmatpush1.bf16.msra.mxu0 0
      %3454 = vmatprep.subr.bf16.mxu0 0
      %3455 = vmatpush1.bf16.msra.mxu0 0
      %3456 = vmatprep.subr.bf16.mxu0 0
      %3457 = vmatpush1.bf16.msra.mxu0 0
      %3458 = vmatprep.subr.bf16.mxu0 0
      %3459 = vmatpush1.bf16.msra.mxu0 0
      %3460 = vmatprep.subr.bf16.mxu0 0
      %3461 = vmatpush1.bf16.msra.mxu0 0
      %3462 = vmatprep.subr.bf16.mxu0 0
      %3463 = vmatpush1.bf16.msra.mxu0 0
      %3464 = vmatprep.mubr.bf16.mxu0 0
      %3465 = vmatmul.mubr.bf16.gmra.mrb[0].mxu0 %v3080
      %v3466 = vpop.f32.mrb[0].mxu0
      %v3467 = vadd.f32 %v3424, %v3466
      %v3468 = vpop.f32.mrb[0].mxu0
      %v3469 = vadd.f32 %v3426, %v3468
      %v3470 = vpop.f32.mrb[0].mxu0
      %v3471 = vadd.f32 %v3428, %v3470
      %v3472 = vpop.f32.mrb[0].mxu0
      %v3473 = vadd.f32 %v3430, %v3472
      %3474 = vdwg.mxu0
      %v3475 = vadd.f32 %v2836, %v3467
      %v3476 = vadd.f32 %v2837, %v3469
      %v3477 = vadd.f32 %v2838, %v3471
      %v3478 = vadd.f32 %v2839, %v3473
      %v3479 = vld [vmem:[%s3] sm:$0x3]
      %v3481 = vlaneseq
      %v3482 = vshrl.u32 %v3481, 7
      %v3483 = vsub.s32 0, %v3482
      %v3484 = vrot.slane %v3479, %v3483
      %v3485 = vlaneseq
      %v3486 = vshrl.u32 %v3485, 7
      %v3487 = vsub.s32 1, %v3486
      %v3488 = vrot.slane %v3479, %v3487
      %v3491 = vadd.f32 %v3168, %v3484
      %v3492 = vadd.f32 %v3169, %v3488
      %v3493 = vadd.f32 %v3170, %v3484
      %v3494 = vadd.f32 %v3171, %v3488
      %v3495 = vmax.f32 %v3491, 0.0
      %v3496 = vmax.f32 %v3492, 0.0
      %v3497 = vmax.f32 %v3493, 0.0
      %v3498 = vmax.f32 %v3494, 0.0
      %v3499 = vadd.f32 %v3475, %v3484
      %v3500 = vadd.f32 %v3476, %v3488
      %v3501 = vadd.f32 %v3477, %v3484
      %v3502 = vadd.f32 %v3478, %v3488
      %v3503 = vmax.f32 %v3499, 0.0
      %v3504 = vmax.f32 %v3500, 0.0
      %v3505 = vmax.f32 %v3501, 0.0
      %v3506 = vmax.f32 %v3502, 0.0
      %v3507 = vmax.f32 %v3495, %v3503
      %v3508 = vmax.f32 %v3496, %v3504
      %v3509 = vmax.f32 %v3497, %v3505
      %v3510 = vmax.f32 %v3498, %v3506
      %v3511 = vld [vmem:[%s4] sm:$0x7f]
      %vm3512 = vcmask 113664
      %v3514 = vsel %vm3512, %v3511, 0
      %vm3516 = vcmask 1045504
      %v3518 = vsel %vm3516, %v3509, 0
      %v3521 = vsel %vm3516, %v3510, 0
      %3523 = vmatprep.subr.mxu0 %v3508
      %3524 = vmatpush1.msra.mxu0 %v3507
      %3525 = vmatprep.subr.mxu0 %v3521
      %3526 = vmatpush1.msra.mxu0 %v3518
      %3527 = vmatprep.subr.mxu0 0.0
      %3528 = vmatpush1.msra.mxu0 0.0
      %3529 = vmatprep.subr.mxu0 0.0
      %3530 = vmatpush1.msra.mxu0 0.0
      %3531 = vmatprep.subr.mxu0 0.0
      %3532 = vmatpush1.msra.mxu0 0.0
      %3533 = vmatprep.subr.mxu0 0.0
      %3534 = vmatpush1.msra.mxu0 0.0
      %3535 = vmatprep.subr.mxu0 0.0
      %3536 = vmatpush1.msra.mxu0 0.0
      %3537 = vmatprep.subr.mxu0 0.0
      %3538 = vmatpush1.msra.mxu0 0.0
      %3539 = vmatprep.subr.mxu0 0.0
      %3540 = vmatpush1.msra.mxu0 0.0
      %3541 = vmatprep.subr.mxu0 0.0
      %3542 = vmatpush1.msra.mxu0 0.0
      %3543 = vmatprep.subr.mxu0 0.0
      %3544 = vmatpush1.msra.mxu0 0.0
      %3545 = vmatprep.subr.mxu0 0.0
      %3546 = vmatpush1.msra.mxu0 0.0
      %3547 = vmatprep.subr.mxu0 0.0
      %3548 = vmatpush1.msra.mxu0 0.0
      %3549 = vmatprep.subr.mxu0 0.0
      %3550 = vmatpush1.msra.mxu0 0.0
      %3551 = vmatprep.subr.mxu0 0.0
      %3552 = vmatpush1.msra.mxu0 0.0
      %3553 = vmatprep.subr.mxu0 0.0
      %3554 = vmatpush1.msra.mxu0 0.0
      %3555 = vmatprep.subr.mxu0 0.0
      %3556 = vmatpush1.msra.mxu0 0.0
      %3557 = vmatprep.subr.mxu0 0.0
      %3558 = vmatpush1.msra.mxu0 0.0
      %3559 = vmatprep.subr.mxu0 0.0
      %3560 = vmatpush1.msra.mxu0 0.0
      %3561 = vmatprep.subr.mxu0 0.0
      %3562 = vmatpush1.msra.mxu0 0.0
      %3563 = vmatprep.subr.mxu0 0.0
      %3564 = vmatpush1.msra.mxu0 0.0
      %3565 = vmatprep.subr.mxu0 0.0
      %3566 = vmatpush1.msra.mxu0 0.0
      %3567 = vmatprep.subr.mxu0 0.0
      %3568 = vmatpush1.msra.mxu0 0.0
      %3569 = vmatprep.subr.mxu0 0.0
      %3570 = vmatpush1.msra.mxu0 0.0
      %3571 = vmatprep.subr.mxu0 0.0
      %3572 = vmatpush1.msra.mxu0 0.0
      %3573 = vmatprep.subr.mxu0 0.0
      %3574 = vmatpush1.msra.mxu0 0.0
      %3575 = vmatprep.subr.mxu0 0.0
      %3576 = vmatpush1.msra.mxu0 0.0
      %3577 = vmatprep.subr.mxu0 0.0
      %3578 = vmatpush1.msra.mxu0 0.0
      %3579 = vmatprep.subr.mxu0 0.0
      %3580 = vmatpush1.msra.mxu0 0.0
      %3581 = vmatprep.subr.mxu0 0.0
      %3582 = vmatpush1.msra.mxu0 0.0
      %3583 = vmatprep.subr.mxu0 0.0
      %3584 = vmatpush1.msra.mxu0 0.0
      %3585 = vmatprep.subr.mxu0 0.0
      %3586 = vmatpush1.msra.mxu0 0.0
      %3587 = vmatprep.mubr.f32.mxu0 0.0
      %3588 = vmatmul.mubr.f32.gmra.mrb[0].mxu0 %v3514
      %v3589 = vpop.f32.mrb[0].mxu0
      %v3590 = vadd.f32 0.0, %v3589
      %v3591 = vpop.f32.mrb[0].mxu0
      %v3592 = vadd.f32 0.0, %v3591
      %3593 = vdwg.mxu0
      %v3594 = vld [vmem:[%s5] sm:$0x7f]
      %v3596 = vsel %vm3512, %v3594, 0
      %3598 = vmatprep.subr.mxu0 %v3508
      %3599 = vmatpush1.msra.mxu0 %v3507
      %3600 = vmatprep.subr.mxu0 %v3521
      %3601 = vmatpush1.msra.mxu0 %v3518
      %3602 = vmatprep.subr.mxu0 0.0
      %3603 = vmatpush1.msra.mxu0 0.0
      %3604 = vmatprep.subr.mxu0 0.0
      %3605 = vmatpush1.msra.mxu0 0.0
      %3606 = vmatprep.subr.mxu0 0.0
      %3607 = vmatpush1.msra.mxu0 0.0
      %3608 = vmatprep.subr.mxu0 0.0
      %3609 = vmatpush1.msra.mxu0 0.0
      %3610 = vmatprep.subr.mxu0 0.0
      %3611 = vmatpush1.msra.mxu0 0.0
      %3612 = vmatprep.subr.mxu0 0.0
      %3613 = vmatpush1.msra.mxu0 0.0
      %3614 = vmatprep.subr.mxu0 0.0
      %3615 = vmatpush1.msra.mxu0 0.0
      %3616 = vmatprep.subr.mxu0 0.0
      %3617 = vmatpush1.msra.mxu0 0.0
      %3618 = vmatprep.subr.mxu0 0.0
      %3619 = vmatpush1.msra.mxu0 0.0
      %3620 = vmatprep.subr.mxu0 0.0
      %3621 = vmatpush1.msra.mxu0 0.0
      %3622 = vmatprep.subr.mxu0 0.0
      %3623 = vmatpush1.msra.mxu0 0.0
      %3624 = vmatprep.subr.mxu0 0.0
      %3625 = vmatpush1.msra.mxu0 0.0
      %3626 = vmatprep.subr.mxu0 0.0
      %3627 = vmatpush1.msra.mxu0 0.0
      %3628 = vmatprep.subr.mxu0 0.0
      %3629 = vmatpush1.msra.mxu0 0.0
      %3630 = vmatprep.subr.mxu0 0.0
      %3631 = vmatpush1.msra.mxu0 0.0
      %3632 = vmatprep.subr.mxu0 0.0
      %3633 = vmatpush1.msra.mxu0 0.0
      %3634 = vmatprep.subr.mxu0 0.0
      %3635 = vmatpush1.msra.mxu0 0.0
      %3636 = vmatprep.subr.mxu0 0.0
      %3637 = vmatpush1.msra.mxu0 0.0
      %3638 = vmatprep.subr.mxu0 0.0
      %3639 = vmatpush1.msra.mxu0 0.0
      %3640 = vmatprep.subr.mxu0 0.0
      %3641 = vmatpush1.msra.mxu0 0.0
      %3642 = vmatprep.subr.mxu0 0.0
      %3643 = vmatpush1.msra.mxu0 0.0
      %3644 = vmatprep.subr.mxu0 0.0
      %3645 = vmatpush1.msra.mxu0 0.0
      %3646 = vmatprep.subr.mxu0 0.0
      %3647 = vmatpush1.msra.mxu0 0.0
      %3648 = vmatprep.subr.mxu0 0.0
      %3649 = vmatpush1.msra.mxu0 0.0
      %3650 = vmatprep.subr.mxu0 0.0
      %3651 = vmatpush1.msra.mxu0 0.0
      %3652 = vmatprep.subr.mxu0 0.0
      %3653 = vmatpush1.msra.mxu0 0.0
      %3654 = vmatprep.subr.mxu0 0.0
      %3655 = vmatpush1.msra.mxu0 0.0
      %3656 = vmatprep.subr.mxu0 0.0
      %3657 = vmatpush1.msra.mxu0 0.0
      %3658 = vmatprep.subr.mxu0 0.0
      %3659 = vmatpush1.msra.mxu0 0.0
      %3660 = vmatprep.subr.mxu0 0.0
      %3661 = vmatpush1.msra.mxu0 0.0
      %3662 = vmatprep.mubr.f32.mxu0 0.0
      %3663 = vmatmul.mubr.f32.gmra.mrb[0].mxu0 %v3596
      %v3664 = vpop.f32.mrb[0].mxu0
      %v3665 = vadd.f32 0.0, %v3664
      %v3666 = vpop.f32.mrb[0].mxu0
      %v3667 = vadd.f32 0.0, %v3666
      %3668 = vdwg.mxu0
      %v3669 = vmax.f32 %v3590, %v3665
      %v3670 = vmax.f32 %v3592, %v3667
      %3671 = vst [vmem:[%s251] sm:$0x7f] %v3669
      %vm3672 = vcmask 784384
      %3673 = vst.msk [vmem:[%s251 + $0x8] sm:$0x7f] %vm3672, %v3670
      %p3674 = scmp.lt.s32.totalorder %s17, 1
      %s3675 = scalar_select %p3674, %s17, 1
      %s3676 = smul.addr %s3675, 2
      %s3677 = smul.addr %s3676, 8
      %s3678 = scalar_lea.vmem %s6, %s3677
      // Predicated region
      $region45: #{cnn_forward.4} parent=43 // pred_check
        %p3679 = pneg %p166
      $region46: #{cnn_forward.4} parent=43 // pred_check_branch
        %3681 = sbr.rel (%p3679) target = $region48
      $region47: #{cnn_forward.4} parent=43 // pred_region
        _
      $region48: #{cnn_forward.4} parent=43 // pred_fallthru
        _
    $region44: #{cnn_forward.4} parent=5 // pred_fallthru
      _
    %p3682 = scmp.le.s32.totalorder 2, %s12
    // Predicated region
    $region49: #{cnn_forward.4} parent=5 // pred_check
      %p3683 = pneg %p3682
    $region50: #{cnn_forward.4} parent=5 // pred_check_branch
      %3685 = sbr.rel (%p3683) target = $region52
    $region51: #{cnn_forward.4} parent=5 // pred_region
      %s3686 = ssub.s32 %s12, 2
      // Predicated region
      $region53: #{cnn_forward.4} parent=51 // pred_check
        %p3687 = pneg %p172
      $region54: #{cnn_forward.4} parent=51 // pred_check_branch
        %3689 = sbr.rel (%p3687) target = $region56
      $region55: #{cnn_forward.4} parent=51 // pred_region
        %p3690 = scmp.lt.s32.totalorder %s18, 1
        %s3691 = scalar_select %p3690, %s18, 1
        %s3692 = smul.addr %s3691, 2
        %s3693 = smul.addr %s3692, 8
        %s3694 = scalar_lea.vmem %s6, %s3693
      $region56: #{cnn_forward.4} parent=51 // pred_fallthru
        _
    $region52: #{cnn_forward.4} parent=5 // pred_fallthru
      _
  $region6: #{cnn_forward.4} parent=0 // loop_footer
    %s16 = sadd.s32 1, %s12
  $region7: #{cnn_forward.4} parent=0 // loop_footer_branch
    %11 = sbr.rel target = $region3
  $region8: #{cnn_forward.4} parent=0 // loop_exit
    _

// kernel: cnn_forward.5
$region0: #{cnn_forward.5}
  #allocation0 [shape = 'u32[]', space=smem, size = 0x4, offset = 0x4, fixed_abs, tag = 'smem constant byte address 0x4 - core index']
  #allocation1 [shape = 'u32[144,128]{1,0:T(1,128)}', space=vmem, size = 0x12000, scoped, tag = 'internal scratch']
  %s0 = inlined_call_operand.vmem [shape: f32[2,1568], index: 0, kind: input, shape index: {}]
  %s1 = inlined_call_operand.vmem [shape: f32[1568,10], index: 1, kind: input, shape index: {}]
  %s2 = inlined_call_operand.vmem [shape: f32[1,10], index: 2, kind: input, shape index: {}]
  %s3 = inlined_call_operand.hbm [shape: f32[2,10], index: 3, kind: output, shape index: {}]
  %s4 = sld [smem:[#allocation0]]
  $region22: #{cnn_forward.5} parent=0
    _
  %s6 = ssub.s32 1, %s4
  %s7 = scalar_select 0, %s6, %s4
  $region1: #{cnn_forward.5} parent=0
    #allocation2 [shape = 'u8[1024]{0}', space=vmem, size = 0x400, scoped, tag = 'output window, operand 0, single buffered']
    #allocation3 [shape = 's32[1]{0}', space=sflag, size = 0x4, scoped, tag = 'scoped memory for cnn_forward.5']
    %8 = vsyncpa [#allocation3], 0
    // Predicated region
    $region2: #{cnn_forward.5} parent=1 // pred_check
      _
    $region3: #{cnn_forward.5} parent=1 // pred_check_branch
      %10 = sbr.rel (0) target = $region5
    $region4: #{cnn_forward.5} parent=1 // pred_region
      _
    $region5: #{cnn_forward.5} parent=1 // pred_fallthru
      _
    // Predicated region
    $region6: #{cnn_forward.5} parent=1 // pred_check
      _
    $region7: #{cnn_forward.5} parent=1 // pred_check_branch
      %12 = sbr.rel (0) target = $region9
    $region8: #{cnn_forward.5} parent=1 // pred_region
      _
    $region9: #{cnn_forward.5} parent=1 // pred_fallthru
      _
    // Predicated region
    $region10: #{cnn_forward.5} parent=1 // pred_check
      _
    $region11: #{cnn_forward.5} parent=1 // pred_check_branch
      %14 = sbr.rel (0) target = $region13
    $region12: #{cnn_forward.5} parent=1 // pred_region
      _
    $region13: #{cnn_forward.5} parent=1 // pred_fallthru
      _
    %v15 = vld [vmem:[%s0] sm:$0xff]
    %v16 = vld [vmem:[%s0 + $0x8] sm:$0xff]
    %v17 = vld [vmem:[%s0 + $0x10] sm:$0xff]
    %v18 = vld [vmem:[%s0 + $0x18] sm:$0x3]
    %v19 = vld [vmem:[%s1] sm:$0xff]
    %v20 = vld [vmem:[%s1 + $0x8] sm:$0xff]
    %v21 = vld [vmem:[%s1 + $0x10] sm:$0xff]
    %v22 = vld [vmem:[%s1 + $0x18] sm:$0xff]
    %v23 = vld [vmem:[%s1 + $0x20] sm:$0xff]
    %v24 = vld [vmem:[%s1 + $0x28] sm:$0xff]
    %v25 = vld [vmem:[%s1 + $0x30] sm:$0xff]
    %v26 = vld [vmem:[%s1 + $0x38] sm:$0xff]
    %v27 = vld [vmem:[%s1 + $0x40] sm:$0xff]
    %v28 = vld [vmem:[%s1 + $0x48] sm:$0xff]
    %v29 = vld [vmem:[%s1 + $0x50] sm:$0xff]
    %v30 = vld [vmem:[%s1 + $0x58] sm:$0xff]
    %v31 = vld [vmem:[%s1 + $0x60] sm:$0xff]
    %v32 = vld [vmem:[%s1 + $0x68] sm:$0xff]
    %v33 = vld [vmem:[%s1 + $0x70] sm:$0xff]
    %v34 = vld [vmem:[%s1 + $0x78] sm:$0xff]
    %v35 = vld [vmem:[%s1 + $0x80] sm:$0xff]
    %v36 = vld [vmem:[%s1 + $0x88] sm:$0xff]
    %v37 = vld [vmem:[%s1 + $0x90] sm:$0xff]
    %v38 = vld [vmem:[%s1 + $0x98] sm:$0xff]
    %v39 = vld [vmem:[%s1 + $0xa0] sm:$0xff]
    %v40 = vld [vmem:[%s1 + $0xa8] sm:$0xff]
    %v41 = vld [vmem:[%s1 + $0xb0] sm:$0xff]
    %v42 = vld [vmem:[%s1 + $0xb8] sm:$0xff]
    %v43 = vld [vmem:[%s1 + $0xc0] sm:$0xff]
    %v44 = vld [vmem:[%s1 + $0xc8] sm:$0xff]
    %v45 = vld [vmem:[%s1 + $0xd0] sm:$0xff]
    %v46 = vld [vmem:[%s1 + $0xd8] sm:$0xff]
    %v47 = vld [vmem:[%s1 + $0xe0] sm:$0xff]
    %v48 = vld [vmem:[%s1 + $0xe8] sm:$0xff]
    %v49 = vld [vmem:[%s1 + $0xf0] sm:$0xff]
    %v50 = vld [vmem:[%s1 + $0xf8] sm:$0xff]
    %v51 = vld [vmem:[%s1 + $0x100] sm:$0xff]
    %v52 = vld [vmem:[%s1 + $0x108] sm:$0xff]
    %v53 = vld [vmem:[%s1 + $0x110] sm:$0xff]
    %v54 = vld [vmem:[%s1 + $0x118] sm:$0xff]
    %v55 = vld [vmem:[%s1 + $0x120] sm:$0xff]
    %v56 = vld [vmem:[%s1 + $0x128] sm:$0xff]
    %v57 = vld [vmem:[%s1 + $0x130] sm:$0xff]
    %v58 = vld [vmem:[%s1 + $0x138] sm:$0xff]
    %v59 = vld [vmem:[%s1 + $0x140] sm:$0xff]
    %v60 = vld [vmem:[%s1 + $0x148] sm:$0xff]
    %v61 = vld [vmem:[%s1 + $0x150] sm:$0xff]
    %v62 = vld [vmem:[%s1 + $0x158] sm:$0xff]
    %v63 = vld [vmem:[%s1 + $0x160] sm:$0xff]
    %v64 = vld [vmem:[%s1 + $0x168] sm:$0xff]
    %v65 = vld [vmem:[%s1 + $0x170] sm:$0xff]
    %v66 = vld [vmem:[%s1 + $0x178] sm:$0xff]
    %v67 = vld [vmem:[%s1 + $0x180] sm:$0xff]
    %v68 = vld [vmem:[%s1 + $0x188] sm:$0xff]
    %v69 = vld [vmem:[%s1 + $0x190] sm:$0xff]
    %v70 = vld [vmem:[%s1 + $0x198] sm:$0xff]
    %v71 = vld [vmem:[%s1 + $0x1a0] sm:$0xff]
    %v72 = vld [vmem:[%s1 + $0x1a8] sm:$0xff]
    %v73 = vld [vmem:[%s1 + $0x1b0] sm:$0xff]
    %v74 = vld [vmem:[%s1 + $0x1b8] sm:$0xff]
    %v75 = vld [vmem:[%s1 + $0x1c0] sm:$0xff]
    %v76 = vld [vmem:[%s1 + $0x1c8] sm:$0xff]
    %v77 = vld [vmem:[%s1 + $0x1d0] sm:$0xff]
    %v78 = vld [vmem:[%s1 + $0x1d8] sm:$0xff]
    %v79 = vld [vmem:[%s1 + $0x1e0] sm:$0xff]
    %v80 = vld [vmem:[%s1 + $0x1e8] sm:$0xff]
    %v81 = vld [vmem:[%s1 + $0x1f0] sm:$0xff]
    %v82 = vld [vmem:[%s1 + $0x1f8] sm:$0xff]
    %v83 = vld [vmem:[%s1 + $0x200] sm:$0xff]
    %v84 = vld [vmem:[%s1 + $0x208] sm:$0xff]
    %v85 = vld [vmem:[%s1 + $0x210] sm:$0xff]
    %v86 = vld [vmem:[%s1 + $0x218] sm:$0xff]
    %v87 = vld [vmem:[%s1 + $0x220] sm:$0xff]
    %v88 = vld [vmem:[%s1 + $0x228] sm:$0xff]
    %v89 = vld [vmem:[%s1 + $0x230] sm:$0xff]
    %v90 = vld [vmem:[%s1 + $0x238] sm:$0xff]
    %v91 = vld [vmem:[%s1 + $0x240] sm:$0xff]
    %v92 = vld [vmem:[%s1 + $0x248] sm:$0xff]
    %v93 = vld [vmem:[%s1 + $0x250] sm:$0xff]
    %v94 = vld [vmem:[%s1 + $0x258] sm:$0xff]
    %v95 = vld [vmem:[%s1 + $0x260] sm:$0xff]
    %v96 = vld [vmem:[%s1 + $0x268] sm:$0xff]
    %v97 = vld [vmem:[%s1 + $0x270] sm:$0xff]
    %v98 = vld [vmem:[%s1 + $0x278] sm:$0xff]
    %v99 = vld [vmem:[%s1 + $0x280] sm:$0xff]
    %v100 = vld [vmem:[%s1 + $0x288] sm:$0xff]
    %v101 = vld [vmem:[%s1 + $0x290] sm:$0xff]
    %v102 = vld [vmem:[%s1 + $0x298] sm:$0xff]
    %v103 = vld [vmem:[%s1 + $0x2a0] sm:$0xff]
    %v104 = vld [vmem:[%s1 + $0x2a8] sm:$0xff]
    %v105 = vld [vmem:[%s1 + $0x2b0] sm:$0xff]
    %v106 = vld [vmem:[%s1 + $0x2b8] sm:$0xff]
    %v107 = vld [vmem:[%s1 + $0x2c0] sm:$0xff]
    %v108 = vld [vmem:[%s1 + $0x2c8] sm:$0xff]
    %v109 = vld [vmem:[%s1 + $0x2d0] sm:$0xff]
    %v110 = vld [vmem:[%s1 + $0x2d8] sm:$0xff]
    %v111 = vld [vmem:[%s1 + $0x2e0] sm:$0xff]
    %v112 = vld [vmem:[%s1 + $0x2e8] sm:$0xff]
    %v113 = vld [vmem:[%s1 + $0x2f0] sm:$0xff]
    %v114 = vld [vmem:[%s1 + $0x2f8] sm:$0xff]
    %v115 = vld [vmem:[%s1 + $0x300] sm:$0xff]
    %v116 = vld [vmem:[%s1 + $0x308] sm:$0xff]
    %v117 = vld [vmem:[%s1 + $0x310] sm:$0xff]
    %v118 = vld [vmem:[%s1 + $0x318] sm:$0xff]
    %v119 = vld [vmem:[%s1 + $0x320] sm:$0xff]
    %v120 = vld [vmem:[%s1 + $0x328] sm:$0xff]
    %v121 = vld [vmem:[%s1 + $0x330] sm:$0xff]
    %v122 = vld [vmem:[%s1 + $0x338] sm:$0xff]
    %v123 = vld [vmem:[%s1 + $0x340] sm:$0xff]
    %v124 = vld [vmem:[%s1 + $0x348] sm:$0xff]
    %v125 = vld [vmem:[%s1 + $0x350] sm:$0xff]
    %v126 = vld [vmem:[%s1 + $0x358] sm:$0xff]
    %v127 = vld [vmem:[%s1 + $0x360] sm:$0xff]
    %v128 = vld [vmem:[%s1 + $0x368] sm:$0xff]
    %v129 = vld [vmem:[%s1 + $0x370] sm:$0xff]
    %v130 = vld [vmem:[%s1 + $0x378] sm:$0xff]
    %v131 = vld [vmem:[%s1 + $0x380] sm:$0xff]
    %v132 = vld [vmem:[%s1 + $0x388] sm:$0xff]
    %v133 = vld [vmem:[%s1 + $0x390] sm:$0xff]
    %v134 = vld [vmem:[%s1 + $0x398] sm:$0xff]
    %v135 = vld [vmem:[%s1 + $0x3a0] sm:$0xff]
    %v136 = vld [vmem:[%s1 + $0x3a8] sm:$0xff]
    %v137 = vld [vmem:[%s1 + $0x3b0] sm:$0xff]
    %v138 = vld [vmem:[%s1 + $0x3b8] sm:$0xff]
    %v139 = vld [vmem:[%s1 + $0x3c0] sm:$0xff]
    %v140 = vld [vmem:[%s1 + $0x3c8] sm:$0xff]
    %v141 = vld [vmem:[%s1 + $0x3d0] sm:$0xff]
    %v142 = vld [vmem:[%s1 + $0x3d8] sm:$0xff]
    %v143 = vld [vmem:[%s1 + $0x3e0] sm:$0xff]
    %v144 = vld [vmem:[%s1 + $0x3e8] sm:$0xff]
    %v145 = vld [vmem:[%s1 + $0x3f0] sm:$0xff]
    %v146 = vld [vmem:[%s1 + $0x3f8] sm:$0xff]
    %v147 = vld [vmem:[%s1 + $0x400] sm:$0xff]
    %v148 = vld [vmem:[%s1 + $0x408] sm:$0xff]
    %v149 = vld [vmem:[%s1 + $0x410] sm:$0xff]
    %v150 = vld [vmem:[%s1 + $0x418] sm:$0xff]
    %v151 = vld [vmem:[%s1 + $0x420] sm:$0xff]
    %v152 = vld [vmem:[%s1 + $0x428] sm:$0xff]
    %v153 = vld [vmem:[%s1 + $0x430] sm:$0xff]
    %v154 = vld [vmem:[%s1 + $0x438] sm:$0xff]
    %v155 = vld [vmem:[%s1 + $0x440] sm:$0xff]
    %v156 = vld [vmem:[%s1 + $0x448] sm:$0xff]
    %v157 = vld [vmem:[%s1 + $0x450] sm:$0xff]
    %v158 = vld [vmem:[%s1 + $0x458] sm:$0xff]
    %v159 = vld [vmem:[%s1 + $0x460] sm:$0xff]
    %v160 = vld [vmem:[%s1 + $0x468] sm:$0xff]
    %v161 = vld [vmem:[%s1 + $0x470] sm:$0xff]
    %v162 = vld [vmem:[%s1 + $0x478] sm:$0xff]
    %v163 = vld [vmem:[%s1 + $0x480] sm:$0xff]
    %v164 = vld [vmem:[%s1 + $0x488] sm:$0xff]
    %v165 = vld [vmem:[%s1 + $0x490] sm:$0xff]
    %v166 = vld [vmem:[%s1 + $0x498] sm:$0xff]
    %v167 = vld [vmem:[%s1 + $0x4a0] sm:$0xff]
    %v168 = vld [vmem:[%s1 + $0x4a8] sm:$0xff]
    %v169 = vld [vmem:[%s1 + $0x4b0] sm:$0xff]
    %v170 = vld [vmem:[%s1 + $0x4b8] sm:$0xff]
    %v171 = vld [vmem:[%s1 + $0x4c0] sm:$0xff]
    %v172 = vld [vmem:[%s1 + $0x4c8] sm:$0xff]
    %v173 = vld [vmem:[%s1 + $0x4d0] sm:$0xff]
    %v174 = vld [vmem:[%s1 + $0x4d8] sm:$0xff]
    %v175 = vld [vmem:[%s1 + $0x4e0] sm:$0xff]
    %v176 = vld [vmem:[%s1 + $0x4e8] sm:$0xff]
    %v177 = vld [vmem:[%s1 + $0x4f0] sm:$0xff]
    %v178 = vld [vmem:[%s1 + $0x4f8] sm:$0xff]
    %v179 = vld [vmem:[%s1 + $0x500] sm:$0xff]
    %v180 = vld [vmem:[%s1 + $0x508] sm:$0xff]
    %v181 = vld [vmem:[%s1 + $0x510] sm:$0xff]
    %v182 = vld [vmem:[%s1 + $0x518] sm:$0xff]
    %v183 = vld [vmem:[%s1 + $0x520] sm:$0xff]
    %v184 = vld [vmem:[%s1 + $0x528] sm:$0xff]
    %v185 = vld [vmem:[%s1 + $0x530] sm:$0xff]
    %v186 = vld [vmem:[%s1 + $0x538] sm:$0xff]
    %v187 = vld [vmem:[%s1 + $0x540] sm:$0xff]
    %v188 = vld [vmem:[%s1 + $0x548] sm:$0xff]
    %v189 = vld [vmem:[%s1 + $0x550] sm:$0xff]
    %v190 = vld [vmem:[%s1 + $0x558] sm:$0xff]
    %v191 = vld [vmem:[%s1 + $0x560] sm:$0xff]
    %v192 = vld [vmem:[%s1 + $0x568] sm:$0xff]
    %v193 = vld [vmem:[%s1 + $0x570] sm:$0xff]
    %v194 = vld [vmem:[%s1 + $0x578] sm:$0xff]
    %v195 = vld [vmem:[%s1 + $0x580] sm:$0xff]
    %v196 = vld [vmem:[%s1 + $0x588] sm:$0xff]
    %v197 = vld [vmem:[%s1 + $0x590] sm:$0xff]
    %v198 = vld [vmem:[%s1 + $0x598] sm:$0xff]
    %v199 = vld [vmem:[%s1 + $0x5a0] sm:$0xff]
    %v200 = vld [vmem:[%s1 + $0x5a8] sm:$0xff]
    %v201 = vld [vmem:[%s1 + $0x5b0] sm:$0xff]
    %v202 = vld [vmem:[%s1 + $0x5b8] sm:$0xff]
    %v203 = vld [vmem:[%s1 + $0x5c0] sm:$0xff]
    %v204 = vld [vmem:[%s1 + $0x5c8] sm:$0xff]
    %v205 = vld [vmem:[%s1 + $0x5d0] sm:$0xff]
    %v206 = vld [vmem:[%s1 + $0x5d8] sm:$0xff]
    %v207 = vld [vmem:[%s1 + $0x5e0] sm:$0xff]
    %v208 = vld [vmem:[%s1 + $0x5e8] sm:$0xff]
    %v209 = vld [vmem:[%s1 + $0x5f0] sm:$0xff]
    %v210 = vld [vmem:[%s1 + $0x5f8] sm:$0xff]
    %v211 = vld [vmem:[%s1 + $0x600] sm:$0xff]
    %v212 = vld [vmem:[%s1 + $0x608] sm:$0xff]
    %v213 = vld [vmem:[%s1 + $0x610] sm:$0xff]
    %v214 = vld [vmem:[%s1 + $0x618] sm:$0xff]
    %v215 = vld [vmem:[%s2] sm:$0x1]
    %v217 = vlaneseq
    %v218 = vshrl.u32 %v217, 7
    %v219 = vsub.s32 0, %v218
    %v220 = vrot.slane %v215, %v219
    %v226 = vcombine.high %v15, %v15
    %v228 = vunpack.c.l.s4 1983009808
    %v229 = vunpack.c.0.s8 %v228
    %v230 = vlaneseq
    %v231 = vshrl.u32 %v230, 7
    %v232 = vsub.s32 %v229, %v231
    %v233 = vrot.slane %v15, %v232
    %v235 = vunpack.c.l.s4 1983009808
    %v236 = vunpack.c.0.s8 %v235
    %v237 = vlaneseq
    %v238 = vshrl.u32 %v237, 7
    %v239 = vsub.s32 %v236, %v238
    %v240 = vrot.slane %v226, %v239
    %v241 = vcombine.high %v233, %v233
    %v242 = vcombine.high %v240, %v240
    %v243 = vcombine.high %v16, %v16
    %v245 = vunpack.c.l.s4 1983009808
    %v246 = vunpack.c.0.s8 %v245
    %v247 = vlaneseq
    %v248 = vshrl.u32 %v247, 7
    %v249 = vsub.s32 %v246, %v248
    %v250 = vrot.slane %v16, %v249
    %v252 = vunpack.c.l.s4 1983009808
    %v253 = vunpack.c.0.s8 %v252
    %v254 = vlaneseq
    %v255 = vshrl.u32 %v254, 7
    %v256 = vsub.s32 %v253, %v255
    %v257 = vrot.slane %v243, %v256
    %v258 = vcombine.high %v250, %v250
    %v259 = vcombine.high %v257, %v257
    %v260 = vcombine.high %v17, %v17
    %v262 = vunpack.c.l.s4 1983009808
    %v263 = vunpack.c.0.s8 %v262
    %v264 = vlaneseq
    %v265 = vshrl.u32 %v264, 7
    %v266 = vsub.s32 %v263, %v265
    %v267 = vrot.slane %v17, %v266
    %v269 = vunpack.c.l.s4 1983009808
    %v270 = vunpack.c.0.s8 %v269
    %v271 = vlaneseq
    %v272 = vshrl.u32 %v271, 7
    %v273 = vsub.s32 %v270, %v272
    %v274 = vrot.slane %v260, %v273
    %v275 = vcombine.high %v267, %v267
    %v276 = vcombine.high %v274, %v274
    %v278 = vunpack.c.l.s4 1983009808
    %v279 = vunpack.c.0.s8 %v278
    %v280 = vlaneseq
    %v281 = vshrl.u32 %v280, 7
    %v282 = vsub.s32 %v279, %v281
    %v283 = vrot.slane %v18, %v282
    %vm296 = vcmask 261120
    %v297 = vsel %vm296, %v283, 0
    %299 = vmatprep.subr.mxu0 0.0
    %300 = vmatpush1.msra.mxu0 %v19
    %301 = vmatprep.subr.mxu0 0.0
    %302 = vmatpush1.msra.mxu0 %v20
    %303 = vmatprep.subr.mxu0 0.0
    %304 = vmatpush1.msra.mxu0 %v21
    %305 = vmatprep.subr.mxu0 0.0
    %306 = vmatpush1.msra.mxu0 %v22
    %307 = vmatprep.subr.mxu0 0.0
    %308 = vmatpush1.msra.mxu0 %v23
    %309 = vmatprep.subr.mxu0 0.0
    %310 = vmatpush1.msra.mxu0 %v24
    %311 = vmatprep.subr.mxu0 0.0
    %312 = vmatpush1.msra.mxu0 %v25
    %313 = vmatprep.subr.mxu0 0.0
    %314 = vmatpush1.msra.mxu0 %v26
    %315 = vmatprep.subr.mxu0 0.0
    %316 = vmatpush1.msra.mxu0 %v27
    %317 = vmatprep.subr.mxu0 0.0
    %318 = vmatpush1.msra.mxu0 %v28
    %319 = vmatprep.subr.mxu0 0.0
    %320 = vmatpush1.msra.mxu0 %v29
    %321 = vmatprep.subr.mxu0 0.0
    %322 = vmatpush1.msra.mxu0 %v30
    %323 = vmatprep.subr.mxu0 0.0
    %324 = vmatpush1.msra.mxu0 %v31
    %325 = vmatprep.subr.mxu0 0.0
    %326 = vmatpush1.msra.mxu0 %v32
    %327 = vmatprep.subr.mxu0 0.0
    %328 = vmatpush1.msra.mxu0 %v33
    %329 = vmatprep.subr.mxu0 0.0
    %330 = vmatpush1.msra.mxu0 %v34
    %331 = vmatprep.subr.mxu0 0.0
    %332 = vmatpush1.msra.mxu0 %v35
    %333 = vmatprep.subr.mxu0 0.0
    %334 = vmatpush1.msra.mxu0 %v36
    %335 = vmatprep.subr.mxu0 0.0
    %336 = vmatpush1.msra.mxu0 %v37
    %337 = vmatprep.subr.mxu0 0.0
    %338 = vmatpush1.msra.mxu0 %v38
    %339 = vmatprep.subr.mxu0 0.0
    %340 = vmatpush1.msra.mxu0 %v39
    %341 = vmatprep.subr.mxu0 0.0
    %342 = vmatpush1.msra.mxu0 %v40
    %343 = vmatprep.subr.mxu0 0.0
    %344 = vmatpush1.msra.mxu0 %v41
    %345 = vmatprep.subr.mxu0 0.0
    %346 = vmatpush1.msra.mxu0 %v42
    %347 = vmatprep.subr.mxu0 0.0
    %348 = vmatpush1.msra.mxu0 %v43
    %349 = vmatprep.subr.mxu0 0.0
    %350 = vmatpush1.msra.mxu0 %v44
    %351 = vmatprep.subr.mxu0 0.0
    %352 = vmatpush1.msra.mxu0 %v45
    %353 = vmatprep.subr.mxu0 0.0
    %354 = vmatpush1.msra.mxu0 %v46
    %355 = vmatprep.subr.mxu0 0.0
    %356 = vmatpush1.msra.mxu0 %v47
    %357 = vmatprep.subr.mxu0 0.0
    %358 = vmatpush1.msra.mxu0 %v48
    %359 = vmatprep.subr.mxu0 0.0
    %360 = vmatpush1.msra.mxu0 %v49
    %361 = vmatprep.subr.mxu0 0.0
    %362 = vmatpush1.msra.mxu0 %v50
    %363 = vmatprep.mubr.f32.mxu0 %v241
    %364 = vmatmul.mubr.f32.gmra.mrb[0].mxu0 %v233
    %v365 = vpop.f32.mrb[0].mxu0
    %v366 = vadd.f32 %v220, %v365
    %v367 = vpop.f32.mrb[0].mxu0
    %368 = vdwg.mxu0
    %369 = vmatprep.subr.mxu0 0.0
    %370 = vmatpush1.msra.mxu0 %v51
    %371 = vmatprep.subr.mxu0 0.0
    %372 = vmatpush1.msra.mxu0 %v52
    %373 = vmatprep.subr.mxu0 0.0
    %374 = vmatpush1.msra.mxu0 %v53
    %375 = vmatprep.subr.mxu0 0.0
    %376 = vmatpush1.msra.mxu0 %v54
    %377 = vmatprep.subr.mxu0 0.0
    %378 = vmatpush1.msra.mxu0 %v55
    %379 = vmatprep.subr.mxu0 0.0
    %380 = vmatpush1.msra.mxu0 %v56
    %381 = vmatprep.subr.mxu0 0.0
    %382 = vmatpush1.msra.mxu0 %v57
    %383 = vmatprep.subr.mxu0 0.0
    %384 = vmatpush1.msra.mxu0 %v58
    %385 = vmatprep.subr.mxu0 0.0
    %386 = vmatpush1.msra.mxu0 %v59
    %387 = vmatprep.subr.mxu0 0.0
    %388 = vmatpush1.msra.mxu0 %v60
    %389 = vmatprep.subr.mxu0 0.0
    %390 = vmatpush1.msra.mxu0 %v61
    %391 = vmatprep.subr.mxu0 0.0
    %392 = vmatpush1.msra.mxu0 %v62
    %393 = vmatprep.subr.mxu0 0.0
    %394 = vmatpush1.msra.mxu0 %v63
    %395 = vmatprep.subr.mxu0 0.0
    %396 = vmatpush1.msra.mxu0 %v64
    %397 = vmatprep.subr.mxu0 0.0
    %398 = vmatpush1.msra.mxu0 %v65
    %399 = vmatprep.subr.mxu0 0.0
    %400 = vmatpush1.msra.mxu0 %v66
    %401 = vmatprep.subr.mxu0 0.0
    %402 = vmatpush1.msra.mxu0 %v67
    %403 = vmatprep.subr.mxu0 0.0
    %404 = vmatpush1.msra.mxu0 %v68
    %405 = vmatprep.subr.mxu0 0.0
    %406 = vmatpush1.msra.mxu0 %v69
    %407 = vmatprep.subr.mxu0 0.0
    %408 = vmatpush1.msra.mxu0 %v70
    %409 = vmatprep.subr.mxu0 0.0
    %410 = vmatpush1.msra.mxu0 %v71
    %411 = vmatprep.subr.mxu0 0.0
    %412 = vmatpush1.msra.mxu0 %v72
    %413 = vmatprep.subr.mxu0 0.0
    %414 = vmatpush1.msra.mxu0 %v73
    %415 = vmatprep.subr.mxu0 0.0
    %416 = vmatpush1.msra.mxu0 %v74
    %417 = vmatprep.subr.mxu0 0.0
    %418 = vmatpush1.msra.mxu0 %v75
    %419 = vmatprep.subr.mxu0 0.0
    %420 = vmatpush1.msra.mxu0 %v76
    %421 = vmatprep.subr.mxu0 0.0
    %422 = vmatpush1.msra.mxu0 %v77
    %423 = vmatprep.subr.mxu0 0.0
    %424 = vmatpush1.msra.mxu0 %v78
    %425 = vmatprep.subr.mxu0 0.0
    %426 = vmatpush1.msra.mxu0 %v79
    %427 = vmatprep.subr.mxu0 0.0
    %428 = vmatpush1.msra.mxu0 %v80
    %429 = vmatprep.subr.mxu0 0.0
    %430 = vmatpush1.msra.mxu0 %v81
    %431 = vmatprep.subr.mxu0 0.0
    %432 = vmatpush1.msra.mxu0 %v82
    %433 = vmatprep.mubr.f32.mxu0 %v242
    %434 = vmatmul.mubr.f32.gmra.mrb[0].mxu0 %v240
    %v435 = vpop.f32.mrb[0].mxu0
    %v436 = vadd.f32 %v366, %v435
    %v437 = vpop.f32.mrb[0].mxu0
    %438 = vdwg.mxu0
    %439 = vmatprep.subr.mxu0 0.0
    %440 = vmatpush1.msra.mxu0 %v83
    %441 = vmatprep.subr.mxu0 0.0
    %442 = vmatpush1.msra.mxu0 %v84
    %443 = vmatprep.subr.mxu0 0.0
    %444 = vmatpush1.msra.mxu0 %v85
    %445 = vmatprep.subr.mxu0 0.0
    %446 = vmatpush1.msra.mxu0 %v86
    %447 = vmatprep.subr.mxu0 0.0
    %448 = vmatpush1.msra.mxu0 %v87
    %449 = vmatprep.subr.mxu0 0.0
    %450 = vmatpush1.msra.mxu0 %v88
    %451 = vmatprep.subr.mxu0 0.0
    %452 = vmatpush1.msra.mxu0 %v89
    %453 = vmatprep.subr.mxu0 0.0
    %454 = vmatpush1.msra.mxu0 %v90
    %455 = vmatprep.subr.mxu0 0.0
    %456 = vmatpush1.msra.mxu0 %v91
    %457 = vmatprep.subr.mxu0 0.0
    %458 = vmatpush1.msra.mxu0 %v92
    %459 = vmatprep.subr.mxu0 0.0
    %460 = vmatpush1.msra.mxu0 %v93
    %461 = vmatprep.subr.mxu0 0.0
    %462 = vmatpush1.msra.mxu0 %v94
    %463 = vmatprep.subr.mxu0 0.0
    %464 = vmatpush1.msra.mxu0 %v95
    %465 = vmatprep.subr.mxu0 0.0
    %466 = vmatpush1.msra.mxu0 %v96
    %467 = vmatprep.subr.mxu0 0.0
    %468 = vmatpush1.msra.mxu0 %v97
    %469 = vmatprep.subr.mxu0 0.0
    %470 = vmatpush1.msra.mxu0 %v98
    %471 = vmatprep.subr.mxu0 0.0
    %472 = vmatpush1.msra.mxu0 %v99
    %473 = vmatprep.subr.mxu0 0.0
    %474 = vmatpush1.msra.mxu0 %v100
    %475 = vmatprep.subr.mxu0 0.0
    %476 = vmatpush1.msra.mxu0 %v101
    %477 = vmatprep.subr.mxu0 0.0
    %478 = vmatpush1.msra.mxu0 %v102
    %479 = vmatprep.subr.mxu0 0.0
    %480 = vmatpush1.msra.mxu0 %v103
    %481 = vmatprep.subr.mxu0 0.0
    %482 = vmatpush1.msra.mxu0 %v104
    %483 = vmatprep.subr.mxu0 0.0
    %484 = vmatpush1.msra.mxu0 %v105
    %485 = vmatprep.subr.mxu0 0.0
    %486 = vmatpush1.msra.mxu0 %v106
    %487 = vmatprep.subr.mxu0 0.0
    %488 = vmatpush1.msra.mxu0 %v107
    %489 = vmatprep.subr.mxu0 0.0
    %490 = vmatpush1.msra.mxu0 %v108
    %491 = vmatprep.subr.mxu0 0.0
    %492 = vmatpush1.msra.mxu0 %v109
    %493 = vmatprep.subr.mxu0 0.0
    %494 = vmatpush1.msra.mxu0 %v110
    %495 = vmatprep.subr.mxu0 0.0
    %496 = vmatpush1.msra.mxu0 %v111
    %497 = vmatprep.subr.mxu0 0.0
    %498 = vmatpush1.msra.mxu0 %v112
    %499 = vmatprep.subr.mxu0 0.0
    %500 = vmatpush1.msra.mxu0 %v113
    %501 = vmatprep.subr.mxu0 0.0
    %502 = vmatpush1.msra.mxu0 %v114
    %503 = vmatprep.mubr.f32.mxu0 %v258
    %504 = vmatmul.mubr.f32.gmra.mrb[0].mxu0 %v250
    %v505 = vpop.f32.mrb[0].mxu0
    %v506 = vadd.f32 %v436, %v505
    %v507 = vpop.f32.mrb[0].mxu0
    %508 = vdwg.mxu0
    %509 = vmatprep.subr.mxu0 0.0
    %510 = vmatpush1.msra.mxu0 %v115
    %511 = vmatprep.subr.mxu0 0.0
    %512 = vmatpush1.msra.mxu0 %v116
    %513 = vmatprep.subr.mxu0 0.0
    %514 = vmatpush1.msra.mxu0 %v117
    %515 = vmatprep.subr.mxu0 0.0
    %516 = vmatpush1.msra.mxu0 %v118
    %517 = vmatprep.subr.mxu0 0.0
    %518 = vmatpush1.msra.mxu0 %v119
    %519 = vmatprep.subr.mxu0 0.0
    %520 = vmatpush1.msra.mxu0 %v120
    %521 = vmatprep.subr.mxu0 0.0
    %522 = vmatpush1.msra.mxu0 %v121
    %523 = vmatprep.subr.mxu0 0.0
    %524 = vmatpush1.msra.mxu0 %v122
    %525 = vmatprep.subr.mxu0 0.0
    %526 = vmatpush1.msra.mxu0 %v123
    %527 = vmatprep.subr.mxu0 0.0
    %528 = vmatpush1.msra.mxu0 %v124
    %529 = vmatprep.subr.mxu0 0.0
    %530 = vmatpush1.msra.mxu0 %v125
    %531 = vmatprep.subr.mxu0 0.0
    %532 = vmatpush1.msra.mxu0 %v126
    %533 = vmatprep.subr.mxu0 0.0
    %534 = vmatpush1.msra.mxu0 %v127
    %535 = vmatprep.subr.mxu0 0.0
    %536 = vmatpush1.msra.mxu0 %v128
    %537 = vmatprep.subr.mxu0 0.0
    %538 = vmatpush1.msra.mxu0 %v129
    %539 = vmatprep.subr.mxu0 0.0
    %540 = vmatpush1.msra.mxu0 %v130
    %541 = vmatprep.subr.mxu0 0.0
    %542 = vmatpush1.msra.mxu0 %v131
    %543 = vmatprep.subr.mxu0 0.0
    %544 = vmatpush1.msra.mxu0 %v132
    %545 = vmatprep.subr.mxu0 0.0
    %546 = vmatpush1.msra.mxu0 %v133
    %547 = vmatprep.subr.mxu0 0.0
    %548 = vmatpush1.msra.mxu0 %v134
    %549 = vmatprep.subr.mxu0 0.0
    %550 = vmatpush1.msra.mxu0 %v135
    %551 = vmatprep.subr.mxu0 0.0
    %552 = vmatpush1.msra.mxu0 %v136
    %553 = vmatprep.subr.mxu0 0.0
    %554 = vmatpush1.msra.mxu0 %v137
    %555 = vmatprep.subr.mxu0 0.0
    %556 = vmatpush1.msra.mxu0 %v138
    %557 = vmatprep.subr.mxu0 0.0
    %558 = vmatpush1.msra.mxu0 %v139
    %559 = vmatprep.subr.mxu0 0.0
    %560 = vmatpush1.msra.mxu0 %v140
    %561 = vmatprep.subr.mxu0 0.0
    %562 = vmatpush1.msra.mxu0 %v141
    %563 = vmatprep.subr.mxu0 0.0
    %564 = vmatpush1.msra.mxu0 %v142
    %565 = vmatprep.subr.mxu0 0.0
    %566 = vmatpush1.msra.mxu0 %v143
    %567 = vmatprep.subr.mxu0 0.0
    %568 = vmatpush1.msra.mxu0 %v144
    %569 = vmatprep.subr.mxu0 0.0
    %570 = vmatpush1.msra.mxu0 %v145
    %571 = vmatprep.subr.mxu0 0.0
    %572 = vmatpush1.msra.mxu0 %v146
    %573 = vmatprep.mubr.f32.mxu0 %v259
    %574 = vmatmul.mubr.f32.gmra.mrb[0].mxu0 %v257
    %v575 = vpop.f32.mrb[0].mxu0
    %v576 = vadd.f32 %v506, %v575
    %v577 = vpop.f32.mrb[0].mxu0
    %578 = vdwg.mxu0
    %579 = vmatprep.subr.mxu0 0.0
    %580 = vmatpush1.msra.mxu0 %v147
    %581 = vmatprep.subr.mxu0 0.0
    %582 = vmatpush1.msra.mxu0 %v148
    %583 = vmatprep.subr.mxu0 0.0
    %584 = vmatpush1.msra.mxu0 %v149
    %585 = vmatprep.subr.mxu0 0.0
    %586 = vmatpush1.msra.mxu0 %v150
    %587 = vmatprep.subr.mxu0 0.0
    %588 = vmatpush1.msra.mxu0 %v151
    %589 = vmatprep.subr.mxu0 0.0
    %590 = vmatpush1.msra.mxu0 %v152
    %591 = vmatprep.subr.mxu0 0.0
    %592 = vmatpush1.msra.mxu0 %v153
    %593 = vmatprep.subr.mxu0 0.0
    %594 = vmatpush1.msra.mxu0 %v154
    %595 = vmatprep.subr.mxu0 0.0
    %596 = vmatpush1.msra.mxu0 %v155
    %597 = vmatprep.subr.mxu0 0.0
    %598 = vmatpush1.msra.mxu0 %v156
    %599 = vmatprep.subr.mxu0 0.0
    %600 = vmatpush1.msra.mxu0 %v157
    %601 = vmatprep.subr.mxu0 0.0
    %602 = vmatpush1.msra.mxu0 %v158
    %603 = vmatprep.subr.mxu0 0.0
    %604 = vmatpush1.msra.mxu0 %v159
    %605 = vmatprep.subr.mxu0 0.0
    %606 = vmatpush1.msra.mxu0 %v160
    %607 = vmatprep.subr.mxu0 0.0
    %608 = vmatpush1.msra.mxu0 %v161
    %609 = vmatprep.subr.mxu0 0.0
    %610 = vmatpush1.msra.mxu0 %v162
    %611 = vmatprep.subr.mxu0 0.0
    %612 = vmatpush1.msra.mxu0 %v163
    %613 = vmatprep.subr.mxu0 0.0
    %614 = vmatpush1.msra.mxu0 %v164
    %615 = vmatprep.subr.mxu0 0.0
    %616 = vmatpush1.msra.mxu0 %v165
    %617 = vmatprep.subr.mxu0 0.0
    %618 = vmatpush1.msra.mxu0 %v166
    %619 = vmatprep.subr.mxu0 0.0
    %620 = vmatpush1.msra.mxu0 %v167
    %621 = vmatprep.subr.mxu0 0.0
    %622 = vmatpush1.msra.mxu0 %v168
    %623 = vmatprep.subr.mxu0 0.0
    %624 = vmatpush1.msra.mxu0 %v169
    %625 = vmatprep.subr.mxu0 0.0
    %626 = vmatpush1.msra.mxu0 %v170
    %627 = vmatprep.subr.mxu0 0.0
    %628 = vmatpush1.msra.mxu0 %v171
    %629 = vmatprep.subr.mxu0 0.0
    %630 = vmatpush1.msra.mxu0 %v172
    %631 = vmatprep.subr.mxu0 0.0
    %632 = vmatpush1.msra.mxu0 %v173
    %633 = vmatprep.subr.mxu0 0.0
    %634 = vmatpush1.msra.mxu0 %v174
    %635 = vmatprep.subr.mxu0 0.0
    %636 = vmatpush1.msra.mxu0 %v175
    %637 = vmatprep.subr.mxu0 0.0
    %638 = vmatpush1.msra.mxu0 %v176
    %639 = vmatprep.subr.mxu0 0.0
    %640 = vmatpush1.msra.mxu0 %v177
    %641 = vmatprep.subr.mxu0 0.0
    %642 = vmatpush1.msra.mxu0 %v178
    %643 = vmatprep.mubr.f32.mxu0 %v275
    %644 = vmatmul.mubr.f32.gmra.mrb[0].mxu0 %v267
    %v645 = vpop.f32.mrb[0].mxu0
    %v646 = vadd.f32 %v576, %v645
    %v647 = vpop.f32.mrb[0].mxu0
    %648 = vdwg.mxu0
    %649 = vmatprep.subr.mxu0 0.0
    %650 = vmatpush1.msra.mxu0 %v179
    %651 = vmatprep.subr.mxu0 0.0
    %652 = vmatpush1.msra.mxu0 %v180
    %653 = vmatprep.subr.mxu0 0.0
    %654 = vmatpush1.msra.mxu0 %v181
    %655 = vmatprep.subr.mxu0 0.0
    %656 = vmatpush1.msra.mxu0 %v182
    %657 = vmatprep.subr.mxu0 0.0
    %658 = vmatpush1.msra.mxu0 %v183
    %659 = vmatprep.subr.mxu0 0.0
    %660 = vmatpush1.msra.mxu0 %v184
    %661 = vmatprep.subr.mxu0 0.0
    %662 = vmatpush1.msra.mxu0 %v185
    %663 = vmatprep.subr.mxu0 0.0
    %664 = vmatpush1.msra.mxu0 %v186
    %665 = vmatprep.subr.mxu0 0.0
    %666 = vmatpush1.msra.mxu0 %v187
    %667 = vmatprep.subr.mxu0 0.0
    %668 = vmatpush1.msra.mxu0 %v188
    %669 = vmatprep.subr.mxu0 0.0
    %670 = vmatpush1.msra.mxu0 %v189
    %671 = vmatprep.subr.mxu0 0.0
    %672 = vmatpush1.msra.mxu0 %v190
    %673 = vmatprep.subr.mxu0 0.0
    %674 = vmatpush1.msra.mxu0 %v191
    %675 = vmatprep.subr.mxu0 0.0
    %676 = vmatpush1.msra.mxu0 %v192
    %677 = vmatprep.subr.mxu0 0.0
    %678 = vmatpush1.msra.mxu0 %v193
    %679 = vmatprep.subr.mxu0 0.0
    %680 = vmatpush1.msra.mxu0 %v194
    %681 = vmatprep.subr.mxu0 0.0
    %682 = vmatpush1.msra.mxu0 %v195
    %683 = vmatprep.subr.mxu0 0.0
    %684 = vmatpush1.msra.mxu0 %v196
    %685 = vmatprep.subr.mxu0 0.0
    %686 = vmatpush1.msra.mxu0 %v197
    %687 = vmatprep.subr.mxu0 0.0
    %688 = vmatpush1.msra.mxu0 %v198
    %689 = vmatprep.subr.mxu0 0.0
    %690 = vmatpush1.msra.mxu0 %v199
    %691 = vmatprep.subr.mxu0 0.0
    %692 = vmatpush1.msra.mxu0 %v200
    %693 = vmatprep.subr.mxu0 0.0
    %694 = vmatpush1.msra.mxu0 %v201
    %695 = vmatprep.subr.mxu0 0.0
    %696 = vmatpush1.msra.mxu0 %v202
    %697 = vmatprep.subr.mxu0 0.0
    %698 = vmatpush1.msra.mxu0 %v203
    %699 = vmatprep.subr.mxu0 0.0
    %700 = vmatpush1.msra.mxu0 %v204
    %701 = vmatprep.subr.mxu0 0.0
    %702 = vmatpush1.msra.mxu0 %v205
    %703 = vmatprep.subr.mxu0 0.0
    %704 = vmatpush1.msra.mxu0 %v206
    %705 = vmatprep.subr.mxu0 0.0
    %706 = vmatpush1.msra.mxu0 %v207
    %707 = vmatprep.subr.mxu0 0.0
    %708 = vmatpush1.msra.mxu0 %v208
    %709 = vmatprep.subr.mxu0 0.0
    %710 = vmatpush1.msra.mxu0 %v209
    %711 = vmatprep.subr.mxu0 0.0
    %712 = vmatpush1.msra.mxu0 %v210
    %713 = vmatprep.mubr.f32.mxu0 %v276
    %714 = vmatmul.mubr.f32.gmra.mrb[0].mxu0 %v274
    %v715 = vpop.f32.mrb[0].mxu0
    %v716 = vadd.f32 %v646, %v715
    %v717 = vpop.f32.mrb[0].mxu0
    %718 = vdwg.mxu0
    %719 = vmatprep.subr.mxu0 0.0
    %720 = vmatpush1.msra.mxu0 %v211
    %721 = vmatprep.subr.mxu0 0.0
    %722 = vmatpush1.msra.mxu0 %v212
    %723 = vmatprep.subr.mxu0 0.0
    %724 = vmatpush1.msra.mxu0 %v213
    %725 = vmatprep.subr.mxu0 0.0
    %726 = vmatpush1.msra.mxu0 %v214
    %727 = vmatprep.subr.mxu0 0.0
    %728 = vmatpush1.msra.mxu0 0.0
    %729 = vmatprep.subr.mxu0 0.0
    %730 = vmatpush1.msra.mxu0 0.0
    %731 = vmatprep.subr.mxu0 0.0
    %732 = vmatpush1.msra.mxu0 0.0
    %733 = vmatprep.subr.mxu0 0.0
    %734 = vmatpush1.msra.mxu0 0.0
    %735 = vmatprep.subr.mxu0 0.0
    %736 = vmatpush1.msra.mxu0 0.0
    %737 = vmatprep.subr.mxu0 0.0
    %738 = vmatpush1.msra.mxu0 0.0
    %739 = vmatprep.subr.mxu0 0.0
    %740 = vmatpush1.msra.mxu0 0.0
    %741 = vmatprep.subr.mxu0 0.0
    %742 = vmatpush1.msra.mxu0 0.0
    %743 = vmatprep.subr.mxu0 0.0
    %744 = vmatpush1.msra.mxu0 0.0
    %745 = vmatprep.subr.mxu0 0.0
    %746 = vmatpush1.msra.mxu0 0.0
    %747 = vmatprep.subr.mxu0 0.0
    %748 = vmatpush1.msra.mxu0 0.0
    %749 = vmatprep.subr.mxu0 0.0
    %750 = vmatpush1.msra.mxu0 0.0
    %751 = vmatprep.subr.mxu0 0.0
    %752 = vmatpush1.msra.mxu0 0.0
    %753 = vmatprep.subr.mxu0 0.0
    %754 = vmatpush1.msra.mxu0 0.0
    %755 = vmatprep.subr.mxu0 0.0
    %756 = vmatpush1.msra.mxu0 0.0
    %757 = vmatprep.subr.mxu0 0.0
    %758 = vmatpush1.msra.mxu0 0.0
    %759 = vmatprep.subr.mxu0 0.0
    %760 = vmatpush1.msra.mxu0 0.0
    %761 = vmatprep.subr.mxu0 0.0
    %762 = vmatpush1.msra.mxu0 0.0
    %763 = vmatprep.subr.mxu0 0.0
    %764 = vmatpush1.msra.mxu0 0.0
    %765 = vmatprep.subr.mxu0 0.0
    %766 = vmatpush1.msra.mxu0 0.0
    %767 = vmatprep.subr.mxu0 0.0
    %768 = vmatpush1.msra.mxu0 0.0
    %769 = vmatprep.subr.mxu0 0.0
    %770 = vmatpush1.msra.mxu0 0.0
    %771 = vmatprep.subr.mxu0 0.0
    %772 = vmatpush1.msra.mxu0 0.0
    %773 = vmatprep.subr.mxu0 0.0
    %774 = vmatpush1.msra.mxu0 0.0
    %775 = vmatprep.subr.mxu0 0.0
    %776 = vmatpush1.msra.mxu0 0.0
    %777 = vmatprep.subr.mxu0 0.0
    %778 = vmatpush1.msra.mxu0 0.0
    %779 = vmatprep.subr.mxu0 0.0
    %780 = vmatpush1.msra.mxu0 0.0
    %781 = vmatprep.subr.mxu0 0.0
    %782 = vmatpush1.msra.mxu0 0.0
    %783 = vmatprep.mubr.f32.mxu0 0.0
    %784 = vmatmul.mubr.f32.gmra.mrb[0].mxu0 %v297
    %v785 = vpop.f32.mrb[0].mxu0
    %v786 = vadd.f32 %v716, %v785
    %v787 = vpop.f32.mrb[0].mxu0
    %788 = vdwg.mxu0
    %vm789 = vcmask 74752
    %790 = vst.msk [vmem:[#allocation2] sm:$0x3] %vm789, %v786
    // Predicated region
    $region14: #{cnn_forward.5} parent=1 // pred_check
      _
    $region15: #{cnn_forward.5} parent=1 // pred_check_branch
      %792 = sbr.rel (0) target = $region17
    $region16: #{cnn_forward.5} parent=1 // pred_region
      %s794 = ssub.s32 32, 32
      %795 = vsyncadd [#allocation3], %s794
      %s797 = sshll.u32 [#allocation2], 4
      %s798 = int_to_ptr.vmem [resolvable:$true] %s797
      %800 = dma.vmem_to_hbm [thread:$0]  %s798, 32, %s3, [#allocation3]
    $region17: #{cnn_forward.5} parent=1 // pred_fallthru
      _
    // Predicated region
    $region18: #{cnn_forward.5} parent=1 // pred_check
      _
    $region19: #{cnn_forward.5} parent=1 // pred_check_branch
      %802 = sbr.rel (0) target = $region21
    $region20: #{cnn_forward.5} parent=1 // pred_region
      %803 = dma.done [#allocation3], 32
    $region21: #{cnn_forward.5} parent=1 // pred_fallthru
      _
    %804 = vsyncpa [#allocation3], 1

</llo_original>
